<compile_context>
chip_gen: v7x
topology: tpu7x:2x2x1
jax: 0.10.0
libtpu: 0.0.40
codegen_flags: <defaults>
</compile_context>

<pallas_src>
import math
import functools

import jax
import jax.numpy as jnp
from jax import lax
from jax.experimental import pallas as pl
from jax.experimental.pallas import tpu as pltpu


def _round_up(n, m):
    return ((n + m - 1) // m) * m


def _cdiv(a, b):
    return (a + b - 1) // b


def _vmem_limit_bytes():
    """Generation-aware scoped-VMEM limit: leave ~16 MiB headroom, cap at 112 MiB."""
    cap = 64 * 1024 * 1024
    try:
        cap = int(pltpu.get_tpu_info().vmem_capacity_bytes)
    except Exception:
        pass
    return max(32 * 1024 * 1024, min(cap - 16 * 1024 * 1024, 112 * 1024 * 1024))


def _intervention_kernel(x_ref, k_ref, *rest, res: bool, has_kbias: bool):
    if has_kbias:
        (kbias_ref, gamma_ref, beta_ref, wq_ref, bq_ref,
         wv_ref, bv_ref, wo_ref, bo_ref, out_ref) = rest
    else:
        (gamma_ref, beta_ref, wq_ref, bq_ref,
         wv_ref, bv_ref, wo_ref, bo_ref, out_ref) = rest
        kbias_ref = None

    # ---- LayerNorm(x) over features (eps = 1e-5, PyTorch default), f32 ----
    x = x_ref[...].astype(jnp.float32)                              # (TQ, D)
    mean = jnp.mean(x, axis=-1, keepdims=True)
    var = jnp.mean(x * x, axis=-1, keepdims=True) - mean * mean     # one-pass
    var = jnp.maximum(var, 0.0)                                     # numerical guard
    xn = (x - mean) * lax.rsqrt(var + 1e-5)
    xn = xn * gamma_ref[...] + beta_ref[...]                        # (TQ, D)

    # ---- q projection (wq/bq pre-scaled by 1/sqrt(E) in the wrapper) ----
    xn_b = xn.astype(jnp.bfloat16)
    q_s = jnp.dot(xn_b, wq_ref[...],
                  preferred_element_type=jnp.float32) + bq_ref[...]  # (TQ, E) f32
    q_b = q_s.astype(jnp.bfloat16)

    # ---- logits: contract last dims directly (no in-kernel transpose of k) ----
    kb = k_ref[...]                                                  # (Mp, E) bf16
    qk = lax.dot_general(q_b, kb, (((1,), (1,)), ((), ())),
                         preferred_element_type=jnp.float32)         # (TQ, Mp)
    if has_kbias:
        qk = qk + kbias_ref[...]                                     # mask padded keys

    # ---- softmax with deferred normalization ----
    qk_max = jnp.max(qk, axis=-1, keepdims=True)
    p = jnp.exp(qk - qk_max)                                         # (TQ, Mp) un-normalized
    inv_l = pl.reciprocal(jnp.sum(p, axis=-1, keepdims=True), approx=True)

    # ---- (p @ k) normalized on the narrow (TQ, E) result, then v projection ----
    sk = jnp.dot(p.astype(jnp.bfloat16), kb,
                 preferred_element_type=jnp.float32) * inv_l         # (TQ, E)
    outv = jnp.dot(sk.astype(jnp.bfloat16), wv_ref[...],
                   preferred_element_type=jnp.float32) + bv_ref[...] # (TQ, E)

    # ---- fused output projection: cat([q, outv]) @ wo_cat (K = 2E) ----
    qo = jnp.concatenate([q_b, outv.astype(jnp.bfloat16)], axis=-1)  # (TQ, 2E)
    o = jnp.dot(qo, wo_ref[...],
                preferred_element_type=jnp.float32) + bo_ref[...]    # (TQ, D)

    if not res:
        o = o + xn           # PyTorch: residual is the LayerNorm-ed x (x was reassigned)
    out_ref[...] = o.astype(out_ref.dtype)


def _pallas_forward(x_pad, k_bf, key_bias, gamma, beta, wq_s, bq_s,
                    wv_b, bv, wo_cat, bo, *, tile_q, res, single_buffer, out_dtype):
    N_pad, D = x_pad.shape
    Mp, E = k_bf.shape
    has_kbias = key_bias is not None

    if single_buffer:
        # Grid-invariant blocks: one buffer is enough (they never change).
        inv = lambda shape: pl.BlockSpec(shape, lambda i: (0, 0),
                                         pipeline_mode=pl.Buffered(1))
    else:
        inv = lambda shape: pl.BlockSpec(shape, lambda i: (0, 0))

    in_specs = [pl.BlockSpec((tile_q, D), lambda i: (i, 0)),   # x tile (streamed)
                inv((Mp, E))]                                  # precomputed keys
    operands = [x_pad, k_bf]
    if has_kbias:
        in_specs.append(inv((1, Mp)))                          # key mask bias
        operands.append(key_bias)
    in_specs += [inv((1, D)), inv((1, D)),                     # gamma, beta
                 inv((D, E)), inv((1, E)),                     # wq (pre-scaled), bq
                 inv((E, E)), inv((1, E)),                     # wv, bv
                 inv((2 * E, D)), inv((1, D))]                 # stacked wo, bo
    operands += [gamma, beta, wq_s, bq_s, wv_b, bv, wo_cat, bo]

    out = pl.pallas_call(
        functools.partial(_intervention_kernel, res=res, has_kbias=has_kbias),
        out_shape=jax.ShapeDtypeStruct((N_pad, D), out_dtype),
        grid_spec=pltpu.PrefetchScalarGridSpec(
            num_scalar_prefetch=0,
            grid=(N_pad // tile_q,),
            in_specs=in_specs,
            out_specs=pl.BlockSpec((tile_q, D), lambda i: (i, 0)),
        ),
        compiler_params=pltpu.CompilerParams(
            dimension_semantics=("parallel",),
            vmem_limit_bytes=_vmem_limit_bytes(),
        ),
    )(*operands)
    return out


def intervention_online(x, x_hat, params, *, res=False, tile_q=512):
    """x: (B, S, D) or (N, D); x_hat: (1, M, D) or (M, D). Returns (1, N, D)."""
    D = params["wq"].shape[0]
    E = params["wq"].shape[1]
    x2 = x.reshape((-1, D))                                  # (N, D)
    xh2 = x_hat.reshape((-1, D)).astype(jnp.float32)         # (M, D)
    N, M = x2.shape[0], xh2.shape[0]

    # ---- hoist the key projection out of the grid loop (grid-invariant) ----
    k = xh2 @ params["wk"] + params["bk"]                    # (M, E) f32
    M_pad = _round_up(M, 128)                                # lane-dense keys
    if M_pad != M:
        k_pad = jnp.zeros((M_pad, E), jnp.float32).at[:M, :].set(k)
        key_bias = jnp.full((1, M_pad), -1e30, jnp.float32).at[:, :M].set(0.0)
    else:
        k_pad = k
        key_bias = None                                      # skip mask path entirely
    k_bf = k_pad.astype(jnp.bfloat16)

    # ---- query-row tiling: dtype-aware sublane rounding, >=2 grid steps ----
    sub = 16 if x2.dtype == jnp.bfloat16 else 8
    tq = min(tile_q, _round_up(N, 128))
    while tq >= 256 and _cdiv(N, tq) < 2:                    # keep both v7x TCs busy
        tq //= 2
    if N < tq:
        tq = _round_up(N, sub)                               # single small tile
    N_pad = _round_up(N, tq)
    x_pad = x2 if N_pad == N else jnp.zeros((N_pad, D), x2.dtype).at[:N, :].set(x2)

    # ---- fold 1/sqrt(E) into wq/bq; sqrt(E) back into q-half of wo; stack wo ----
    inv_scale = 1.0 / math.sqrt(E)
    wq_s = (params["wq"] * inv_scale).astype(jnp.bfloat16)
    bq_s = params["bq"] * inv_scale                          # f32 bias
    wo = params["wo"]
    wo_cat = jnp.concatenate([wo[:E, :] * math.sqrt(E), wo[E:, :]],
                             axis=0).astype(jnp.bfloat16)    # (2E, D)
    wv_b = params["wv"].astype(jnp.bfloat16)

    args = (x_pad, k_bf, key_bias, params["gamma"], params["beta"],
            wq_s, bq_s, wv_b, params["bv"], wo_cat, params["bo"])
    kwargs = dict(tile_q=tq, res=res, out_dtype=x2.dtype)
    try:
        out = jax.block_until_ready(
            _pallas_forward(*args, single_buffer=True, **kwargs))
    except Exception:
        # Fallback if single-buffered (Buffered(1)) invariant blocks are unsupported.
        out = jax.block_until_ready(
            _pallas_forward(*args, single_buffer=False, **kwargs))
    return out[:N, :].reshape((1, N, D))


def _reference(x, x_hat, params, res=False):
    """Pure-JAX f32 reference matching the PyTorch forward."""
    D = params["wq"].shape[0]
    x2 = x.reshape((-1, D)).astype(jnp.float32)
    xh = x_hat.reshape((-1, D)).astype(jnp.float32)
    mean = jnp.mean(x2, -1, keepdims=True)
    var = jnp.mean((x2 - mean) ** 2, -1, keepdims=True)
    xn = (x2 - mean) / jnp.sqrt(var + 1e-5) * params["gamma"] + params["beta"]
    q = xn @ params["wq"] + params["bq"]
    k = xh @ params["wk"] + params["bk"]
    qk = (q @ k.T) / math.sqrt(q.shape[-1])
    score = jax.nn.softmax(qk, axis=-1)
    outv = (score @ k) @ params["wv"] + params["bv"]
    o = jnp.concatenate([q, outv], axis=-1) @ params["wo"] + params["bo"]
    if res:
        return o.reshape((1, -1, D))
    return (o + xn).reshape((1, -1, D))


def init_params(key, input_dim, embed_dim):
    ks = jax.random.split(key, 8)

    def lin(kw, kb, fan_in, fan_out):
        bound = 1.0 / math.sqrt(fan_in)
        w = jax.random.uniform(kw, (fan_in, fan_out), jnp.float32, -bound, bound)
        b = jax.random.uniform(kb, (1, fan_out), jnp.float32, -bound, bound)
        return w, b

    wq, bq = lin(ks[0], ks[1], input_dim, embed_dim)
    wk, bk = lin(ks[2], ks[3], input_dim, embed_dim)
    wv, bv = lin(ks[4], ks[5], embed_dim, embed_dim)   # module requires input_dim == embed_dim
    wo, bo = lin(ks[6], ks[7], 2 * embed_dim, input_dim)
    return dict(wq=wq, bq=bq, wk=wk, bk=bk, wv=wv, bv=bv, wo=wo, bo=bo,
                gamma=jnp.ones((1, input_dim), jnp.float32),   # PyTorch LayerNorm init
                beta=jnp.zeros((1, input_dim), jnp.float32))


if __name__ == "__main__":
    input_dim = embed_dim = 128
    B, S, M = 2, 200, 100       # N = 400 (not a tile multiple), M = 100 (not lane-dense)

    key = jax.random.PRNGKey(0)
    kx, kxh, kp = jax.random.split(key, 3)
    x = jax.random.normal(kx, (B, S, input_dim), jnp.float32)
    x_hat = jax.random.normal(kxh, (1, M, input_dim), jnp.float32)
    params = init_params(kp, input_dim, embed_dim)

    # res=False path (out + normed-x residual)
    out = intervention_online(x, x_hat, params, res=False)
    ref = _reference(x, x_hat, params, res=False)
    assert out.shape == (1, B * S, input_dim)
    # bf16 MXU operands (f32 accumulation) + approx reciprocal vs. f32 reference -> loose tol
    assert jnp.allclose(out, ref, atol=5e-2, rtol=5e-2), \
        float(jnp.max(jnp.abs(out - ref)))

    # res=True path (no residual)
    out_r = intervention_online(x, x_hat, params, res=True)
    ref_r = _reference(x, x_hat, params, res=True)
    assert jnp.allclose(out_r, ref_r, atol=5e-2, rtol=5e-2), \
        float(jnp.max(jnp.abs(out_r - ref_r)))

    print("KERNEL_OK")
</pallas_src>

<mosaic_0001>
module attributes {stable_mosaic.version = 11 : i64} {
  func.func @_intervention_kernel(%arg0: i32, %arg1: memref<256x128xf32, #tpu.memory_space<vmem>>, %arg2: memref<128x128xbf16, #tpu.memory_space<vmem>>, %arg3: memref<1x128xf32, #tpu.memory_space<vmem>>, %arg4: memref<1x128xf32, #tpu.memory_space<vmem>>, %arg5: memref<1x128xf32, #tpu.memory_space<vmem>>, %arg6: memref<128x128xbf16, #tpu.memory_space<vmem>>, %arg7: memref<1x128xf32, #tpu.memory_space<vmem>>, %arg8: memref<128x128xbf16, #tpu.memory_space<vmem>>, %arg9: memref<1x128xf32, #tpu.memory_space<vmem>>, %arg10: memref<256x128xbf16, #tpu.memory_space<vmem>>, %arg11: memref<1x128xf32, #tpu.memory_space<vmem>>, %arg12: memref<256x128xf32, #tpu.memory_space<vmem>>) attributes {dimension_semantics = [#tpu.dimension_semantics<parallel>], iteration_bounds = array<i64: 2>, scalar_prefetch = 0 : i64, scratch_operands = 0 : i64, tpu.core_type = #tpu.core_type<tc>, window_params = [{transform_indices = @transform_0, window_bounds = array<i64: 256, 128>}, {pipeline_mode = #tpu.pipeline_mode<synchronous>, transform_indices = @transform_1, window_bounds = array<i64: 128, 128>}, {pipeline_mode = #tpu.pipeline_mode<synchronous>, transform_indices = @transform_2, window_bounds = array<i64: 1, 128>}, {pipeline_mode = #tpu.pipeline_mode<synchronous>, transform_indices = @transform_3, window_bounds = array<i64: 1, 128>}, {pipeline_mode = #tpu.pipeline_mode<synchronous>, transform_indices = @transform_4, window_bounds = array<i64: 1, 128>}, {pipeline_mode = #tpu.pipeline_mode<synchronous>, transform_indices = @transform_5, window_bounds = array<i64: 128, 128>}, {pipeline_mode = #tpu.pipeline_mode<synchronous>, transform_indices = @transform_6, window_bounds = array<i64: 1, 128>}, {pipeline_mode = #tpu.pipeline_mode<synchronous>, transform_indices = @transform_7, window_bounds = array<i64: 128, 128>}, {pipeline_mode = #tpu.pipeline_mode<synchronous>, transform_indices = @transform_8, window_bounds = array<i64: 1, 128>}, {pipeline_mode = #tpu.pipeline_mode<synchronous>, transform_indices = @transform_9, window_bounds = array<i64: 256, 128>}, {pipeline_mode = #tpu.pipeline_mode<synchronous>, transform_indices = @transform_10, window_bounds = array<i64: 1, 128>}, {transform_indices = @transform_11, window_bounds = array<i64: 256, 128>}]} {
    %c0 = arith.constant 0 : index
    %c0_0 = arith.constant 0 : index
    %0 = vector.load %arg1[%c0, %c0_0] : memref<256x128xf32, #tpu.memory_space<vmem>>, vector<256x128xf32>
    %cst = arith.constant dense<0.000000e+00> : vector<256xf32>
    %1 = vector.multi_reduction <add>, %0, %cst [1] : vector<256x128xf32> to vector<256xf32>
    %2 = vector.shape_cast %1 : vector<256xf32> to vector<256x1xf32>
    %cst_1 = arith.constant 1.280000e+02 : f32
    %3 = vector.broadcast %cst_1 : f32 to vector<256x1xf32>
    %4 = arith.divf %2, %3 : vector<256x1xf32>
    %5 = arith.mulf %0, %0 : vector<256x128xf32>
    %cst_2 = arith.constant dense<0.000000e+00> : vector<256xf32>
    %6 = vector.multi_reduction <add>, %5, %cst_2 [1] : vector<256x128xf32> to vector<256xf32>
    %7 = vector.shape_cast %6 : vector<256xf32> to vector<256x1xf32>
    %cst_3 = arith.constant 1.280000e+02 : f32
    %8 = vector.broadcast %cst_3 : f32 to vector<256x1xf32>
    %9 = arith.divf %7, %8 : vector<256x1xf32>
    %10 = arith.mulf %4, %4 : vector<256x1xf32>
    %11 = arith.subf %9, %10 : vector<256x1xf32>
    %cst_4 = arith.constant 0.000000e+00 : f32
    %12 = vector.broadcast %cst_4 : f32 to vector<256x1xf32>
    %13 = arith.maximumf %11, %12 : vector<256x1xf32>
    %14 = vector.broadcast %4 : vector<256x1xf32> to vector<256x128xf32>
    %15 = arith.subf %0, %14 : vector<256x128xf32>
    %cst_5 = arith.constant 9.99999974E-6 : f32
    %16 = vector.broadcast %cst_5 : f32 to vector<256x1xf32>
    %17 = arith.addf %13, %16 : vector<256x1xf32>
    %18 = math.rsqrt %17 : vector<256x1xf32>
    %19 = vector.broadcast %18 : vector<256x1xf32> to vector<256x128xf32>
    %20 = arith.mulf %15, %19 : vector<256x128xf32>
    %c0_6 = arith.constant 0 : index
    %c0_7 = arith.constant 0 : index
    %21 = vector.load %arg4[%c0_6, %c0_7] : memref<1x128xf32, #tpu.memory_space<vmem>>, vector<1x128xf32>
    %22 = vector.broadcast %21 : vector<1x128xf32> to vector<256x128xf32>
    %23 = arith.mulf %20, %22 : vector<256x128xf32>
    %c0_8 = arith.constant 0 : index
    %c0_9 = arith.constant 0 : index
    %24 = vector.load %arg5[%c0_8, %c0_9] : memref<1x128xf32, #tpu.memory_space<vmem>>, vector<1x128xf32>
    %25 = vector.broadcast %24 : vector<1x128xf32> to vector<256x128xf32>
    %26 = arith.addf %23, %25 : vector<256x128xf32>
    %27 = arith.truncf %26 : vector<256x128xf32> to vector<256x128xbf16>
    %c0_10 = arith.constant 0 : index
    %c0_11 = arith.constant 0 : index
    %28 = vector.load %arg6[%c0_10, %c0_11] : memref<128x128xbf16, #tpu.memory_space<vmem>>, vector<128x128xbf16>
    %cst_12 = arith.constant dense<0.000000e+00> : vector<256x128xf32>
    %29 = tpu.matmul %27, %28, %cst_12 {dimension_numbers = #tpu.dot_dimension_numbers<[1], [0], [0], [1], [0, 0, 1, 1], [], []>} : vector<256x128xbf16>, vector<128x128xbf16>, vector<256x128xf32> -> vector<256x128xf32>
    %c0_13 = arith.constant 0 : index
    %c0_14 = arith.constant 0 : index
    %30 = vector.load %arg7[%c0_13, %c0_14] : memref<1x128xf32, #tpu.memory_space<vmem>>, vector<1x128xf32>
    %31 = vector.broadcast %30 : vector<1x128xf32> to vector<256x128xf32>
    %32 = arith.addf %29, %31 : vector<256x128xf32>
    %33 = arith.truncf %32 : vector<256x128xf32> to vector<256x128xbf16>
    %c0_15 = arith.constant 0 : index
    %c0_16 = arith.constant 0 : index
    %34 = vector.load %arg2[%c0_15, %c0_16] : memref<128x128xbf16, #tpu.memory_space<vmem>>, vector<128x128xbf16>
    %cst_17 = arith.constant dense<0.000000e+00> : vector<256x128xf32>
    %35 = tpu.matmul %33, %34, %cst_17 {dimension_numbers = #tpu.dot_dimension_numbers<[1], [1], [0], [0], [0, 0, 1, 0], [], []>} : vector<256x128xbf16>, vector<128x128xbf16>, vector<256x128xf32> -> vector<256x128xf32>
    %c0_18 = arith.constant 0 : index
    %c0_19 = arith.constant 0 : index
    %36 = vector.load %arg3[%c0_18, %c0_19] : memref<1x128xf32, #tpu.memory_space<vmem>>, vector<1x128xf32>
    %37 = vector.broadcast %36 : vector<1x128xf32> to vector<256x128xf32>
    %38 = arith.addf %35, %37 : vector<256x128xf32>
    %cst_20 = arith.constant dense<0xFF800000> : vector<256xf32>
    %39 = vector.multi_reduction <maximumf>, %38, %cst_20 [1] : vector<256x128xf32> to vector<256xf32>
    %40 = vector.shape_cast %39 : vector<256xf32> to vector<256x1xf32>
    %41 = vector.broadcast %40 : vector<256x1xf32> to vector<256x128xf32>
    %42 = arith.subf %38, %41 : vector<256x128xf32>
    %43 = math.exp %42 : vector<256x128xf32>
    %cst_21 = arith.constant dense<0.000000e+00> : vector<256xf32>
    %44 = vector.multi_reduction <add>, %43, %cst_21 [1] : vector<256x128xf32> to vector<256xf32>
    %45 = vector.shape_cast %44 : vector<256xf32> to vector<256x1xf32>
    %46 = tpu.reciprocal %45 {approx = true} : vector<256x1xf32> -> vector<256x1xf32>
    %47 = arith.truncf %43 : vector<256x128xf32> to vector<256x128xbf16>
    %cst_22 = arith.constant dense<0.000000e+00> : vector<256x128xf32>
    %48 = tpu.matmul %47, %34, %cst_22 {dimension_numbers = #tpu.dot_dimension_numbers<[1], [0], [0], [1], [0, 0, 1, 1], [], []>} : vector<256x128xbf16>, vector<128x128xbf16>, vector<256x128xf32> -> vector<256x128xf32>
    %49 = vector.broadcast %46 : vector<256x1xf32> to vector<256x128xf32>
    %50 = arith.mulf %48, %49 : vector<256x128xf32>
    %51 = arith.truncf %50 : vector<256x128xf32> to vector<256x128xbf16>
    %c0_23 = arith.constant 0 : index
    %c0_24 = arith.constant 0 : index
    %52 = vector.load %arg8[%c0_23, %c0_24] : memref<128x128xbf16, #tpu.memory_space<vmem>>, vector<128x128xbf16>
    %cst_25 = arith.constant dense<0.000000e+00> : vector<256x128xf32>
    %53 = tpu.matmul %51, %52, %cst_25 {dimension_numbers = #tpu.dot_dimension_numbers<[1], [0], [0], [1], [0, 0, 1, 1], [], []>} : vector<256x128xbf16>, vector<128x128xbf16>, vector<256x128xf32> -> vector<256x128xf32>
    %c0_26 = arith.constant 0 : index
    %c0_27 = arith.constant 0 : index
    %54 = vector.load %arg9[%c0_26, %c0_27] : memref<1x128xf32, #tpu.memory_space<vmem>>, vector<1x128xf32>
    %55 = vector.broadcast %54 : vector<1x128xf32> to vector<256x128xf32>
    %56 = arith.addf %53, %55 : vector<256x128xf32>
    %57 = arith.truncf %56 : vector<256x128xf32> to vector<256x128xbf16>
    %58 = tpu.concatenate %33, %57 in 1 : vector<256x128xbf16>, vector<256x128xbf16> -> vector<256x256xbf16>
    %c0_28 = arith.constant 0 : index
    %c0_29 = arith.constant 0 : index
    %59 = vector.load %arg10[%c0_28, %c0_29] : memref<256x128xbf16, #tpu.memory_space<vmem>>, vector<256x128xbf16>
    %cst_30 = arith.constant dense<0.000000e+00> : vector<256x128xf32>
    %60 = tpu.matmul %58, %59, %cst_30 {dimension_numbers = #tpu.dot_dimension_numbers<[1], [0], [0], [1], [0, 0, 1, 1], [], []>} : vector<256x256xbf16>, vector<256x128xbf16>, vector<256x128xf32> -> vector<256x128xf32>
    %c0_31 = arith.constant 0 : index
    %c0_32 = arith.constant 0 : index
    %61 = vector.load %arg11[%c0_31, %c0_32] : memref<1x128xf32, #tpu.memory_space<vmem>>, vector<1x128xf32>
    %62 = vector.broadcast %61 : vector<1x128xf32> to vector<256x128xf32>
    %63 = arith.addf %60, %62 : vector<256x128xf32>
    %64 = arith.addf %63, %26 : vector<256x128xf32>
    %c0_33 = arith.constant 0 : index
    %c0_34 = arith.constant 0 : index
    %65 = vector.load %arg12[%c0_33, %c0_34] : memref<256x128xf32, #tpu.memory_space<vmem>>, vector<256x128xf32>
    tpu.vector_store %arg12[%c0_33, %c0_34], %64 {strides = array<i32>} : memref<256x128xf32, #tpu.memory_space<vmem>>, vector<256x128xf32>,
    return
  }
  func.func @transform_0(%arg0: i32) -> (i32, i32) {
    %c0_i32 = arith.constant 0 : i32
    %c0_i32_0 = arith.constant 0 : i32
    return %arg0, %c0_i32 : i32, i32
  }
  func.func @transform_1(%arg0: i32) -> (i32, i32) {
    %c0_i32 = arith.constant 0 : i32
    %c0_i32_0 = arith.constant 0 : i32
    %c0_i32_1 = arith.constant 0 : i32
    return %c0_i32, %c0_i32_0 : i32, i32
  }
  func.func @transform_2(%arg0: i32) -> (i32, i32) {
    %c0_i32 = arith.constant 0 : i32
    %c0_i32_0 = arith.constant 0 : i32
    %c0_i32_1 = arith.constant 0 : i32
    return %c0_i32, %c0_i32_0 : i32, i32
  }
  func.func @transform_3(%arg0: i32) -> (i32, i32) {
    %c0_i32 = arith.constant 0 : i32
    %c0_i32_0 = arith.constant 0 : i32
    %c0_i32_1 = arith.constant 0 : i32
    return %c0_i32, %c0_i32_0 : i32, i32
  }
  func.func @transform_4(%arg0: i32) -> (i32, i32) {
    %c0_i32 = arith.constant 0 : i32
    %c0_i32_0 = arith.constant 0 : i32
    %c0_i32_1 = arith.constant 0 : i32
    return %c0_i32, %c0_i32_0 : i32, i32
  }
  func.func @transform_5(%arg0: i32) -> (i32, i32) {
    %c0_i32 = arith.constant 0 : i32
    %c0_i32_0 = arith.constant 0 : i32
    %c0_i32_1 = arith.constant 0 : i32
    return %c0_i32, %c0_i32_0 : i32, i32
  }
  func.func @transform_6(%arg0: i32) -> (i32, i32) {
    %c0_i32 = arith.constant 0 : i32
    %c0_i32_0 = arith.constant 0 : i32
    %c0_i32_1 = arith.constant 0 : i32
    return %c0_i32, %c0_i32_0 : i32, i32
  }
  func.func @transform_7(%arg0: i32) -> (i32, i32) {
    %c0_i32 = arith.constant 0 : i32
    %c0_i32_0 = arith.constant 0 : i32
    %c0_i32_1 = arith.constant 0 : i32
    return %c0_i32, %c0_i32_0 : i32, i32
  }
  func.func @transform_8(%arg0: i32) -> (i32, i32) {
    %c0_i32 = arith.constant 0 : i32
    %c0_i32_0 = arith.constant 0 : i32
    %c0_i32_1 = arith.constant 0 : i32
    return %c0_i32, %c0_i32_0 : i32, i32
  }
  func.func @transform_9(%arg0: i32) -> (i32, i32) {
    %c0_i32 = arith.constant 0 : i32
    %c0_i32_0 = arith.constant 0 : i32
    %c0_i32_1 = arith.constant 0 : i32
    return %c0_i32, %c0_i32_0 : i32, i32
  }
  func.func @transform_10(%arg0: i32) -> (i32, i32) {
    %c0_i32 = arith.constant 0 : i32
    %c0_i32_0 = arith.constant 0 : i32
    %c0_i32_1 = arith.constant 0 : i32
    return %c0_i32, %c0_i32_0 : i32, i32
  }
  func.func @transform_11(%arg0: i32) -> (i32, i32) {
    %c0_i32 = arith.constant 0 : i32
    %c0_i32_0 = arith.constant 0 : i32
    return %arg0, %c0_i32 : i32, i32
  }
}

module attributes {stable_mosaic.version = 11 : i64} {
  func.func @_intervention_kernel(%arg0: i32, %arg1: memref<256x128xf32, #tpu.memory_space<vmem>>, %arg2: memref<128x128xbf16, #tpu.memory_space<vmem>>, %arg3: memref<1x128xf32, #tpu.memory_space<vmem>>, %arg4: memref<1x128xf32, #tpu.memory_space<vmem>>, %arg5: memref<1x128xf32, #tpu.memory_space<vmem>>, %arg6: memref<128x128xbf16, #tpu.memory_space<vmem>>, %arg7: memref<1x128xf32, #tpu.memory_space<vmem>>, %arg8: memref<128x128xbf16, #tpu.memory_space<vmem>>, %arg9: memref<1x128xf32, #tpu.memory_space<vmem>>, %arg10: memref<256x128xbf16, #tpu.memory_space<vmem>>, %arg11: memref<1x128xf32, #tpu.memory_space<vmem>>, %arg12: memref<256x128xf32, #tpu.memory_space<vmem>>) attributes {dimension_semantics = [#tpu.dimension_semantics<parallel>], iteration_bounds = array<i64: 2>, scalar_prefetch = 0 : i64, scratch_operands = 0 : i64, tpu.core_type = #tpu.core_type<tc>, window_params = [{transform_indices = @transform_0, window_bounds = array<i64: 256, 128>}, {pipeline_mode = #tpu.pipeline_mode<synchronous>, transform_indices = @transform_1, window_bounds = array<i64: 128, 128>}, {pipeline_mode = #tpu.pipeline_mode<synchronous>, transform_indices = @transform_2, window_bounds = array<i64: 1, 128>}, {pipeline_mode = #tpu.pipeline_mode<synchronous>, transform_indices = @transform_3, window_bounds = array<i64: 1, 128>}, {pipeline_mode = #tpu.pipeline_mode<synchronous>, transform_indices = @transform_4, window_bounds = array<i64: 1, 128>}, {pipeline_mode = #tpu.pipeline_mode<synchronous>, transform_indices = @transform_5, window_bounds = array<i64: 128, 128>}, {pipeline_mode = #tpu.pipeline_mode<synchronous>, transform_indices = @transform_6, window_bounds = array<i64: 1, 128>}, {pipeline_mode = #tpu.pipeline_mode<synchronous>, transform_indices = @transform_7, window_bounds = array<i64: 128, 128>}, {pipeline_mode = #tpu.pipeline_mode<synchronous>, transform_indices = @transform_8, window_bounds = array<i64: 1, 128>}, {pipeline_mode = #tpu.pipeline_mode<synchronous>, transform_indices = @transform_9, window_bounds = array<i64: 256, 128>}, {pipeline_mode = #tpu.pipeline_mode<synchronous>, transform_indices = @transform_10, window_bounds = array<i64: 1, 128>}, {transform_indices = @transform_11, window_bounds = array<i64: 256, 128>}]} {
    %c0 = arith.constant 0 : index
    %c0_0 = arith.constant 0 : index
    %0 = vector.load %arg1[%c0, %c0_0] : memref<256x128xf32, #tpu.memory_space<vmem>>, vector<256x128xf32>
    %cst = arith.constant dense<0.000000e+00> : vector<256xf32>
    %1 = vector.multi_reduction <add>, %0, %cst [1] : vector<256x128xf32> to vector<256xf32>
    %2 = vector.shape_cast %1 : vector<256xf32> to vector<256x1xf32>
    %cst_1 = arith.constant 1.280000e+02 : f32
    %3 = vector.broadcast %cst_1 : f32 to vector<256x1xf32>
    %4 = arith.divf %2, %3 : vector<256x1xf32>
    %5 = arith.mulf %0, %0 : vector<256x128xf32>
    %cst_2 = arith.constant dense<0.000000e+00> : vector<256xf32>
    %6 = vector.multi_reduction <add>, %5, %cst_2 [1] : vector<256x128xf32> to vector<256xf32>
    %7 = vector.shape_cast %6 : vector<256xf32> to vector<256x1xf32>
    %cst_3 = arith.constant 1.280000e+02 : f32
    %8 = vector.broadcast %cst_3 : f32 to vector<256x1xf32>
    %9 = arith.divf %7, %8 : vector<256x1xf32>
    %10 = arith.mulf %4, %4 : vector<256x1xf32>
    %11 = arith.subf %9, %10 : vector<256x1xf32>
    %cst_4 = arith.constant 0.000000e+00 : f32
    %12 = vector.broadcast %cst_4 : f32 to vector<256x1xf32>
    %13 = arith.maximumf %11, %12 : vector<256x1xf32>
    %14 = vector.broadcast %4 : vector<256x1xf32> to vector<256x128xf32>
    %15 = arith.subf %0, %14 : vector<256x128xf32>
    %cst_5 = arith.constant 9.99999974E-6 : f32
    %16 = vector.broadcast %cst_5 : f32 to vector<256x1xf32>
    %17 = arith.addf %13, %16 : vector<256x1xf32>
    %18 = math.rsqrt %17 : vector<256x1xf32>
    %19 = vector.broadcast %18 : vector<256x1xf32> to vector<256x128xf32>
    %20 = arith.mulf %15, %19 : vector<256x128xf32>
    %c0_6 = arith.constant 0 : index
    %c0_7 = arith.constant 0 : index
    %21 = vector.load %arg4[%c0_6, %c0_7] : memref<1x128xf32, #tpu.memory_space<vmem>>, vector<1x128xf32>
    %22 = vector.broadcast %21 : vector<1x128xf32> to vector<256x128xf32>
    %23 = arith.mulf %20, %22 : vector<256x128xf32>
    %c0_8 = arith.constant 0 : index
    %c0_9 = arith.constant 0 : index
    %24 = vector.load %arg5[%c0_8, %c0_9] : memref<1x128xf32, #tpu.memory_space<vmem>>, vector<1x128xf32>
    %25 = vector.broadcast %24 : vector<1x128xf32> to vector<256x128xf32>
    %26 = arith.addf %23, %25 : vector<256x128xf32>
    %27 = arith.truncf %26 : vector<256x128xf32> to vector<256x128xbf16>
    %c0_10 = arith.constant 0 : index
    %c0_11 = arith.constant 0 : index
    %28 = vector.load %arg6[%c0_10, %c0_11] : memref<128x128xbf16, #tpu.memory_space<vmem>>, vector<128x128xbf16>
    %cst_12 = arith.constant dense<0.000000e+00> : vector<256x128xf32>
    %29 = tpu.matmul %27, %28, %cst_12 {dimension_numbers = #tpu.dot_dimension_numbers<[1], [0], [0], [1], [0, 0, 1, 1], [], []>} : vector<256x128xbf16>, vector<128x128xbf16>, vector<256x128xf32> -> vector<256x128xf32>
    %c0_13 = arith.constant 0 : index
    %c0_14 = arith.constant 0 : index
    %30 = vector.load %arg7[%c0_13, %c0_14] : memref<1x128xf32, #tpu.memory_space<vmem>>, vector<1x128xf32>
    %31 = vector.broadcast %30 : vector<1x128xf32> to vector<256x128xf32>
    %32 = arith.addf %29, %31 : vector<256x128xf32>
    %33 = arith.truncf %32 : vector<256x128xf32> to vector<256x128xbf16>
    %c0_15 = arith.constant 0 : index
    %c0_16 = arith.constant 0 : index
    %34 = vector.load %arg2[%c0_15, %c0_16] : memref<128x128xbf16, #tpu.memory_space<vmem>>, vector<128x128xbf16>
    %cst_17 = arith.constant dense<0.000000e+00> : vector<256x128xf32>
    %35 = tpu.matmul %33, %34, %cst_17 {dimension_numbers = #tpu.dot_dimension_numbers<[1], [1], [0], [0], [0, 0, 1, 0], [], []>} : vector<256x128xbf16>, vector<128x128xbf16>, vector<256x128xf32> -> vector<256x128xf32>
    %c0_18 = arith.constant 0 : index
    %c0_19 = arith.constant 0 : index
    %36 = vector.load %arg3[%c0_18, %c0_19] : memref<1x128xf32, #tpu.memory_space<vmem>>, vector<1x128xf32>
    %37 = vector.broadcast %36 : vector<1x128xf32> to vector<256x128xf32>
    %38 = arith.addf %35, %37 : vector<256x128xf32>
    %cst_20 = arith.constant dense<0xFF800000> : vector<256xf32>
    %39 = vector.multi_reduction <maximumf>, %38, %cst_20 [1] : vector<256x128xf32> to vector<256xf32>
    %40 = vector.shape_cast %39 : vector<256xf32> to vector<256x1xf32>
    %41 = vector.broadcast %40 : vector<256x1xf32> to vector<256x128xf32>
    %42 = arith.subf %38, %41 : vector<256x128xf32>
    %43 = math.exp %42 : vector<256x128xf32>
    %cst_21 = arith.constant dense<0.000000e+00> : vector<256xf32>
    %44 = vector.multi_reduction <add>, %43, %cst_21 [1] : vector<256x128xf32> to vector<256xf32>
    %45 = vector.shape_cast %44 : vector<256xf32> to vector<256x1xf32>
    %46 = tpu.reciprocal %45 {approx = true} : vector<256x1xf32> -> vector<256x1xf32>
    %47 = arith.truncf %43 : vector<256x128xf32> to vector<256x128xbf16>
    %cst_22 = arith.constant dense<0.000000e+00> : vector<256x128xf32>
    %48 = tpu.matmul %47, %34, %cst_22 {dimension_numbers = #tpu.dot_dimension_numbers<[1], [0], [0], [1], [0, 0, 1, 1], [], []>} : vector<256x128xbf16>, vector<128x128xbf16>, vector<256x128xf32> -> vector<256x128xf32>
    %49 = vector.broadcast %46 : vector<256x1xf32> to vector<256x128xf32>
    %50 = arith.mulf %48, %49 : vector<256x128xf32>
    %51 = arith.truncf %50 : vector<256x128xf32> to vector<256x128xbf16>
    %c0_23 = arith.constant 0 : index
    %c0_24 = arith.constant 0 : index
    %52 = vector.load %arg8[%c0_23, %c0_24] : memref<128x128xbf16, #tpu.memory_space<vmem>>, vector<128x128xbf16>
    %cst_25 = arith.constant dense<0.000000e+00> : vector<256x128xf32>
    %53 = tpu.matmul %51, %52, %cst_25 {dimension_numbers = #tpu.dot_dimension_numbers<[1], [0], [0], [1], [0, 0, 1, 1], [], []>} : vector<256x128xbf16>, vector<128x128xbf16>, vector<256x128xf32> -> vector<256x128xf32>
    %c0_26 = arith.constant 0 : index
    %c0_27 = arith.constant 0 : index
    %54 = vector.load %arg9[%c0_26, %c0_27] : memref<1x128xf32, #tpu.memory_space<vmem>>, vector<1x128xf32>
    %55 = vector.broadcast %54 : vector<1x128xf32> to vector<256x128xf32>
    %56 = arith.addf %53, %55 : vector<256x128xf32>
    %57 = arith.truncf %56 : vector<256x128xf32> to vector<256x128xbf16>
    %58 = tpu.concatenate %33, %57 in 1 : vector<256x128xbf16>, vector<256x128xbf16> -> vector<256x256xbf16>
    %c0_28 = arith.constant 0 : index
    %c0_29 = arith.constant 0 : index
    %59 = vector.load %arg10[%c0_28, %c0_29] : memref<256x128xbf16, #tpu.memory_space<vmem>>, vector<256x128xbf16>
    %cst_30 = arith.constant dense<0.000000e+00> : vector<256x128xf32>
    %60 = tpu.matmul %58, %59, %cst_30 {dimension_numbers = #tpu.dot_dimension_numbers<[1], [0], [0], [1], [0, 0, 1, 1], [], []>} : vector<256x256xbf16>, vector<256x128xbf16>, vector<256x128xf32> -> vector<256x128xf32>
    %c0_31 = arith.constant 0 : index
    %c0_32 = arith.constant 0 : index
    %61 = vector.load %arg11[%c0_31, %c0_32] : memref<1x128xf32, #tpu.memory_space<vmem>>, vector<1x128xf32>
    %62 = vector.broadcast %61 : vector<1x128xf32> to vector<256x128xf32>
    %63 = arith.addf %60, %62 : vector<256x128xf32>
    %64 = arith.addf %63, %26 : vector<256x128xf32>
    %c0_33 = arith.constant 0 : index
    %c0_34 = arith.constant 0 : index
    %65 = vector.load %arg12[%c0_33, %c0_34] : memref<256x128xf32, #tpu.memory_space<vmem>>, vector<256x128xf32>
    tpu.vector_store %arg12[%c0_33, %c0_34], %64 {strides = array<i32>} : memref<256x128xf32, #tpu.memory_space<vmem>>, vector<256x128xf32>,
    return
  }
  func.func @transform_0(%arg0: i32) -> (i32, i32) {
    %c0_i32 = arith.constant 0 : i32
    %c0_i32_0 = arith.constant 0 : i32
    return %arg0, %c0_i32 : i32, i32
  }
  func.func @transform_1(%arg0: i32) -> (i32, i32) {
    %c0_i32 = arith.constant 0 : i32
    %c0_i32_0 = arith.constant 0 : i32
    %c0_i32_1 = arith.constant 0 : i32
    return %c0_i32, %c0_i32_0 : i32, i32
  }
  func.func @transform_2(%arg0: i32) -> (i32, i32) {
    %c0_i32 = arith.constant 0 : i32
    %c0_i32_0 = arith.constant 0 : i32
    %c0_i32_1 = arith.constant 0 : i32
    return %c0_i32, %c0_i32_0 : i32, i32
  }
  func.func @transform_3(%arg0: i32) -> (i32, i32) {
    %c0_i32 = arith.constant 0 : i32
    %c0_i32_0 = arith.constant 0 : i32
    %c0_i32_1 = arith.constant 0 : i32
    return %c0_i32, %c0_i32_0 : i32, i32
  }
  func.func @transform_4(%arg0: i32) -> (i32, i32) {
    %c0_i32 = arith.constant 0 : i32
    %c0_i32_0 = arith.constant 0 : i32
    %c0_i32_1 = arith.constant 0 : i32
    return %c0_i32, %c0_i32_0 : i32, i32
  }
  func.func @transform_5(%arg0: i32) -> (i32, i32) {
    %c0_i32 = arith.constant 0 : i32
    %c0_i32_0 = arith.constant 0 : i32
    %c0_i32_1 = arith.constant 0 : i32
    return %c0_i32, %c0_i32_0 : i32, i32
  }
  func.func @transform_6(%arg0: i32) -> (i32, i32) {
    %c0_i32 = arith.constant 0 : i32
    %c0_i32_0 = arith.constant 0 : i32
    %c0_i32_1 = arith.constant 0 : i32
    return %c0_i32, %c0_i32_0 : i32, i32
  }
  func.func @transform_7(%arg0: i32) -> (i32, i32) {
    %c0_i32 = arith.constant 0 : i32
    %c0_i32_0 = arith.constant 0 : i32
    %c0_i32_1 = arith.constant 0 : i32
    return %c0_i32, %c0_i32_0 : i32, i32
  }
  func.func @transform_8(%arg0: i32) -> (i32, i32) {
    %c0_i32 = arith.constant 0 : i32
    %c0_i32_0 = arith.constant 0 : i32
    %c0_i32_1 = arith.constant 0 : i32
    return %c0_i32, %c0_i32_0 : i32, i32
  }
  func.func @transform_9(%arg0: i32) -> (i32, i32) {
    %c0_i32 = arith.constant 0 : i32
    %c0_i32_0 = arith.constant 0 : i32
    %c0_i32_1 = arith.constant 0 : i32
    return %c0_i32, %c0_i32_0 : i32, i32
  }
  func.func @transform_10(%arg0: i32) -> (i32, i32) {
    %c0_i32 = arith.constant 0 : i32
    %c0_i32_0 = arith.constant 0 : i32
    %c0_i32_1 = arith.constant 0 : i32
    return %c0_i32, %c0_i32_0 : i32, i32
  }
  func.func @transform_11(%arg0: i32) -> (i32, i32) {
    %c0_i32 = arith.constant 0 : i32
    %c0_i32_0 = arith.constant 0 : i32
    return %arg0, %c0_i32 : i32, i32
  }
}

</mosaic_0001>

<llo_original>
// kernel: tpu_custom_call.1
$region0: #{tpu_custom_call.1}
  #allocation0 [shape = 'u32[]', space=smem, size = 0x4, offset = 0x4, fixed_abs, tag = 'smem constant byte address 0x4 - core index']
  #allocation1 [shape = 'u32[144,128]{1,0:T(1,128)}', space=vmem, size = 0x12000, scoped, tag = 'internal scratch']
  %s0 = inlined_call_operand.hbm [shape: f32[512,128], index: 0, kind: input, shape index: {}]
  %s1 = inlined_call_operand.hbm [shape: bf16[128,128], index: 1, kind: input, shape index: {}]
  %s2 = inlined_call_operand.vmem [shape: f32[1,128], index: 2, kind: input, shape index: {}]
  %s3 = inlined_call_operand.vmem [shape: f32[1,128], index: 3, kind: input, shape index: {}]
  %s4 = inlined_call_operand.vmem [shape: f32[1,128], index: 4, kind: input, shape index: {}]
  %s5 = inlined_call_operand.hbm [shape: bf16[128,128], index: 5, kind: input, shape index: {}]
  %s6 = inlined_call_operand.vmem [shape: f32[1,128], index: 6, kind: input, shape index: {}]
  %s7 = inlined_call_operand.hbm [shape: bf16[128,128], index: 7, kind: input, shape index: {}]
  %s8 = inlined_call_operand.vmem [shape: f32[1,128], index: 8, kind: input, shape index: {}]
  %s9 = inlined_call_operand.hbm [shape: bf16[256,128], index: 9, kind: input, shape index: {}]
  %s10 = inlined_call_operand.vmem [shape: f32[1,128], index: 10, kind: input, shape index: {}]
  %s11 = inlined_call_operand.hbm [shape: f32[512,128], index: 11, kind: output, shape index: {}]
  %s12 = sld [smem:[#allocation0]]
  $region97: #{tpu_custom_call.1} parent=0
    _
  %s14 = ssub.s32 1, %s12
  %s15 = scalar_select 0, %s14, %s12
  $region1: #{tpu_custom_call.1} parent=0
    #allocation2 [shape = 'u8[262144]{0}', space=vmem, size = 0x40000, scoped, tag = 'input window, operand 0']
    #allocation3 [shape = 's32[2]{0}', space=sflag, size = 0x8, scoped, tag = 'scoped memory for tpu_custom_call.1']
    #allocation4 [shape = 's32[2]{0}', space=sflag, size = 0x8, scoped, tag = 'scoped memory for tpu_custom_call.1']
    #allocation5 [shape = 'u8[32768]{0}', space=vmem, size = 0x8000, scoped, tag = 'input window, operand 1, single buffered']
    #allocation6 [shape = 's32[1]{0}', space=sflag, size = 0x4, scoped, tag = 'scoped memory for tpu_custom_call.1']
    #allocation7 [shape = 'u8[32768]{0}', space=vmem, size = 0x8000, scoped, tag = 'input window, operand 5, single buffered']
    #allocation8 [shape = 'u8[32768]{0}', space=vmem, size = 0x8000, scoped, tag = 'input window, operand 7, single buffered']
    #allocation9 [shape = 's32[1]{0}', space=sflag, size = 0x4, scoped, tag = 'scoped memory for tpu_custom_call.1']
    #allocation10 [shape = 'u8[65536]{0}', space=vmem, size = 0x10000, scoped, tag = 'input window, operand 9, single buffered']
    #allocation11 [shape = 'u8[262144]{0}', space=vmem, size = 0x40000, scoped, tag = 'output window, operand 0']
    %16 = vsyncpa [#allocation3], 0
    %s17 = scalar_lea.sflag [#allocation3], 1
    %18 = vsyncpa %s17, 0
    %19 = vsyncpa [#allocation6], 0
    %20 = vsyncpa [#allocation9], 0
    %21 = vsyncpa [#allocation4], 0
    %s22 = scalar_lea.sflag [#allocation4], 1
    %23 = vsyncpa %s22, 0
    loop: start=0, step=1, limit=4
    $region2: #{tpu_custom_call.1} parent=1 // loop_pre_header
      _
    $region3: #{tpu_custom_call.1} parent=1 // loop_header
      %s25 = sphi 0, %s29
      %p26 = scmp.ge.s32.totalorder %s25, 4
      %s35 = sphi 0, %s37
      %s38 = sphi 0, %s35
      %s39 = sphi 0, %s38
      %s55 = sphi 0, %s39
      %s59 = sphi 0, %s59
      %s61 = sphi 0, %s59
      %s62 = sphi 0, %s61
      %s76 = sphi 0, %s62
      %s80 = sphi 0, %s80
      %s82 = sphi 0, %s80
      %s83 = sphi 0, %s82
      %s97 = sphi 0, %s83
      %s101 = sphi 0, %s101
      %s103 = sphi 0, %s101
      %s104 = sphi 0, %s103
      %s118 = sphi 0, %s104
      %s122 = sphi 0, %s122
      %s124 = sphi 0, %s122
      %s125 = sphi 0, %s124
      %s139 = sphi 0, %s125
      %s143 = sphi 0, %s143
      %s145 = sphi 0, %s143
      %s146 = sphi 0, %s145
      %s160 = sphi 0, %s146
      %s164 = sphi 0, %s164
      %s166 = sphi 0, %s164
      %s167 = sphi 0, %s166
      %s181 = sphi 0, %s167
      %s185 = sphi 0, %s185
      %s187 = sphi 0, %s185
      %s188 = sphi 0, %s187
      %s202 = sphi 0, %s188
      %s206 = sphi 0, %s206
      %s208 = sphi 0, %s206
      %s209 = sphi 0, %s208
      %s223 = sphi 0, %s209
      %s227 = sphi 0, %s227
      %s229 = sphi 0, %s227
      %s230 = sphi 0, %s229
      %s244 = sphi 0, %s230
      %s248 = sphi 0, %s248
      %s250 = sphi 0, %s248
      %s251 = sphi 0, %s250
      %s265 = sphi 0, %s251
      %s271 = sphi 0, %s273
      %s274 = sphi 0, %s271
      %s275 = sphi 0, %s274
      %s291 = sphi 0, %s275
    $region4: #{tpu_custom_call.1} parent=1 // loop_header_branch
      %28 = sbr.rel (%p26) target = $region8
    $region5: #{tpu_custom_call.1} parent=1 // loop_body
      %s30 = ssub.s32 %s25, 1
      %s31 = ssub.s32 %s25, 2
      %s32 = sadd.s32 %s25, 1
      %s33 = ssub.s32 %s25, %s32
      %p34 = scmp.eq.s32.totalorder %s33, 0
      %s36 = sadd.s32 %s35, 1
      %s37 = scalar_select %p34, %s35, %s36
      %p40 = pneg %p34
      %p41 = scmp.eq.s32.totalorder %s25, 1
      %p42 = por %p40, %p41
      %p43 = scmp.ne.s32.totalorder %s35, %s38
      %p44 = scmp.eq.s32.totalorder %s25, 0
      %p45 = por %p43, %p44
      %p46 = scmp.ne.s32.totalorder %s35, %s38
      %p47 = scmp.eq.s32.totalorder %s30, 1
      %p48 = por %p46, %p47
      %p49 = scmp.ne.s32.totalorder %s38, %s39
      %p50 = scmp.eq.s32.totalorder %s30, 0
      %p51 = por %p49, %p50
      %p52 = scmp.ne.s32.totalorder %s38, %s39
      %p53 = scmp.eq.s32.totalorder %s31, 1
      %p54 = por %p52, %p53
      %p56 = scmp.ne.s32.totalorder %s39, %s55
      %p57 = scmp.eq.s32.totalorder %s31, 0
      %p58 = por %p56, %p57
      %s60 = sadd.s32 %s59, 1
      %p63 = scmp.eq.s32.totalorder %s25, 1
      %p64 = scmp.ne.s32.totalorder %s59, %s61
      %p65 = scmp.eq.s32.totalorder %s25, 0
      %p66 = por %p64, %p65
      %p67 = scmp.ne.s32.totalorder %s59, %s61
      %p68 = scmp.eq.s32.totalorder %s30, 1
      %p69 = por %p67, %p68
      %p70 = scmp.ne.s32.totalorder %s61, %s62
      %p71 = scmp.eq.s32.totalorder %s30, 0
      %p72 = por %p70, %p71
      %p73 = scmp.ne.s32.totalorder %s61, %s62
      %p74 = scmp.eq.s32.totalorder %s31, 1
      %p75 = por %p73, %p74
      %p77 = scmp.ne.s32.totalorder %s62, %s76
      %p78 = scmp.eq.s32.totalorder %s31, 0
      %p79 = por %p77, %p78
      %s81 = sadd.s32 %s80, 1
      %p84 = scmp.eq.s32.totalorder %s25, 1
      %p85 = scmp.ne.s32.totalorder %s80, %s82
      %p86 = scmp.eq.s32.totalorder %s25, 0
      %p87 = por %p85, %p86
      %p88 = scmp.ne.s32.totalorder %s80, %s82
      %p89 = scmp.eq.s32.totalorder %s30, 1
      %p90 = por %p88, %p89
      %p91 = scmp.ne.s32.totalorder %s82, %s83
      %p92 = scmp.eq.s32.totalorder %s30, 0
      %p93 = por %p91, %p92
      %p94 = scmp.ne.s32.totalorder %s82, %s83
      %p95 = scmp.eq.s32.totalorder %s31, 1
      %p96 = por %p94, %p95
      %p98 = scmp.ne.s32.totalorder %s83, %s97
      %p99 = scmp.eq.s32.totalorder %s31, 0
      %p100 = por %p98, %p99
      %s102 = sadd.s32 %s101, 1
      %p105 = scmp.eq.s32.totalorder %s25, 1
      %p106 = scmp.ne.s32.totalorder %s101, %s103
      %p107 = scmp.eq.s32.totalorder %s25, 0
      %p108 = por %p106, %p107
      %p109 = scmp.ne.s32.totalorder %s101, %s103
      %p110 = scmp.eq.s32.totalorder %s30, 1
      %p111 = por %p109, %p110
      %p112 = scmp.ne.s32.totalorder %s103, %s104
      %p113 = scmp.eq.s32.totalorder %s30, 0
      %p114 = por %p112, %p113
      %p115 = scmp.ne.s32.totalorder %s103, %s104
      %p116 = scmp.eq.s32.totalorder %s31, 1
      %p117 = por %p115, %p116
      %p119 = scmp.ne.s32.totalorder %s104, %s118
      %p120 = scmp.eq.s32.totalorder %s31, 0
      %p121 = por %p119, %p120
      %s123 = sadd.s32 %s122, 1
      %p126 = scmp.eq.s32.totalorder %s25, 1
      %p127 = scmp.ne.s32.totalorder %s122, %s124
      %p128 = scmp.eq.s32.totalorder %s25, 0
      %p129 = por %p127, %p128
      %p130 = scmp.ne.s32.totalorder %s122, %s124
      %p131 = scmp.eq.s32.totalorder %s30, 1
      %p132 = por %p130, %p131
      %p133 = scmp.ne.s32.totalorder %s124, %s125
      %p134 = scmp.eq.s32.totalorder %s30, 0
      %p135 = por %p133, %p134
      %p136 = scmp.ne.s32.totalorder %s124, %s125
      %p137 = scmp.eq.s32.totalorder %s31, 1
      %p138 = por %p136, %p137
      %p140 = scmp.ne.s32.totalorder %s125, %s139
      %p141 = scmp.eq.s32.totalorder %s31, 0
      %p142 = por %p140, %p141
      %s144 = sadd.s32 %s143, 1
      %p147 = scmp.eq.s32.totalorder %s25, 1
      %p148 = scmp.ne.s32.totalorder %s143, %s145
      %p149 = scmp.eq.s32.totalorder %s25, 0
      %p150 = por %p148, %p149
      %p151 = scmp.ne.s32.totalorder %s143, %s145
      %p152 = scmp.eq.s32.totalorder %s30, 1
      %p153 = por %p151, %p152
      %p154 = scmp.ne.s32.totalorder %s145, %s146
      %p155 = scmp.eq.s32.totalorder %s30, 0
      %p156 = por %p154, %p155
      %p157 = scmp.ne.s32.totalorder %s145, %s146
      %p158 = scmp.eq.s32.totalorder %s31, 1
      %p159 = por %p157, %p158
      %p161 = scmp.ne.s32.totalorder %s146, %s160
      %p162 = scmp.eq.s32.totalorder %s31, 0
      %p163 = por %p161, %p162
      %s165 = sadd.s32 %s164, 1
      %p168 = scmp.eq.s32.totalorder %s25, 1
      %p169 = scmp.ne.s32.totalorder %s164, %s166
      %p170 = scmp.eq.s32.totalorder %s25, 0
      %p171 = por %p169, %p170
      %p172 = scmp.ne.s32.totalorder %s164, %s166
      %p173 = scmp.eq.s32.totalorder %s30, 1
      %p174 = por %p172, %p173
      %p175 = scmp.ne.s32.totalorder %s166, %s167
      %p176 = scmp.eq.s32.totalorder %s30, 0
      %p177 = por %p175, %p176
      %p178 = scmp.ne.s32.totalorder %s166, %s167
      %p179 = scmp.eq.s32.totalorder %s31, 1
      %p180 = por %p178, %p179
      %p182 = scmp.ne.s32.totalorder %s167, %s181
      %p183 = scmp.eq.s32.totalorder %s31, 0
      %p184 = por %p182, %p183
      %s186 = sadd.s32 %s185, 1
      %p189 = scmp.eq.s32.totalorder %s25, 1
      %p190 = scmp.ne.s32.totalorder %s185, %s187
      %p191 = scmp.eq.s32.totalorder %s25, 0
      %p192 = por %p190, %p191
      %p193 = scmp.ne.s32.totalorder %s185, %s187
      %p194 = scmp.eq.s32.totalorder %s30, 1
      %p195 = por %p193, %p194
      %p196 = scmp.ne.s32.totalorder %s187, %s188
      %p197 = scmp.eq.s32.totalorder %s30, 0
      %p198 = por %p196, %p197
      %p199 = scmp.ne.s32.totalorder %s187, %s188
      %p200 = scmp.eq.s32.totalorder %s31, 1
      %p201 = por %p199, %p200
      %p203 = scmp.ne.s32.totalorder %s188, %s202
      %p204 = scmp.eq.s32.totalorder %s31, 0
      %p205 = por %p203, %p204
      %s207 = sadd.s32 %s206, 1
      %p210 = scmp.eq.s32.totalorder %s25, 1
      %p211 = scmp.ne.s32.totalorder %s206, %s208
      %p212 = scmp.eq.s32.totalorder %s25, 0
      %p213 = por %p211, %p212
      %p214 = scmp.ne.s32.totalorder %s206, %s208
      %p215 = scmp.eq.s32.totalorder %s30, 1
      %p216 = por %p214, %p215
      %p217 = scmp.ne.s32.totalorder %s208, %s209
      %p218 = scmp.eq.s32.totalorder %s30, 0
      %p219 = por %p217, %p218
      %p220 = scmp.ne.s32.totalorder %s208, %s209
      %p221 = scmp.eq.s32.totalorder %s31, 1
      %p222 = por %p220, %p221
      %p224 = scmp.ne.s32.totalorder %s209, %s223
      %p225 = scmp.eq.s32.totalorder %s31, 0
      %p226 = por %p224, %p225
      %s228 = sadd.s32 %s227, 1
      %p231 = scmp.eq.s32.totalorder %s25, 1
      %p232 = scmp.ne.s32.totalorder %s227, %s229
      %p233 = scmp.eq.s32.totalorder %s25, 0
      %p234 = por %p232, %p233
      %p235 = scmp.ne.s32.totalorder %s227, %s229
      %p236 = scmp.eq.s32.totalorder %s30, 1
      %p237 = por %p235, %p236
      %p238 = scmp.ne.s32.totalorder %s229, %s230
      %p239 = scmp.eq.s32.totalorder %s30, 0
      %p240 = por %p238, %p239
      %p241 = scmp.ne.s32.totalorder %s229, %s230
      %p242 = scmp.eq.s32.totalorder %s31, 1
      %p243 = por %p241, %p242
      %p245 = scmp.ne.s32.totalorder %s230, %s244
      %p246 = scmp.eq.s32.totalorder %s31, 0
      %p247 = por %p245, %p246
      %s249 = sadd.s32 %s248, 1
      %p252 = scmp.eq.s32.totalorder %s25, 1
      %p253 = scmp.ne.s32.totalorder %s248, %s250
      %p254 = scmp.eq.s32.totalorder %s25, 0
      %p255 = por %p253, %p254
      %p256 = scmp.ne.s32.totalorder %s248, %s250
      %p257 = scmp.eq.s32.totalorder %s30, 1
      %p258 = por %p256, %p257
      %p259 = scmp.ne.s32.totalorder %s250, %s251
      %p260 = scmp.eq.s32.totalorder %s30, 0
      %p261 = por %p259, %p260
      %p262 = scmp.ne.s32.totalorder %s250, %s251
      %p263 = scmp.eq.s32.totalorder %s31, 1
      %p264 = por %p262, %p263
      %p266 = scmp.ne.s32.totalorder %s251, %s265
      %p267 = scmp.eq.s32.totalorder %s31, 0
      %p268 = por %p266, %p267
      %s269 = ssub.s32 %s25, %s32
      %p270 = scmp.eq.s32.totalorder %s269, 0
      %s272 = sadd.s32 %s271, 1
      %s273 = scalar_select %p270, %s271, %s272
      %p276 = pneg %p270
      %p277 = scmp.eq.s32.totalorder %s25, 1
      %p278 = por %p276, %p277
      %p279 = scmp.ne.s32.totalorder %s271, %s274
      %p280 = scmp.eq.s32.totalorder %s25, 0
      %p281 = por %p279, %p280
      %p282 = scmp.ne.s32.totalorder %s271, %s274
      %p283 = scmp.eq.s32.totalorder %s30, 1
      %p284 = por %p282, %p283
      %p285 = scmp.ne.s32.totalorder %s274, %s275
      %p286 = scmp.eq.s32.totalorder %s30, 0
      %p287 = por %p285, %p286
      %p288 = scmp.ne.s32.totalorder %s274, %s275
      %p289 = scmp.eq.s32.totalorder %s31, 1
      %p290 = por %p288, %p289
      %p292 = scmp.ne.s32.totalorder %s275, %s291
      %p293 = scmp.eq.s32.totalorder %s31, 0
      %p294 = por %p292, %p293
      %p295 = scmp.le.s32.totalorder 1, %s25
      %p296 = scmp.lt.s32.totalorder %s25, 3
      %p297 = pnand %p295, %p296
      %p298 = pneg %p297
      // Predicated region
      $region9: #{tpu_custom_call.1} parent=5 // pred_check
        _
      $region10: #{tpu_custom_call.1} parent=5 // pred_check_branch
        %300 = sbr.rel (%p297) target = $region12
      $region11: #{tpu_custom_call.1} parent=5 // pred_region
        %s301 = ssub.s32 %s25, 1
        // Predicated region
        $region13: #{tpu_custom_call.1} parent=11 // pred_check
          %p302 = pneg %p72
        $region14: #{tpu_custom_call.1} parent=11 // pred_check_branch
          %304 = sbr.rel (%p302) target = $region16
        $region15: #{tpu_custom_call.1} parent=11 // pred_region
          %s306 = ssub.s32 1024, 1024
          %307 = vsyncadd [#allocation6], %s306
          %s308 = sshll.u32 [#allocation5], 4
          %s309 = int_to_ptr.vmem [resolvable:$true] %s308
          %314 = dma.hbm_to_vmem [thread:$0]  %s1, 1024, %s309, [#allocation6], 64, 64, 4
        $region16: #{tpu_custom_call.1} parent=11 // pred_fallthru
          _
        // Predicated region
        $region17: #{tpu_custom_call.1} parent=11 // pred_check
          %p315 = pneg %p93
        $region18: #{tpu_custom_call.1} parent=11 // pred_check_branch
          %317 = sbr.rel (%p315) target = $region20
        $region19: #{tpu_custom_call.1} parent=11 // pred_region
          _
        $region20: #{tpu_custom_call.1} parent=11 // pred_fallthru
          _
        // Predicated region
        $region21: #{tpu_custom_call.1} parent=11 // pred_check
          %p318 = pneg %p114
        $region22: #{tpu_custom_call.1} parent=11 // pred_check_branch
          %320 = sbr.rel (%p318) target = $region24
        $region23: #{tpu_custom_call.1} parent=11 // pred_region
          _
        $region24: #{tpu_custom_call.1} parent=11 // pred_fallthru
          _
        // Predicated region
        $region25: #{tpu_custom_call.1} parent=11 // pred_check
          %p321 = pneg %p135
        $region26: #{tpu_custom_call.1} parent=11 // pred_check_branch
          %323 = sbr.rel (%p321) target = $region28
        $region27: #{tpu_custom_call.1} parent=11 // pred_region
          _
        $region28: #{tpu_custom_call.1} parent=11 // pred_fallthru
          _
        // Predicated region
        $region29: #{tpu_custom_call.1} parent=11 // pred_check
          %p324 = pneg %p156
        $region30: #{tpu_custom_call.1} parent=11 // pred_check_branch
          %326 = sbr.rel (%p324) target = $region32
        $region31: #{tpu_custom_call.1} parent=11 // pred_region
          %s328 = ssub.s32 1024, 1024
          %329 = vsyncadd [#allocation6], %s328
          %s330 = sshll.u32 [#allocation7], 4
          %s331 = int_to_ptr.vmem [resolvable:$true] %s330
          %336 = dma.hbm_to_vmem [thread:$0]  %s5, 1024, %s331, [#allocation6], 64, 64, 4
        $region32: #{tpu_custom_call.1} parent=11 // pred_fallthru
          _
        // Predicated region
        $region33: #{tpu_custom_call.1} parent=11 // pred_check
          %p337 = pneg %p177
        $region34: #{tpu_custom_call.1} parent=11 // pred_check_branch
          %339 = sbr.rel (%p337) target = $region36
        $region35: #{tpu_custom_call.1} parent=11 // pred_region
          _
        $region36: #{tpu_custom_call.1} parent=11 // pred_fallthru
          _
        // Predicated region
        $region37: #{tpu_custom_call.1} parent=11 // pred_check
          %p340 = pneg %p198
        $region38: #{tpu_custom_call.1} parent=11 // pred_check_branch
          %342 = sbr.rel (%p340) target = $region40
        $region39: #{tpu_custom_call.1} parent=11 // pred_region
          %s344 = ssub.s32 1024, 1024
          %345 = vsyncadd [#allocation9], %s344
          %s346 = sshll.u32 [#allocation8], 4
          %s347 = int_to_ptr.vmem [resolvable:$true] %s346
          %352 = dma.hbm_to_vmem [thread:$0]  %s7, 1024, %s347, [#allocation9], 64, 64, 4
        $region40: #{tpu_custom_call.1} parent=11 // pred_fallthru
          _
        // Predicated region
        $region41: #{tpu_custom_call.1} parent=11 // pred_check
          %p353 = pneg %p219
        $region42: #{tpu_custom_call.1} parent=11 // pred_check_branch
          %355 = sbr.rel (%p353) target = $region44
        $region43: #{tpu_custom_call.1} parent=11 // pred_region
          _
        $region44: #{tpu_custom_call.1} parent=11 // pred_fallthru
          _
        // Predicated region
        $region45: #{tpu_custom_call.1} parent=11 // pred_check
          %p356 = pneg %p240
        $region46: #{tpu_custom_call.1} parent=11 // pred_check_branch
          %358 = sbr.rel (%p356) target = $region48
        $region47: #{tpu_custom_call.1} parent=11 // pred_region
          %s360 = ssub.s32 2048, 2048
          %361 = vsyncadd [#allocation9], %s360
          %s362 = sshll.u32 [#allocation10], 4
          %s363 = int_to_ptr.vmem [resolvable:$true] %s362
          %368 = dma.hbm_to_vmem [thread:$0]  %s9, 2048, %s363, [#allocation9], 64, 64, 4
        $region48: #{tpu_custom_call.1} parent=11 // pred_fallthru
          _
        // Predicated region
        $region49: #{tpu_custom_call.1} parent=11 // pred_check
          %p369 = pneg %p261
        $region50: #{tpu_custom_call.1} parent=11 // pred_check_branch
          %371 = sbr.rel (%p369) target = $region52
        $region51: #{tpu_custom_call.1} parent=11 // pred_region
          _
        $region52: #{tpu_custom_call.1} parent=11 // pred_fallthru
          _
      $region12: #{tpu_custom_call.1} parent=5 // pred_fallthru
        _
      %p372 = scmp.lt.s32.totalorder %s25, 2
      // Predicated region
      $region53: #{tpu_custom_call.1} parent=5 // pred_check
        %p373 = pneg %p372
      $region54: #{tpu_custom_call.1} parent=5 // pred_check_branch
        %375 = sbr.rel (%p373) target = $region56
      $region55: #{tpu_custom_call.1} parent=5 // pred_region
        // Predicated region
        $region57: #{tpu_custom_call.1} parent=55 // pred_check
          %p376 = pneg %p45
        $region58: #{tpu_custom_call.1} parent=55 // pred_check_branch
          %378 = sbr.rel (%p376) target = $region60
        $region59: #{tpu_custom_call.1} parent=55 // pred_region
          %s379 = sand.u32 %s35, 1
          %s380 = scalar_lea.sflag [#allocation3], %s379
          %s381 = sand.u32 %s35, 1
          %s382 = smul.addr %s381, 256
          %s383 = scalar_lea.vmem [#allocation2], %s382
          %s384 = smul.u32 32, %s25
          %s386 = ssub.s32 4096, 4096
          %387 = vsyncadd %s380, %s386
          %s388 = smul.addr %s384, 128
          %s389 = scalar_lea.hbm %s0, %s388
          %s390 = sshll.u32 %s383, 4
          %s391 = int_to_ptr.vmem [resolvable:$true] %s390
          %396 = dma.hbm_to_vmem [thread:$0]  %s389, 4096, %s391, %s380, 128, 128, 8
        $region60: #{tpu_custom_call.1} parent=55 // pred_fallthru
          _
      $region56: #{tpu_custom_call.1} parent=5 // pred_fallthru
        _
      %p397 = scmp.le.s32.totalorder 1, %s25
      %p398 = scmp.lt.s32.totalorder %s25, 3
      %p399 = pnand %p397, %p398
      %p400 = pneg %p399
      // Predicated region
      $region61: #{tpu_custom_call.1} parent=5 // pred_check
        _
      $region62: #{tpu_custom_call.1} parent=5 // pred_check_branch
        %402 = sbr.rel (%p399) target = $region64
      $region63: #{tpu_custom_call.1} parent=5 // pred_region
        %s403 = ssub.s32 %s25, 1
        %s404 = sand.u32 %s38, 1
        %s405 = scalar_lea.sflag [#allocation3], %s404
        %s406 = sand.u32 %s38, 1
        %s407 = smul.addr %s406, 256
        %s408 = scalar_lea.vmem [#allocation2], %s407
        // Predicated region
        $region65: #{tpu_custom_call.1} parent=63 // pred_check
          %p409 = pneg %p51
        $region66: #{tpu_custom_call.1} parent=63 // pred_check_branch
          %411 = sbr.rel (%p409) target = $region68
        $region67: #{tpu_custom_call.1} parent=63 // pred_region
          %412 = dma.done %s405, 4096
        $region68: #{tpu_custom_call.1} parent=63 // pred_fallthru
          _
        // Predicated region
        $region69: #{tpu_custom_call.1} parent=63 // pred_check
          %p413 = pneg %p72
        $region70: #{tpu_custom_call.1} parent=63 // pred_check_branch
          %415 = sbr.rel (%p413) target = $region72
        $region71: #{tpu_custom_call.1} parent=63 // pred_region
          %416 = dma.done [#allocation6], 1024
        $region72: #{tpu_custom_call.1} parent=63 // pred_fallthru
          _
        // Predicated region
        $region73: #{tpu_custom_call.1} parent=63 // pred_check
          %p417 = pneg %p156
        $region74: #{tpu_custom_call.1} parent=63 // pred_check_branch
          %419 = sbr.rel (%p417) target = $region76
        $region75: #{tpu_custom_call.1} parent=63 // pred_region
          %420 = dma.done [#allocation6], 1024
        $region76: #{tpu_custom_call.1} parent=63 // pred_fallthru
          _
        // Predicated region
        $region77: #{tpu_custom_call.1} parent=63 // pred_check
          %p421 = pneg %p198
        $region78: #{tpu_custom_call.1} parent=63 // pred_check_branch
          %423 = sbr.rel (%p421) target = $region80
        $region79: #{tpu_custom_call.1} parent=63 // pred_region
          %424 = dma.done [#allocation9], 1024
        $region80: #{tpu_custom_call.1} parent=63 // pred_fallthru
          _
        // Predicated region
        $region81: #{tpu_custom_call.1} parent=63 // pred_check
          %p425 = pneg %p240
        $region82: #{tpu_custom_call.1} parent=63 // pred_check_branch
          %427 = sbr.rel (%p425) target = $region84
        $region83: #{tpu_custom_call.1} parent=63 // pred_region
          %428 = dma.done [#allocation9], 2048
        $region84: #{tpu_custom_call.1} parent=63 // pred_fallthru
          _
        %s429 = sand.u32 %s38, 1
        %s430 = scalar_lea.sflag [#allocation3], %s429
        %s431 = sand.u32 %s38, 1
        %s432 = smul.addr %s431, 256
        %s433 = scalar_lea.vmem [#allocation2], %s432
        %p434 = pneg %p51
        %p435 = pneg %p48
        %p436 = pneg %p72
        %p437 = pneg %p69
        %p438 = pneg %p93
        %p439 = pneg %p90
        %p440 = pneg %p114
        %p441 = pneg %p111
        %p442 = pneg %p135
        %p443 = pneg %p132
        %p444 = pneg %p156
        %p445 = pneg %p153
        %p446 = pneg %p177
        %p447 = pneg %p174
        %p448 = pneg %p198
        %p449 = pneg %p195
        %p450 = pneg %p219
        %p451 = pneg %p216
        %p452 = pneg %p240
        %p453 = pneg %p237
        %p454 = pneg %p261
        %p455 = pneg %p258
        %p456 = pneg %p287
        %p457 = pneg %p284
        %s458 = sand.u32 %s274, 1
        %s459 = scalar_lea.sflag [#allocation4], %s458
        %s460 = sand.u32 %s274, 1
        %s461 = smul.addr %s460, 256
        %s462 = scalar_lea.vmem [#allocation11], %s461
        %s463 = smul.u32 32, %s30
        %s464 = smul.u32 32, %s30
        %v466 = vld [vmem:[%s408] sm:$0xff]
        %v467 = vld [vmem:[%s408 + $0x8] sm:$0xff]
        %v468 = vld [vmem:[%s408 + $0x10] sm:$0xff]
        %v469 = vld [vmem:[%s408 + $0x18] sm:$0xff]
        %v470 = vld [vmem:[%s408 + $0x20] sm:$0xff]
        %v471 = vld [vmem:[%s408 + $0x28] sm:$0xff]
        %v472 = vld [vmem:[%s408 + $0x30] sm:$0xff]
        %v473 = vld [vmem:[%s408 + $0x38] sm:$0xff]
        %v474 = vld [vmem:[%s408 + $0x40] sm:$0xff]
        %v475 = vld [vmem:[%s408 + $0x48] sm:$0xff]
        %v476 = vld [vmem:[%s408 + $0x50] sm:$0xff]
        %v477 = vld [vmem:[%s408 + $0x58] sm:$0xff]
        %v478 = vld [vmem:[%s408 + $0x60] sm:$0xff]
        %v479 = vld [vmem:[%s408 + $0x68] sm:$0xff]
        %v480 = vld [vmem:[%s408 + $0x70] sm:$0xff]
        %v481 = vld [vmem:[%s408 + $0x78] sm:$0xff]
        %v482 = vld [vmem:[%s408 + $0x80] sm:$0xff]
        %v483 = vld [vmem:[%s408 + $0x88] sm:$0xff]
        %v484 = vld [vmem:[%s408 + $0x90] sm:$0xff]
        %v485 = vld [vmem:[%s408 + $0x98] sm:$0xff]
        %v486 = vld [vmem:[%s408 + $0xa0] sm:$0xff]
        %v487 = vld [vmem:[%s408 + $0xa8] sm:$0xff]
        %v488 = vld [vmem:[%s408 + $0xb0] sm:$0xff]
        %v489 = vld [vmem:[%s408 + $0xb8] sm:$0xff]
        %v490 = vld [vmem:[%s408 + $0xc0] sm:$0xff]
        %v491 = vld [vmem:[%s408 + $0xc8] sm:$0xff]
        %v492 = vld [vmem:[%s408 + $0xd0] sm:$0xff]
        %v493 = vld [vmem:[%s408 + $0xd8] sm:$0xff]
        %v494 = vld [vmem:[%s408 + $0xe0] sm:$0xff]
        %v495 = vld [vmem:[%s408 + $0xe8] sm:$0xff]
        %v496 = vld [vmem:[%s408 + $0xf0] sm:$0xff]
        %v497 = vld [vmem:[%s408 + $0xf8] sm:$0xff]
        %498 = vadd.xlane.f32.xlu0 %v466
        %v499 = vpop.xlane.xlu0 %498
        %500 = vadd.xlane.f32.xlu0 %v467
        %v501 = vpop.xlane.xlu0 %500
        %502 = vadd.xlane.f32.xlu0 %v468
        %v503 = vpop.xlane.xlu0 %502
        %504 = vadd.xlane.f32.xlu0 %v469
        %v505 = vpop.xlane.xlu0 %504
        %506 = vadd.xlane.f32.xlu0 %v470
        %v507 = vpop.xlane.xlu0 %506
        %508 = vadd.xlane.f32.xlu0 %v471
        %v509 = vpop.xlane.xlu0 %508
        %510 = vadd.xlane.f32.xlu0 %v472
        %v511 = vpop.xlane.xlu0 %510
        %512 = vadd.xlane.f32.xlu0 %v473
        %v513 = vpop.xlane.xlu0 %512
        %514 = vadd.xlane.f32.xlu0 %v474
        %v515 = vpop.xlane.xlu0 %514
        %516 = vadd.xlane.f32.xlu0 %v475
        %v517 = vpop.xlane.xlu0 %516
        %518 = vadd.xlane.f32.xlu0 %v476
        %v519 = vpop.xlane.xlu0 %518
        %520 = vadd.xlane.f32.xlu0 %v477
        %v521 = vpop.xlane.xlu0 %520
        %522 = vadd.xlane.f32.xlu0 %v478
        %v523 = vpop.xlane.xlu0 %522
        %524 = vadd.xlane.f32.xlu0 %v479
        %v525 = vpop.xlane.xlu0 %524
        %526 = vadd.xlane.f32.xlu0 %v480
        %v527 = vpop.xlane.xlu0 %526
        %528 = vadd.xlane.f32.xlu0 %v481
        %v529 = vpop.xlane.xlu0 %528
        %530 = vadd.xlane.f32.xlu0 %v482
        %v531 = vpop.xlane.xlu0 %530
        %532 = vadd.xlane.f32.xlu0 %v483
        %v533 = vpop.xlane.xlu0 %532
        %534 = vadd.xlane.f32.xlu0 %v484
        %v535 = vpop.xlane.xlu0 %534
        %536 = vadd.xlane.f32.xlu0 %v485
        %v537 = vpop.xlane.xlu0 %536
        %538 = vadd.xlane.f32.xlu0 %v486
        %v539 = vpop.xlane.xlu0 %538
        %540 = vadd.xlane.f32.xlu0 %v487
        %v541 = vpop.xlane.xlu0 %540
        %542 = vadd.xlane.f32.xlu0 %v488
        %v543 = vpop.xlane.xlu0 %542
        %544 = vadd.xlane.f32.xlu0 %v489
        %v545 = vpop.xlane.xlu0 %544
        %546 = vadd.xlane.f32.xlu0 %v490
        %v547 = vpop.xlane.xlu0 %546
        %548 = vadd.xlane.f32.xlu0 %v491
        %v549 = vpop.xlane.xlu0 %548
        %550 = vadd.xlane.f32.xlu0 %v492
        %v551 = vpop.xlane.xlu0 %550
        %552 = vadd.xlane.f32.xlu0 %v493
        %v553 = vpop.xlane.xlu0 %552
        %554 = vadd.xlane.f32.xlu0 %v494
        %v555 = vpop.xlane.xlu0 %554
        %556 = vadd.xlane.f32.xlu0 %v495
        %v557 = vpop.xlane.xlu0 %556
        %558 = vadd.xlane.f32.xlu0 %v496
        %v559 = vpop.xlane.xlu0 %558
        %560 = vadd.xlane.f32.xlu0 %v497
        %v561 = vpop.xlane.xlu0 %560
        %v562 = vrcp.pop 128.0
        %v563 = vmul.f32 %v499, %v562
        %v564 = vmul.f32 %v501, %v562
        %v565 = vmul.f32 %v503, %v562
        %v566 = vmul.f32 %v505, %v562
        %v567 = vmul.f32 %v507, %v562
        %v568 = vmul.f32 %v509, %v562
        %v569 = vmul.f32 %v511, %v562
        %v570 = vmul.f32 %v513, %v562
        %v571 = vmul.f32 %v515, %v562
        %v572 = vmul.f32 %v517, %v562
        %v573 = vmul.f32 %v519, %v562
        %v574 = vmul.f32 %v521, %v562
        %v575 = vmul.f32 %v523, %v562
        %v576 = vmul.f32 %v525, %v562
        %v577 = vmul.f32 %v527, %v562
        %v578 = vmul.f32 %v529, %v562
        %v579 = vmul.f32 %v531, %v562
        %v580 = vmul.f32 %v533, %v562
        %v581 = vmul.f32 %v535, %v562
        %v582 = vmul.f32 %v537, %v562
        %v583 = vmul.f32 %v539, %v562
        %v584 = vmul.f32 %v541, %v562
        %v585 = vmul.f32 %v543, %v562
        %v586 = vmul.f32 %v545, %v562
        %v587 = vmul.f32 %v547, %v562
        %v588 = vmul.f32 %v549, %v562
        %v589 = vmul.f32 %v551, %v562
        %v590 = vmul.f32 %v553, %v562
        %v591 = vmul.f32 %v555, %v562
        %v592 = vmul.f32 %v557, %v562
        %v593 = vmul.f32 %v559, %v562
        %v594 = vmul.f32 %v561, %v562
        %v595 = vmul.f32 %v466, %v466
        %v596 = vmul.f32 %v467, %v467
        %v597 = vmul.f32 %v468, %v468
        %v598 = vmul.f32 %v469, %v469
        %v599 = vmul.f32 %v470, %v470
        %v600 = vmul.f32 %v471, %v471
        %v601 = vmul.f32 %v472, %v472
        %v602 = vmul.f32 %v473, %v473
        %v603 = vmul.f32 %v474, %v474
        %v604 = vmul.f32 %v475, %v475
        %v605 = vmul.f32 %v476, %v476
        %v606 = vmul.f32 %v477, %v477
        %v607 = vmul.f32 %v478, %v478
        %v608 = vmul.f32 %v479, %v479
        %v609 = vmul.f32 %v480, %v480
        %v610 = vmul.f32 %v481, %v481
        %v611 = vmul.f32 %v482, %v482
        %v612 = vmul.f32 %v483, %v483
        %v613 = vmul.f32 %v484, %v484
        %v614 = vmul.f32 %v485, %v485
        %v615 = vmul.f32 %v486, %v486
        %v616 = vmul.f32 %v487, %v487
        %v617 = vmul.f32 %v488, %v488
        %v618 = vmul.f32 %v489, %v489
        %v619 = vmul.f32 %v490, %v490
        %v620 = vmul.f32 %v491, %v491
        %v621 = vmul.f32 %v492, %v492
        %v622 = vmul.f32 %v493, %v493
        %v623 = vmul.f32 %v494, %v494
        %v624 = vmul.f32 %v495, %v495
        %v625 = vmul.f32 %v496, %v496
        %v626 = vmul.f32 %v497, %v497
        %627 = vadd.xlane.f32.xlu0 %v595
        %v628 = vpop.xlane.xlu0 %627
        %629 = vadd.xlane.f32.xlu0 %v596
        %v630 = vpop.xlane.xlu0 %629
        %631 = vadd.xlane.f32.xlu0 %v597
        %v632 = vpop.xlane.xlu0 %631
        %633 = vadd.xlane.f32.xlu0 %v598
        %v634 = vpop.xlane.xlu0 %633
        %635 = vadd.xlane.f32.xlu0 %v599
        %v636 = vpop.xlane.xlu0 %635
        %637 = vadd.xlane.f32.xlu0 %v600
        %v638 = vpop.xlane.xlu0 %637
        %639 = vadd.xlane.f32.xlu0 %v601
        %v640 = vpop.xlane.xlu0 %639
        %641 = vadd.xlane.f32.xlu0 %v602
        %v642 = vpop.xlane.xlu0 %641
        %643 = vadd.xlane.f32.xlu0 %v603
        %v644 = vpop.xlane.xlu0 %643
        %645 = vadd.xlane.f32.xlu0 %v604
        %v646 = vpop.xlane.xlu0 %645
        %647 = vadd.xlane.f32.xlu0 %v605
        %v648 = vpop.xlane.xlu0 %647
        %649 = vadd.xlane.f32.xlu0 %v606
        %v650 = vpop.xlane.xlu0 %649
        %651 = vadd.xlane.f32.xlu0 %v607
        %v652 = vpop.xlane.xlu0 %651
        %653 = vadd.xlane.f32.xlu0 %v608
        %v654 = vpop.xlane.xlu0 %653
        %655 = vadd.xlane.f32.xlu0 %v609
        %v656 = vpop.xlane.xlu0 %655
        %657 = vadd.xlane.f32.xlu0 %v610
        %v658 = vpop.xlane.xlu0 %657
        %659 = vadd.xlane.f32.xlu0 %v611
        %v660 = vpop.xlane.xlu0 %659
        %661 = vadd.xlane.f32.xlu0 %v612
        %v662 = vpop.xlane.xlu0 %661
        %663 = vadd.xlane.f32.xlu0 %v613
        %v664 = vpop.xlane.xlu0 %663
        %665 = vadd.xlane.f32.xlu0 %v614
        %v666 = vpop.xlane.xlu0 %665
        %667 = vadd.xlane.f32.xlu0 %v615
        %v668 = vpop.xlane.xlu0 %667
        %669 = vadd.xlane.f32.xlu0 %v616
        %v670 = vpop.xlane.xlu0 %669
        %671 = vadd.xlane.f32.xlu0 %v617
        %v672 = vpop.xlane.xlu0 %671
        %673 = vadd.xlane.f32.xlu0 %v618
        %v674 = vpop.xlane.xlu0 %673
        %675 = vadd.xlane.f32.xlu0 %v619
        %v676 = vpop.xlane.xlu0 %675
        %677 = vadd.xlane.f32.xlu0 %v620
        %v678 = vpop.xlane.xlu0 %677
        %679 = vadd.xlane.f32.xlu0 %v621
        %v680 = vpop.xlane.xlu0 %679
        %681 = vadd.xlane.f32.xlu0 %v622
        %v682 = vpop.xlane.xlu0 %681
        %683 = vadd.xlane.f32.xlu0 %v623
        %v684 = vpop.xlane.xlu0 %683
        %685 = vadd.xlane.f32.xlu0 %v624
        %v686 = vpop.xlane.xlu0 %685
        %687 = vadd.xlane.f32.xlu0 %v625
        %v688 = vpop.xlane.xlu0 %687
        %689 = vadd.xlane.f32.xlu0 %v626
        %v690 = vpop.xlane.xlu0 %689
        %v691 = vmul.f32 %v628, %v562
        %v692 = vmul.f32 %v630, %v562
        %v693 = vmul.f32 %v632, %v562
        %v694 = vmul.f32 %v634, %v562
        %v695 = vmul.f32 %v636, %v562
        %v696 = vmul.f32 %v638, %v562
        %v697 = vmul.f32 %v640, %v562
        %v698 = vmul.f32 %v642, %v562
        %v699 = vmul.f32 %v644, %v562
        %v700 = vmul.f32 %v646, %v562
        %v701 = vmul.f32 %v648, %v562
        %v702 = vmul.f32 %v650, %v562
        %v703 = vmul.f32 %v652, %v562
        %v704 = vmul.f32 %v654, %v562
        %v705 = vmul.f32 %v656, %v562
        %v706 = vmul.f32 %v658, %v562
        %v707 = vmul.f32 %v660, %v562
        %v708 = vmul.f32 %v662, %v562
        %v709 = vmul.f32 %v664, %v562
        %v710 = vmul.f32 %v666, %v562
        %v711 = vmul.f32 %v668, %v562
        %v712 = vmul.f32 %v670, %v562
        %v713 = vmul.f32 %v672, %v562
        %v714 = vmul.f32 %v674, %v562
        %v715 = vmul.f32 %v676, %v562
        %v716 = vmul.f32 %v678, %v562
        %v717 = vmul.f32 %v680, %v562
        %v718 = vmul.f32 %v682, %v562
        %v719 = vmul.f32 %v684, %v562
        %v720 = vmul.f32 %v686, %v562
        %v721 = vmul.f32 %v688, %v562
        %v722 = vmul.f32 %v690, %v562
        %v723 = vmul.f32 %v563, %v563
        %v724 = vmul.f32 %v564, %v564
        %v725 = vmul.f32 %v565, %v565
        %v726 = vmul.f32 %v566, %v566
        %v727 = vmul.f32 %v567, %v567
        %v728 = vmul.f32 %v568, %v568
        %v729 = vmul.f32 %v569, %v569
        %v730 = vmul.f32 %v570, %v570
        %v731 = vmul.f32 %v571, %v571
        %v732 = vmul.f32 %v572, %v572
        %v733 = vmul.f32 %v573, %v573
        %v734 = vmul.f32 %v574, %v574
        %v735 = vmul.f32 %v575, %v575
        %v736 = vmul.f32 %v576, %v576
        %v737 = vmul.f32 %v577, %v577
        %v738 = vmul.f32 %v578, %v578
        %v739 = vmul.f32 %v579, %v579
        %v740 = vmul.f32 %v580, %v580
        %v741 = vmul.f32 %v581, %v581
        %v742 = vmul.f32 %v582, %v582
        %v743 = vmul.f32 %v583, %v583
        %v744 = vmul.f32 %v584, %v584
        %v745 = vmul.f32 %v585, %v585
        %v746 = vmul.f32 %v586, %v586
        %v747 = vmul.f32 %v587, %v587
        %v748 = vmul.f32 %v588, %v588
        %v749 = vmul.f32 %v589, %v589
        %v750 = vmul.f32 %v590, %v590
        %v751 = vmul.f32 %v591, %v591
        %v752 = vmul.f32 %v592, %v592
        %v753 = vmul.f32 %v593, %v593
        %v754 = vmul.f32 %v594, %v594
        %v755 = vsub.f32 %v691, %v723
        %v756 = vsub.f32 %v692, %v724
        %v757 = vsub.f32 %v693, %v725
        %v758 = vsub.f32 %v694, %v726
        %v759 = vsub.f32 %v695, %v727
        %v760 = vsub.f32 %v696, %v728
        %v761 = vsub.f32 %v697, %v729
        %v762 = vsub.f32 %v698, %v730
        %v763 = vsub.f32 %v699, %v731
        %v764 = vsub.f32 %v700, %v732
        %v765 = vsub.f32 %v701, %v733
        %v766 = vsub.f32 %v702, %v734
        %v767 = vsub.f32 %v703, %v735
        %v768 = vsub.f32 %v704, %v736
        %v769 = vsub.f32 %v705, %v737
        %v770 = vsub.f32 %v706, %v738
        %v771 = vsub.f32 %v707, %v739
        %v772 = vsub.f32 %v708, %v740
        %v773 = vsub.f32 %v709, %v741
        %v774 = vsub.f32 %v710, %v742
        %v775 = vsub.f32 %v711, %v743
        %v776 = vsub.f32 %v712, %v744
        %v777 = vsub.f32 %v713, %v745
        %v778 = vsub.f32 %v714, %v746
        %v779 = vsub.f32 %v715, %v747
        %v780 = vsub.f32 %v716, %v748
        %v781 = vsub.f32 %v717, %v749
        %v782 = vsub.f32 %v718, %v750
        %v783 = vsub.f32 %v719, %v751
        %v784 = vsub.f32 %v720, %v752
        %v785 = vsub.f32 %v721, %v753
        %v786 = vsub.f32 %v722, %v754
        %v787 = vmax.f32 %v755, 0.0
        %v788 = vmax.f32 %v756, 0.0
        %v789 = vmax.f32 %v757, 0.0
        %v790 = vmax.f32 %v758, 0.0
        %v791 = vmax.f32 %v759, 0.0
        %v792 = vmax.f32 %v760, 0.0
        %v793 = vmax.f32 %v761, 0.0
        %v794 = vmax.f32 %v762, 0.0
        %v795 = vmax.f32 %v763, 0.0
        %v796 = vmax.f32 %v764, 0.0
        %v797 = vmax.f32 %v765, 0.0
        %v798 = vmax.f32 %v766, 0.0
        %v799 = vmax.f32 %v767, 0.0
        %v800 = vmax.f32 %v768, 0.0
        %v801 = vmax.f32 %v769, 0.0
        %v802 = vmax.f32 %v770, 0.0
        %v803 = vmax.f32 %v771, 0.0
        %v804 = vmax.f32 %v772, 0.0
        %v805 = vmax.f32 %v773, 0.0
        %v806 = vmax.f32 %v774, 0.0
        %v807 = vmax.f32 %v775, 0.0
        %v808 = vmax.f32 %v776, 0.0
        %v809 = vmax.f32 %v777, 0.0
        %v810 = vmax.f32 %v778, 0.0
        %v811 = vmax.f32 %v779, 0.0
        %v812 = vmax.f32 %v780, 0.0
        %v813 = vmax.f32 %v781, 0.0
        %v814 = vmax.f32 %v782, 0.0
        %v815 = vmax.f32 %v783, 0.0
        %v816 = vmax.f32 %v784, 0.0
        %v817 = vmax.f32 %v785, 0.0
        %v818 = vmax.f32 %v786, 0.0
        %v819 = vsub.f32 %v466, %v563
        %v820 = vsub.f32 %v467, %v564
        %v821 = vsub.f32 %v468, %v565
        %v822 = vsub.f32 %v469, %v566
        %v823 = vsub.f32 %v470, %v567
        %v824 = vsub.f32 %v471, %v568
        %v825 = vsub.f32 %v472, %v569
        %v826 = vsub.f32 %v473, %v570
        %v827 = vsub.f32 %v474, %v571
        %v828 = vsub.f32 %v475, %v572
        %v829 = vsub.f32 %v476, %v573
        %v830 = vsub.f32 %v477, %v574
        %v831 = vsub.f32 %v478, %v575
        %v832 = vsub.f32 %v479, %v576
        %v833 = vsub.f32 %v480, %v577
        %v834 = vsub.f32 %v481, %v578
        %v835 = vsub.f32 %v482, %v579
        %v836 = vsub.f32 %v483, %v580
        %v837 = vsub.f32 %v484, %v581
        %v838 = vsub.f32 %v485, %v582
        %v839 = vsub.f32 %v486, %v583
        %v840 = vsub.f32 %v487, %v584
        %v841 = vsub.f32 %v488, %v585
        %v842 = vsub.f32 %v489, %v586
        %v843 = vsub.f32 %v490, %v587
        %v844 = vsub.f32 %v491, %v588
        %v845 = vsub.f32 %v492, %v589
        %v846 = vsub.f32 %v493, %v590
        %v847 = vsub.f32 %v494, %v591
        %v848 = vsub.f32 %v495, %v592
        %v849 = vsub.f32 %v496, %v593
        %v850 = vsub.f32 %v497, %v594
        %v851 = vadd.f32 %v787, 1e-05
        %v852 = vadd.f32 %v788, 1e-05
        %v853 = vadd.f32 %v789, 1e-05
        %v854 = vadd.f32 %v790, 1e-05
        %v855 = vadd.f32 %v791, 1e-05
        %v856 = vadd.f32 %v792, 1e-05
        %v857 = vadd.f32 %v793, 1e-05
        %v858 = vadd.f32 %v794, 1e-05
        %v859 = vadd.f32 %v795, 1e-05
        %v860 = vadd.f32 %v796, 1e-05
        %v861 = vadd.f32 %v797, 1e-05
        %v862 = vadd.f32 %v798, 1e-05
        %v863 = vadd.f32 %v799, 1e-05
        %v864 = vadd.f32 %v800, 1e-05
        %v865 = vadd.f32 %v801, 1e-05
        %v866 = vadd.f32 %v802, 1e-05
        %v867 = vadd.f32 %v803, 1e-05
        %v868 = vadd.f32 %v804, 1e-05
        %v869 = vadd.f32 %v805, 1e-05
        %v870 = vadd.f32 %v806, 1e-05
        %v871 = vadd.f32 %v807, 1e-05
        %v872 = vadd.f32 %v808, 1e-05
        %v873 = vadd.f32 %v809, 1e-05
        %v874 = vadd.f32 %v810, 1e-05
        %v875 = vadd.f32 %v811, 1e-05
        %v876 = vadd.f32 %v812, 1e-05
        %v877 = vadd.f32 %v813, 1e-05
        %v878 = vadd.f32 %v814, 1e-05
        %v879 = vadd.f32 %v815, 1e-05
        %v880 = vadd.f32 %v816, 1e-05
        %v881 = vadd.f32 %v817, 1e-05
        %v882 = vadd.f32 %v818, 1e-05
        %v883 = vrsqrt.pop %v851
        %v884 = vrsqrt.pop %v852
        %v885 = vrsqrt.pop %v853
        %v886 = vrsqrt.pop %v854
        %v887 = vrsqrt.pop %v855
        %v888 = vrsqrt.pop %v856
        %v889 = vrsqrt.pop %v857
        %v890 = vrsqrt.pop %v858
        %v891 = vrsqrt.pop %v859
        %v892 = vrsqrt.pop %v860
        %v893 = vrsqrt.pop %v861
        %v894 = vrsqrt.pop %v862
        %v895 = vrsqrt.pop %v863
        %v896 = vrsqrt.pop %v864
        %v897 = vrsqrt.pop %v865
        %v898 = vrsqrt.pop %v866
        %v899 = vrsqrt.pop %v867
        %v900 = vrsqrt.pop %v868
        %v901 = vrsqrt.pop %v869
        %v902 = vrsqrt.pop %v870
        %v903 = vrsqrt.pop %v871
        %v904 = vrsqrt.pop %v872
        %v905 = vrsqrt.pop %v873
        %v906 = vrsqrt.pop %v874
        %v907 = vrsqrt.pop %v875
        %v908 = vrsqrt.pop %v876
        %v909 = vrsqrt.pop %v877
        %v910 = vrsqrt.pop %v878
        %v911 = vrsqrt.pop %v879
        %v912 = vrsqrt.pop %v880
        %v913 = vrsqrt.pop %v881
        %v914 = vrsqrt.pop %v882
        %v915 = vmul.f32 %v819, %v883
        %v916 = vmul.f32 %v820, %v884
        %v917 = vmul.f32 %v821, %v885
        %v918 = vmul.f32 %v822, %v886
        %v919 = vmul.f32 %v823, %v887
        %v920 = vmul.f32 %v824, %v888
        %v921 = vmul.f32 %v825, %v889
        %v922 = vmul.f32 %v826, %v890
        %v923 = vmul.f32 %v827, %v891
        %v924 = vmul.f32 %v828, %v892
        %v925 = vmul.f32 %v829, %v893
        %v926 = vmul.f32 %v830, %v894
        %v927 = vmul.f32 %v831, %v895
        %v928 = vmul.f32 %v832, %v896
        %v929 = vmul.f32 %v833, %v897
        %v930 = vmul.f32 %v834, %v898
        %v931 = vmul.f32 %v835, %v899
        %v932 = vmul.f32 %v836, %v900
        %v933 = vmul.f32 %v837, %v901
        %v934 = vmul.f32 %v838, %v902
        %v935 = vmul.f32 %v839, %v903
        %v936 = vmul.f32 %v840, %v904
        %v937 = vmul.f32 %v841, %v905
        %v938 = vmul.f32 %v842, %v906
        %v939 = vmul.f32 %v843, %v907
        %v940 = vmul.f32 %v844, %v908
        %v941 = vmul.f32 %v845, %v909
        %v942 = vmul.f32 %v846, %v910
        %v943 = vmul.f32 %v847, %v911
        %v944 = vmul.f32 %v848, %v912
        %v945 = vmul.f32 %v849, %v913
        %v946 = vmul.f32 %v850, %v914
        %v947 = vld [vmem:[%s3] sm:$0x1]
        %v949 = vlaneseq
        %v950 = vshrl.u32 %v949, 7
        %v951 = vsub.s32 0, %v950
        %v952 = vrot.slane %v947, %v951
        %v954 = vmul.f32 %v915, %v952
        %v955 = vmul.f32 %v916, %v952
        %v956 = vmul.f32 %v917, %v952
        %v957 = vmul.f32 %v918, %v952
        %v958 = vmul.f32 %v919, %v952
        %v959 = vmul.f32 %v920, %v952
        %v960 = vmul.f32 %v921, %v952
        %v961 = vmul.f32 %v922, %v952
        %v962 = vmul.f32 %v923, %v952
        %v963 = vmul.f32 %v924, %v952
        %v964 = vmul.f32 %v925, %v952
        %v965 = vmul.f32 %v926, %v952
        %v966 = vmul.f32 %v927, %v952
        %v967 = vmul.f32 %v928, %v952
        %v968 = vmul.f32 %v929, %v952
        %v969 = vmul.f32 %v930, %v952
        %v970 = vmul.f32 %v931, %v952
        %v971 = vmul.f32 %v932, %v952
        %v972 = vmul.f32 %v933, %v952
        %v973 = vmul.f32 %v934, %v952
        %v974 = vmul.f32 %v935, %v952
        %v975 = vmul.f32 %v936, %v952
        %v976 = vmul.f32 %v937, %v952
        %v977 = vmul.f32 %v938, %v952
        %v978 = vmul.f32 %v939, %v952
        %v979 = vmul.f32 %v940, %v952
        %v980 = vmul.f32 %v941, %v952
        %v981 = vmul.f32 %v942, %v952
        %v982 = vmul.f32 %v943, %v952
        %v983 = vmul.f32 %v944, %v952
        %v984 = vmul.f32 %v945, %v952
        %v985 = vmul.f32 %v946, %v952
        %v986 = vld [vmem:[%s4] sm:$0x1]
        %v988 = vlaneseq
        %v989 = vshrl.u32 %v988, 7
        %v990 = vsub.s32 0, %v989
        %v991 = vrot.slane %v986, %v990
        %v993 = vadd.f32 %v954, %v991
        %v994 = vadd.f32 %v955, %v991
        %v995 = vadd.f32 %v956, %v991
        %v996 = vadd.f32 %v957, %v991
        %v997 = vadd.f32 %v958, %v991
        %v998 = vadd.f32 %v959, %v991
        %v999 = vadd.f32 %v960, %v991
        %v1000 = vadd.f32 %v961, %v991
        %v1001 = vadd.f32 %v962, %v991
        %v1002 = vadd.f32 %v963, %v991
        %v1003 = vadd.f32 %v964, %v991
        %v1004 = vadd.f32 %v965, %v991
        %v1005 = vadd.f32 %v966, %v991
        %v1006 = vadd.f32 %v967, %v991
        %v1007 = vadd.f32 %v968, %v991
        %v1008 = vadd.f32 %v969, %v991
        %v1009 = vadd.f32 %v970, %v991
        %v1010 = vadd.f32 %v971, %v991
        %v1011 = vadd.f32 %v972, %v991
        %v1012 = vadd.f32 %v973, %v991
        %v1013 = vadd.f32 %v974, %v991
        %v1014 = vadd.f32 %v975, %v991
        %v1015 = vadd.f32 %v976, %v991
        %v1016 = vadd.f32 %v977, %v991
        %v1017 = vadd.f32 %v978, %v991
        %v1018 = vadd.f32 %v979, %v991
        %v1019 = vadd.f32 %v980, %v991
        %v1020 = vadd.f32 %v981, %v991
        %v1021 = vadd.f32 %v982, %v991
        %v1022 = vadd.f32 %v983, %v991
        %v1023 = vadd.f32 %v984, %v991
        %v1024 = vadd.f32 %v985, %v991
        %v1025 = vpack.c.bf16 %v994, %v993
        %v1026 = vpack.c.bf16 %v996, %v995
        %v1027 = vpack.c.bf16 %v998, %v997
        %v1028 = vpack.c.bf16 %v1000, %v999
        %v1029 = vpack.c.bf16 %v1002, %v1001
        %v1030 = vpack.c.bf16 %v1004, %v1003
        %v1031 = vpack.c.bf16 %v1006, %v1005
        %v1032 = vpack.c.bf16 %v1008, %v1007
        %v1033 = vpack.c.bf16 %v1010, %v1009
        %v1034 = vpack.c.bf16 %v1012, %v1011
        %v1035 = vpack.c.bf16 %v1014, %v1013
        %v1036 = vpack.c.bf16 %v1016, %v1015
        %v1037 = vpack.c.bf16 %v1018, %v1017
        %v1038 = vpack.c.bf16 %v1020, %v1019
        %v1039 = vpack.c.bf16 %v1022, %v1021
        %v1040 = vpack.c.bf16 %v1024, %v1023
        %v1041 = vld [vmem:[#allocation7] sm:$0xf]
        %v1042 = vld [vmem:[#allocation7 + $0x4] sm:$0xf]
        %v1043 = vld [vmem:[#allocation7 + $0x8] sm:$0xf]
        %v1044 = vld [vmem:[#allocation7 + $0xc] sm:$0xf]
        %v1045 = vld [vmem:[#allocation7 + $0x10] sm:$0xf]
        %v1046 = vld [vmem:[#allocation7 + $0x14] sm:$0xf]
        %v1047 = vld [vmem:[#allocation7 + $0x18] sm:$0xf]
        %v1048 = vld [vmem:[#allocation7 + $0x1c] sm:$0xf]
        %v1049 = vld [vmem:[#allocation7 + $0x20] sm:$0xf]
        %v1050 = vld [vmem:[#allocation7 + $0x24] sm:$0xf]
        %v1051 = vld [vmem:[#allocation7 + $0x28] sm:$0xf]
        %v1052 = vld [vmem:[#allocation7 + $0x2c] sm:$0xf]
        %v1053 = vld [vmem:[#allocation7 + $0x30] sm:$0xf]
        %v1054 = vld [vmem:[#allocation7 + $0x34] sm:$0xf]
        %v1055 = vld [vmem:[#allocation7 + $0x38] sm:$0xf]
        %v1056 = vld [vmem:[#allocation7 + $0x3c] sm:$0xf]
        %v1057 = vld [vmem:[%s6] sm:$0x1]
        %v1059 = vlaneseq
        %v1060 = vshrl.u32 %v1059, 7
        %v1061 = vsub.s32 0, %v1060
        %v1062 = vrot.slane %v1057, %v1061
        %v1080 = vunpack.c.l.b16 %v1041
        %v1081 = vunpack.c.l.b16 %v1042
        %v1082 = vunpack.c.l.b16 %v1043
        %v1083 = vunpack.c.l.b16 %v1044
        %v1084 = vunpack.c.l.b16 %v1045
        %v1085 = vunpack.c.l.b16 %v1046
        %v1086 = vunpack.c.l.b16 %v1047
        %v1087 = vunpack.c.l.b16 %v1048
        %v1088 = vunpack.c.l.b16 %v1049
        %v1089 = vunpack.c.l.b16 %v1050
        %v1090 = vunpack.c.l.b16 %v1051
        %v1091 = vunpack.c.l.b16 %v1052
        %v1092 = vunpack.c.l.b16 %v1053
        %v1093 = vunpack.c.l.b16 %v1054
        %v1094 = vunpack.c.l.b16 %v1055
        %v1095 = vunpack.c.l.b16 %v1056
        %v1096 = vpack.c.b16 %v1081, %v1080
        %v1097 = vpack.c.b16 %v1083, %v1082
        %v1098 = vpack.c.b16 %v1085, %v1084
        %v1099 = vpack.c.b16 %v1087, %v1086
        %v1100 = vpack.c.b16 %v1089, %v1088
        %v1101 = vpack.c.b16 %v1091, %v1090
        %v1102 = vpack.c.b16 %v1093, %v1092
        %v1103 = vpack.c.b16 %v1095, %v1094
        %1112 = vmatprep.subr.bf16.mxu0 0
        %1113 = vmatpush1.bf16.msra.mxu0 %v1096
        %1114 = vmatprep.subr.bf16.mxu0 0
        %1115 = vmatpush1.bf16.msra.mxu0 %v1097
        %1116 = vmatprep.subr.bf16.mxu0 0
        %1117 = vmatpush1.bf16.msra.mxu0 %v1098
        %1118 = vmatprep.subr.bf16.mxu0 0
        %1119 = vmatpush1.bf16.msra.mxu0 %v1099
        %1120 = vmatprep.subr.bf16.mxu0 0
        %1121 = vmatpush1.bf16.msra.mxu0 %v1100
        %1122 = vmatprep.subr.bf16.mxu0 0
        %1123 = vmatpush1.bf16.msra.mxu0 %v1101
        %1124 = vmatprep.subr.bf16.mxu0 0
        %1125 = vmatpush1.bf16.msra.mxu0 %v1102
        %1126 = vmatprep.subr.bf16.mxu0 0
        %1127 = vmatpush1.bf16.msra.mxu0 %v1103
        %1128 = vmatprep.subr.bf16.mxu0 0
        %1129 = vmatpush1.bf16.msra.mxu0 0
        %1130 = vmatprep.subr.bf16.mxu0 0
        %1131 = vmatpush1.bf16.msra.mxu0 0
        %1132 = vmatprep.subr.bf16.mxu0 0
        %1133 = vmatpush1.bf16.msra.mxu0 0
        %1134 = vmatprep.subr.bf16.mxu0 0
        %1135 = vmatpush1.bf16.msra.mxu0 0
        %1136 = vmatprep.subr.bf16.mxu0 0
        %1137 = vmatpush1.bf16.msra.mxu0 0
        %1138 = vmatprep.subr.bf16.mxu0 0
        %1139 = vmatpush1.bf16.msra.mxu0 0
        %1140 = vmatprep.subr.bf16.mxu0 0
        %1141 = vmatpush1.bf16.msra.mxu0 0
        %1142 = vmatprep.subr.bf16.mxu0 0
        %1143 = vmatpush1.bf16.msra.mxu0 0
        %1144 = vmatprep.mubr.bf16.mxu0 0
        %1145 = vmatmul.mubr.bf16.gmra.mrb[0].mxu0 %v1025
        %v1146 = vpop.f32.mrb[0].mxu0
        %v1147 = vadd.f32 %v1062, %v1146
        %v1148 = vpop.f32.mrb[0].mxu0
        %v1149 = vpop.f32.mrb[0].mxu0
        %v1150 = vadd.f32 %v1062, %v1149
        %v1151 = vpop.f32.mrb[0].mxu0
        %1152 = vmatprep.mubr.bf16.mxu0 0
        %1153 = vmatmul.mubr.bf16.gmra.mrb[0].mxu0 %v1026
        %v1154 = vpop.f32.mrb[0].mxu0
        %v1155 = vadd.f32 %v1062, %v1154
        %v1156 = vpop.f32.mrb[0].mxu0
        %v1157 = vpop.f32.mrb[0].mxu0
        %v1158 = vadd.f32 %v1062, %v1157
        %v1159 = vpop.f32.mrb[0].mxu0
        %1160 = vmatprep.mubr.bf16.mxu0 0
        %1161 = vmatmul.mubr.bf16.gmra.mrb[0].mxu0 %v1027
        %v1162 = vpop.f32.mrb[0].mxu0
        %v1163 = vadd.f32 %v1062, %v1162
        %v1164 = vpop.f32.mrb[0].mxu0
        %v1165 = vpop.f32.mrb[0].mxu0
        %v1166 = vadd.f32 %v1062, %v1165
        %v1167 = vpop.f32.mrb[0].mxu0
        %1168 = vmatprep.mubr.bf16.mxu0 0
        %1169 = vmatmul.mubr.bf16.gmra.mrb[0].mxu0 %v1028
        %v1170 = vpop.f32.mrb[0].mxu0
        %v1171 = vadd.f32 %v1062, %v1170
        %v1172 = vpop.f32.mrb[0].mxu0
        %v1173 = vpop.f32.mrb[0].mxu0
        %v1174 = vadd.f32 %v1062, %v1173
        %v1175 = vpop.f32.mrb[0].mxu0
        %1176 = vmatprep.mubr.bf16.mxu0 0
        %1177 = vmatmul.mubr.bf16.gmra.mrb[0].mxu0 %v1029
        %v1178 = vpop.f32.mrb[0].mxu0
        %v1179 = vadd.f32 %v1062, %v1178
        %v1180 = vpop.f32.mrb[0].mxu0
        %v1181 = vpop.f32.mrb[0].mxu0
        %v1182 = vadd.f32 %v1062, %v1181
        %v1183 = vpop.f32.mrb[0].mxu0
        %1184 = vmatprep.mubr.bf16.mxu0 0
        %1185 = vmatmul.mubr.bf16.gmra.mrb[0].mxu0 %v1030
        %v1186 = vpop.f32.mrb[0].mxu0
        %v1187 = vadd.f32 %v1062, %v1186
        %v1188 = vpop.f32.mrb[0].mxu0
        %v1189 = vpop.f32.mrb[0].mxu0
        %v1190 = vadd.f32 %v1062, %v1189
        %v1191 = vpop.f32.mrb[0].mxu0
        %1192 = vmatprep.mubr.bf16.mxu0 0
        %1193 = vmatmul.mubr.bf16.gmra.mrb[0].mxu0 %v1031
        %v1194 = vpop.f32.mrb[0].mxu0
        %v1195 = vadd.f32 %v1062, %v1194
        %v1196 = vpop.f32.mrb[0].mxu0
        %v1197 = vpop.f32.mrb[0].mxu0
        %v1198 = vadd.f32 %v1062, %v1197
        %v1199 = vpop.f32.mrb[0].mxu0
        %1200 = vmatprep.mubr.bf16.mxu0 0
        %1201 = vmatmul.mubr.bf16.gmra.mrb[0].mxu0 %v1032
        %v1202 = vpop.f32.mrb[0].mxu0
        %v1203 = vadd.f32 %v1062, %v1202
        %v1204 = vpop.f32.mrb[0].mxu0
        %v1205 = vpop.f32.mrb[0].mxu0
        %v1206 = vadd.f32 %v1062, %v1205
        %v1207 = vpop.f32.mrb[0].mxu0
        %1208 = vmatprep.mubr.bf16.mxu0 0
        %1209 = vmatmul.mubr.bf16.gmra.mrb[0].mxu0 %v1033
        %v1210 = vpop.f32.mrb[0].mxu0
        %v1211 = vadd.f32 %v1062, %v1210
        %v1212 = vpop.f32.mrb[0].mxu0
        %v1213 = vpop.f32.mrb[0].mxu0
        %v1214 = vadd.f32 %v1062, %v1213
        %v1215 = vpop.f32.mrb[0].mxu0
        %1216 = vmatprep.mubr.bf16.mxu0 0
        %1217 = vmatmul.mubr.bf16.gmra.mrb[0].mxu0 %v1034
        %v1218 = vpop.f32.mrb[0].mxu0
        %v1219 = vadd.f32 %v1062, %v1218
        %v1220 = vpop.f32.mrb[0].mxu0
        %v1221 = vpop.f32.mrb[0].mxu0
        %v1222 = vadd.f32 %v1062, %v1221
        %v1223 = vpop.f32.mrb[0].mxu0
        %1224 = vmatprep.mubr.bf16.mxu0 0
        %1225 = vmatmul.mubr.bf16.gmra.mrb[0].mxu0 %v1035
        %v1226 = vpop.f32.mrb[0].mxu0
        %v1227 = vadd.f32 %v1062, %v1226
        %v1228 = vpop.f32.mrb[0].mxu0
        %v1229 = vpop.f32.mrb[0].mxu0
        %v1230 = vadd.f32 %v1062, %v1229
        %v1231 = vpop.f32.mrb[0].mxu0
        %1232 = vmatprep.mubr.bf16.mxu0 0
        %1233 = vmatmul.mubr.bf16.gmra.mrb[0].mxu0 %v1036
        %v1234 = vpop.f32.mrb[0].mxu0
        %v1235 = vadd.f32 %v1062, %v1234
        %v1236 = vpop.f32.mrb[0].mxu0
        %v1237 = vpop.f32.mrb[0].mxu0
        %v1238 = vadd.f32 %v1062, %v1237
        %v1239 = vpop.f32.mrb[0].mxu0
        %1240 = vmatprep.mubr.bf16.mxu0 0
        %1241 = vmatmul.mubr.bf16.gmra.mrb[0].mxu0 %v1037
        %v1242 = vpop.f32.mrb[0].mxu0
        %v1243 = vadd.f32 %v1062, %v1242
        %v1244 = vpop.f32.mrb[0].mxu0
        %v1245 = vpop.f32.mrb[0].mxu0
        %v1246 = vadd.f32 %v1062, %v1245
        %v1247 = vpop.f32.mrb[0].mxu0
        %1248 = vmatprep.mubr.bf16.mxu0 0
        %1249 = vmatmul.mubr.bf16.gmra.mrb[0].mxu0 %v1038
        %v1250 = vpop.f32.mrb[0].mxu0
        %v1251 = vadd.f32 %v1062, %v1250
        %v1252 = vpop.f32.mrb[0].mxu0
        %v1253 = vpop.f32.mrb[0].mxu0
        %v1254 = vadd.f32 %v1062, %v1253
        %v1255 = vpop.f32.mrb[0].mxu0
        %1256 = vmatprep.mubr.bf16.mxu0 0
        %1257 = vmatmul.mubr.bf16.gmra.mrb[0].mxu0 %v1039
        %v1258 = vpop.f32.mrb[0].mxu0
        %v1259 = vadd.f32 %v1062, %v1258
        %v1260 = vpop.f32.mrb[0].mxu0
        %v1261 = vpop.f32.mrb[0].mxu0
        %v1262 = vadd.f32 %v1062, %v1261
        %v1263 = vpop.f32.mrb[0].mxu0
        %1264 = vmatprep.mubr.bf16.mxu0 0
        %1265 = vmatmul.mubr.bf16.gmra.mrb[0].mxu0 %v1040
        %v1266 = vpop.f32.mrb[0].mxu0
        %v1267 = vadd.f32 %v1062, %v1266
        %v1268 = vpop.f32.mrb[0].mxu0
        %v1269 = vpop.f32.mrb[0].mxu0
        %v1270 = vadd.f32 %v1062, %v1269
        %v1271 = vpop.f32.mrb[0].mxu0
        %1272 = vdwg.mxu0
        %v1273 = vpack.c.bf16 %v1150, %v1147
        %v1274 = vpack.c.bf16 %v1158, %v1155
        %v1275 = vpack.c.bf16 %v1166, %v1163
        %v1276 = vpack.c.bf16 %v1174, %v1171
        %v1277 = vpack.c.bf16 %v1182, %v1179
        %v1278 = vpack.c.bf16 %v1190, %v1187
        %v1279 = vpack.c.bf16 %v1198, %v1195
        %v1280 = vpack.c.bf16 %v1206, %v1203
        %v1281 = vpack.c.bf16 %v1214, %v1211
        %v1282 = vpack.c.bf16 %v1222, %v1219
        %v1283 = vpack.c.bf16 %v1230, %v1227
        %v1284 = vpack.c.bf16 %v1238, %v1235
        %v1285 = vpack.c.bf16 %v1246, %v1243
        %v1286 = vpack.c.bf16 %v1254, %v1251
        %v1287 = vpack.c.bf16 %v1262, %v1259
        %v1288 = vpack.c.bf16 %v1270, %v1267
        %v1289 = vld [vmem:[#allocation5] sm:$0xf]
        %v1290 = vld [vmem:[#allocation5 + $0x4] sm:$0xf]
        %v1291 = vld [vmem:[#allocation5 + $0x8] sm:$0xf]
        %v1292 = vld [vmem:[#allocation5 + $0xc] sm:$0xf]
        %v1293 = vld [vmem:[#allocation5 + $0x10] sm:$0xf]
        %v1294 = vld [vmem:[#allocation5 + $0x14] sm:$0xf]
        %v1295 = vld [vmem:[#allocation5 + $0x18] sm:$0xf]
        %v1296 = vld [vmem:[#allocation5 + $0x1c] sm:$0xf]
        %v1297 = vld [vmem:[#allocation5 + $0x20] sm:$0xf]
        %v1298 = vld [vmem:[#allocation5 + $0x24] sm:$0xf]
        %v1299 = vld [vmem:[#allocation5 + $0x28] sm:$0xf]
        %v1300 = vld [vmem:[#allocation5 + $0x2c] sm:$0xf]
        %v1301 = vld [vmem:[#allocation5 + $0x30] sm:$0xf]
        %v1302 = vld [vmem:[#allocation5 + $0x34] sm:$0xf]
        %v1303 = vld [vmem:[#allocation5 + $0x38] sm:$0xf]
        %v1304 = vld [vmem:[#allocation5 + $0x3c] sm:$0xf]
        %v1305 = vld [vmem:[%s2] sm:$0x1]
        %v1307 = vlaneseq
        %v1308 = vshrl.u32 %v1307, 7
        %v1309 = vsub.s32 0, %v1308
        %v1310 = vrot.slane %v1305, %v1309
        %v1328 = vunpack.c.l.b16 %v1289
        %v1329 = vunpack.c.l.b16 %v1290
        %v1330 = vunpack.c.l.b16 %v1291
        %v1331 = vunpack.c.l.b16 %v1292
        %v1332 = vunpack.c.l.b16 %v1293
        %v1333 = vunpack.c.l.b16 %v1294
        %v1334 = vunpack.c.l.b16 %v1295
        %v1335 = vunpack.c.l.b16 %v1296
        %v1336 = vunpack.c.l.b16 %v1297
        %v1337 = vunpack.c.l.b16 %v1298
        %v1338 = vunpack.c.l.b16 %v1299
        %v1339 = vunpack.c.l.b16 %v1300
        %v1340 = vunpack.c.l.b16 %v1301
        %v1341 = vunpack.c.l.b16 %v1302
        %v1342 = vunpack.c.l.b16 %v1303
        %v1343 = vunpack.c.l.b16 %v1304
        %v1344 = vpack.c.b16 %v1329, %v1328
        %v1345 = vpack.c.b16 %v1331, %v1330
        %v1346 = vpack.c.b16 %v1333, %v1332
        %v1347 = vpack.c.b16 %v1335, %v1334
        %v1348 = vpack.c.b16 %v1337, %v1336
        %v1349 = vpack.c.b16 %v1339, %v1338
        %v1350 = vpack.c.b16 %v1341, %v1340
        %v1351 = vpack.c.b16 %v1343, %v1342
        %1360 = vmatprep.subr.bf16.mxu0 0
        %1361 = vmatpush1.bf16.xpose.msra.mxu0 %v1344
        %1362 = vmatprep.subr.bf16.mxu0 0
        %1363 = vmatpush1.bf16.xpose.msra.mxu0 %v1345
        %1364 = vmatprep.subr.bf16.mxu0 0
        %1365 = vmatpush1.bf16.xpose.msra.mxu0 %v1346
        %1366 = vmatprep.subr.bf16.mxu0 0
        %1367 = vmatpush1.bf16.xpose.msra.mxu0 %v1347
        %1368 = vmatprep.subr.bf16.mxu0 0
        %1369 = vmatpush1.bf16.xpose.msra.mxu0 %v1348
        %1370 = vmatprep.subr.bf16.mxu0 0
        %1371 = vmatpush1.bf16.xpose.msra.mxu0 %v1349
        %1372 = vmatprep.subr.bf16.mxu0 0
        %1373 = vmatpush1.bf16.xpose.msra.mxu0 %v1350
        %1374 = vmatprep.subr.bf16.mxu0 0
        %1375 = vmatpush1.bf16.xpose.msra.mxu0 %v1351
        %1376 = vmatprep.subr.bf16.mxu0 0
        %1377 = vmatpush1.bf16.xpose.msra.mxu0 0
        %1378 = vmatprep.subr.bf16.mxu0 0
        %1379 = vmatpush1.bf16.xpose.msra.mxu0 0
        %1380 = vmatprep.subr.bf16.mxu0 0
        %1381 = vmatpush1.bf16.xpose.msra.mxu0 0
        %1382 = vmatprep.subr.bf16.mxu0 0
        %1383 = vmatpush1.bf16.xpose.msra.mxu0 0
        %1384 = vmatprep.subr.bf16.mxu0 0
        %1385 = vmatpush1.bf16.xpose.msra.mxu0 0
        %1386 = vmatprep.subr.bf16.mxu0 0
        %1387 = vmatpush1.bf16.xpose.msra.mxu0 0
        %1388 = vmatprep.subr.bf16.mxu0 0
        %1389 = vmatpush1.bf16.xpose.msra.mxu0 0
        %1390 = vmatprep.subr.bf16.mxu0 0
        %1391 = vmatpush1.bf16.xpose.msra.mxu0 0
        %1392 = vmatprep.mubr.bf16.mxu0 0
        %1393 = vmatmul.mubr.bf16.gmra.mrb[0].mxu0 %v1273
        %v1394 = vpop.f32.mrb[0].mxu0
        %v1395 = vadd.f32 %v1310, %v1394
        %v1396 = vpop.f32.mrb[0].mxu0
        %v1397 = vpop.f32.mrb[0].mxu0
        %v1398 = vadd.f32 %v1310, %v1397
        %v1399 = vpop.f32.mrb[0].mxu0
        %1400 = vmatprep.mubr.bf16.mxu0 0
        %1401 = vmatmul.mubr.bf16.gmra.mrb[0].mxu0 %v1274
        %v1402 = vpop.f32.mrb[0].mxu0
        %v1403 = vadd.f32 %v1310, %v1402
        %v1404 = vpop.f32.mrb[0].mxu0
        %v1405 = vpop.f32.mrb[0].mxu0
        %v1406 = vadd.f32 %v1310, %v1405
        %v1407 = vpop.f32.mrb[0].mxu0
        %1408 = vmatprep.mubr.bf16.mxu0 0
        %1409 = vmatmul.mubr.bf16.gmra.mrb[0].mxu0 %v1275
        %v1410 = vpop.f32.mrb[0].mxu0
        %v1411 = vadd.f32 %v1310, %v1410
        %v1412 = vpop.f32.mrb[0].mxu0
        %v1413 = vpop.f32.mrb[0].mxu0
        %v1414 = vadd.f32 %v1310, %v1413
        %v1415 = vpop.f32.mrb[0].mxu0
        %1416 = vmatprep.mubr.bf16.mxu0 0
        %1417 = vmatmul.mubr.bf16.gmra.mrb[0].mxu0 %v1276
        %v1418 = vpop.f32.mrb[0].mxu0
        %v1419 = vadd.f32 %v1310, %v1418
        %v1420 = vpop.f32.mrb[0].mxu0
        %v1421 = vpop.f32.mrb[0].mxu0
        %v1422 = vadd.f32 %v1310, %v1421
        %v1423 = vpop.f32.mrb[0].mxu0
        %1424 = vmatprep.mubr.bf16.mxu0 0
        %1425 = vmatmul.mubr.bf16.gmra.mrb[0].mxu0 %v1277
        %v1426 = vpop.f32.mrb[0].mxu0
        %v1427 = vadd.f32 %v1310, %v1426
        %v1428 = vpop.f32.mrb[0].mxu0
        %v1429 = vpop.f32.mrb[0].mxu0
        %v1430 = vadd.f32 %v1310, %v1429
        %v1431 = vpop.f32.mrb[0].mxu0
        %1432 = vmatprep.mubr.bf16.mxu0 0
        %1433 = vmatmul.mubr.bf16.gmra.mrb[0].mxu0 %v1278
        %v1434 = vpop.f32.mrb[0].mxu0
        %v1435 = vadd.f32 %v1310, %v1434
        %v1436 = vpop.f32.mrb[0].mxu0
        %v1437 = vpop.f32.mrb[0].mxu0
        %v1438 = vadd.f32 %v1310, %v1437
        %v1439 = vpop.f32.mrb[0].mxu0
        %1440 = vmatprep.mubr.bf16.mxu0 0
        %1441 = vmatmul.mubr.bf16.gmra.mrb[0].mxu0 %v1279
        %v1442 = vpop.f32.mrb[0].mxu0
        %v1443 = vadd.f32 %v1310, %v1442
        %v1444 = vpop.f32.mrb[0].mxu0
        %v1445 = vpop.f32.mrb[0].mxu0
        %v1446 = vadd.f32 %v1310, %v1445
        %v1447 = vpop.f32.mrb[0].mxu0
        %1448 = vmatprep.mubr.bf16.mxu0 0
        %1449 = vmatmul.mubr.bf16.gmra.mrb[0].mxu0 %v1280
        %v1450 = vpop.f32.mrb[0].mxu0
        %v1451 = vadd.f32 %v1310, %v1450
        %v1452 = vpop.f32.mrb[0].mxu0
        %v1453 = vpop.f32.mrb[0].mxu0
        %v1454 = vadd.f32 %v1310, %v1453
        %v1455 = vpop.f32.mrb[0].mxu0
        %1456 = vmatprep.mubr.bf16.mxu0 0
        %1457 = vmatmul.mubr.bf16.gmra.mrb[0].mxu0 %v1281
        %v1458 = vpop.f32.mrb[0].mxu0
        %v1459 = vadd.f32 %v1310, %v1458
        %v1460 = vpop.f32.mrb[0].mxu0
        %v1461 = vpop.f32.mrb[0].mxu0
        %v1462 = vadd.f32 %v1310, %v1461
        %v1463 = vpop.f32.mrb[0].mxu0
        %1464 = vmatprep.mubr.bf16.mxu0 0
        %1465 = vmatmul.mubr.bf16.gmra.mrb[0].mxu0 %v1282
        %v1466 = vpop.f32.mrb[0].mxu0
        %v1467 = vadd.f32 %v1310, %v1466
        %v1468 = vpop.f32.mrb[0].mxu0
        %v1469 = vpop.f32.mrb[0].mxu0
        %v1470 = vadd.f32 %v1310, %v1469
        %v1471 = vpop.f32.mrb[0].mxu0
        %1472 = vmatprep.mubr.bf16.mxu0 0
        %1473 = vmatmul.mubr.bf16.gmra.mrb[0].mxu0 %v1283
        %v1474 = vpop.f32.mrb[0].mxu0
        %v1475 = vadd.f32 %v1310, %v1474
        %v1476 = vpop.f32.mrb[0].mxu0
        %v1477 = vpop.f32.mrb[0].mxu0
        %v1478 = vadd.f32 %v1310, %v1477
        %v1479 = vpop.f32.mrb[0].mxu0
        %1480 = vmatprep.mubr.bf16.mxu0 0
        %1481 = vmatmul.mubr.bf16.gmra.mrb[0].mxu0 %v1284
        %v1482 = vpop.f32.mrb[0].mxu0
        %v1483 = vadd.f32 %v1310, %v1482
        %v1484 = vpop.f32.mrb[0].mxu0
        %v1485 = vpop.f32.mrb[0].mxu0
        %v1486 = vadd.f32 %v1310, %v1485
        %v1487 = vpop.f32.mrb[0].mxu0
        %1488 = vmatprep.mubr.bf16.mxu0 0
        %1489 = vmatmul.mubr.bf16.gmra.mrb[0].mxu0 %v1285
        %v1490 = vpop.f32.mrb[0].mxu0
        %v1491 = vadd.f32 %v1310, %v1490
        %v1492 = vpop.f32.mrb[0].mxu0
        %v1493 = vpop.f32.mrb[0].mxu0
        %v1494 = vadd.f32 %v1310, %v1493
        %v1495 = vpop.f32.mrb[0].mxu0
        %1496 = vmatprep.mubr.bf16.mxu0 0
        %1497 = vmatmul.mubr.bf16.gmra.mrb[0].mxu0 %v1286
        %v1498 = vpop.f32.mrb[0].mxu0
        %v1499 = vadd.f32 %v1310, %v1498
        %v1500 = vpop.f32.mrb[0].mxu0
        %v1501 = vpop.f32.mrb[0].mxu0
        %v1502 = vadd.f32 %v1310, %v1501
        %v1503 = vpop.f32.mrb[0].mxu0
        %1504 = vmatprep.mubr.bf16.mxu0 0
        %1505 = vmatmul.mubr.bf16.gmra.mrb[0].mxu0 %v1287
        %v1506 = vpop.f32.mrb[0].mxu0
        %v1507 = vadd.f32 %v1310, %v1506
        %v1508 = vpop.f32.mrb[0].mxu0
        %v1509 = vpop.f32.mrb[0].mxu0
        %v1510 = vadd.f32 %v1310, %v1509
        %v1511 = vpop.f32.mrb[0].mxu0
        %1512 = vmatprep.mubr.bf16.mxu0 0
        %1513 = vmatmul.mubr.bf16.gmra.mrb[0].mxu0 %v1288
        %v1514 = vpop.f32.mrb[0].mxu0
        %v1515 = vadd.f32 %v1310, %v1514
        %v1516 = vpop.f32.mrb[0].mxu0
        %v1517 = vpop.f32.mrb[0].mxu0
        %v1518 = vadd.f32 %v1310, %v1517
        %v1519 = vpop.f32.mrb[0].mxu0
        %1520 = vdwg.mxu0
        %1521 = vmax.xlane.f32.xlu0 %v1395
        %v1522 = vpop.xlane.xlu0 %1521
        %1523 = vmax.xlane.f32.xlu0 %v1398
        %v1524 = vpop.xlane.xlu0 %1523
        %1525 = vmax.xlane.f32.xlu0 %v1403
        %v1526 = vpop.xlane.xlu0 %1525
        %1527 = vmax.xlane.f32.xlu0 %v1406
        %v1528 = vpop.xlane.xlu0 %1527
        %1529 = vmax.xlane.f32.xlu0 %v1411
        %v1530 = vpop.xlane.xlu0 %1529
        %1531 = vmax.xlane.f32.xlu0 %v1414
        %v1532 = vpop.xlane.xlu0 %1531
        %1533 = vmax.xlane.f32.xlu0 %v1419
        %v1534 = vpop.xlane.xlu0 %1533
        %1535 = vmax.xlane.f32.xlu0 %v1422
        %v1536 = vpop.xlane.xlu0 %1535
        %1537 = vmax.xlane.f32.xlu0 %v1427
        %v1538 = vpop.xlane.xlu0 %1537
        %1539 = vmax.xlane.f32.xlu0 %v1430
        %v1540 = vpop.xlane.xlu0 %1539
        %1541 = vmax.xlane.f32.xlu0 %v1435
        %v1542 = vpop.xlane.xlu0 %1541
        %1543 = vmax.xlane.f32.xlu0 %v1438
        %v1544 = vpop.xlane.xlu0 %1543
        %1545 = vmax.xlane.f32.xlu0 %v1443
        %v1546 = vpop.xlane.xlu0 %1545
        %1547 = vmax.xlane.f32.xlu0 %v1446
        %v1548 = vpop.xlane.xlu0 %1547
        %1549 = vmax.xlane.f32.xlu0 %v1451
        %v1550 = vpop.xlane.xlu0 %1549
        %1551 = vmax.xlane.f32.xlu0 %v1454
        %v1552 = vpop.xlane.xlu0 %1551
        %1553 = vmax.xlane.f32.xlu0 %v1459
        %v1554 = vpop.xlane.xlu0 %1553
        %1555 = vmax.xlane.f32.xlu0 %v1462
        %v1556 = vpop.xlane.xlu0 %1555
        %1557 = vmax.xlane.f32.xlu0 %v1467
        %v1558 = vpop.xlane.xlu0 %1557
        %1559 = vmax.xlane.f32.xlu0 %v1470
        %v1560 = vpop.xlane.xlu0 %1559
        %1561 = vmax.xlane.f32.xlu0 %v1475
        %v1562 = vpop.xlane.xlu0 %1561
        %1563 = vmax.xlane.f32.xlu0 %v1478
        %v1564 = vpop.xlane.xlu0 %1563
        %1565 = vmax.xlane.f32.xlu0 %v1483
        %v1566 = vpop.xlane.xlu0 %1565
        %1567 = vmax.xlane.f32.xlu0 %v1486
        %v1568 = vpop.xlane.xlu0 %1567
        %1569 = vmax.xlane.f32.xlu0 %v1491
        %v1570 = vpop.xlane.xlu0 %1569
        %1571 = vmax.xlane.f32.xlu0 %v1494
        %v1572 = vpop.xlane.xlu0 %1571
        %1573 = vmax.xlane.f32.xlu0 %v1499
        %v1574 = vpop.xlane.xlu0 %1573
        %1575 = vmax.xlane.f32.xlu0 %v1502
        %v1576 = vpop.xlane.xlu0 %1575
        %1577 = vmax.xlane.f32.xlu0 %v1507
        %v1578 = vpop.xlane.xlu0 %1577
        %1579 = vmax.xlane.f32.xlu0 %v1510
        %v1580 = vpop.xlane.xlu0 %1579
        %1581 = vmax.xlane.f32.xlu0 %v1515
        %v1582 = vpop.xlane.xlu0 %1581
        %1583 = vmax.xlane.f32.xlu0 %v1518
        %v1584 = vpop.xlane.xlu0 %1583
        %v1585 = vsub.f32 %v1395, %v1522
        %v1586 = vsub.f32 %v1398, %v1524
        %v1587 = vsub.f32 %v1403, %v1526
        %v1588 = vsub.f32 %v1406, %v1528
        %v1589 = vsub.f32 %v1411, %v1530
        %v1590 = vsub.f32 %v1414, %v1532
        %v1591 = vsub.f32 %v1419, %v1534
        %v1592 = vsub.f32 %v1422, %v1536
        %v1593 = vsub.f32 %v1427, %v1538
        %v1594 = vsub.f32 %v1430, %v1540
        %v1595 = vsub.f32 %v1435, %v1542
        %v1596 = vsub.f32 %v1438, %v1544
        %v1597 = vsub.f32 %v1443, %v1546
        %v1598 = vsub.f32 %v1446, %v1548
        %v1599 = vsub.f32 %v1451, %v1550
        %v1600 = vsub.f32 %v1454, %v1552
        %v1601 = vsub.f32 %v1459, %v1554
        %v1602 = vsub.f32 %v1462, %v1556
        %v1603 = vsub.f32 %v1467, %v1558
        %v1604 = vsub.f32 %v1470, %v1560
        %v1605 = vsub.f32 %v1475, %v1562
        %v1606 = vsub.f32 %v1478, %v1564
        %v1607 = vsub.f32 %v1483, %v1566
        %v1608 = vsub.f32 %v1486, %v1568
        %v1609 = vsub.f32 %v1491, %v1570
        %v1610 = vsub.f32 %v1494, %v1572
        %v1611 = vsub.f32 %v1499, %v1574
        %v1612 = vsub.f32 %v1502, %v1576
        %v1613 = vsub.f32 %v1507, %v1578
        %v1614 = vsub.f32 %v1510, %v1580
        %v1615 = vsub.f32 %v1515, %v1582
        %v1616 = vsub.f32 %v1518, %v1584
        %v1617 = vmul.f32 %v1585, 1.442695
        %v1618 = vpow.pop %v1617
        %v1619 = vmul.f32 %v1586, 1.442695
        %v1620 = vpow.pop %v1619
        %v1621 = vmul.f32 %v1587, 1.442695
        %v1622 = vpow.pop %v1621
        %v1623 = vmul.f32 %v1588, 1.442695
        %v1624 = vpow.pop %v1623
        %v1625 = vmul.f32 %v1589, 1.442695
        %v1626 = vpow.pop %v1625
        %v1627 = vmul.f32 %v1590, 1.442695
        %v1628 = vpow.pop %v1627
        %v1629 = vmul.f32 %v1591, 1.442695
        %v1630 = vpow.pop %v1629
        %v1631 = vmul.f32 %v1592, 1.442695
        %v1632 = vpow.pop %v1631
        %v1633 = vmul.f32 %v1593, 1.442695
        %v1634 = vpow.pop %v1633
        %v1635 = vmul.f32 %v1594, 1.442695
        %v1636 = vpow.pop %v1635
        %v1637 = vmul.f32 %v1595, 1.442695
        %v1638 = vpow.pop %v1637
        %v1639 = vmul.f32 %v1596, 1.442695
        %v1640 = vpow.pop %v1639
        %v1641 = vmul.f32 %v1597, 1.442695
        %v1642 = vpow.pop %v1641
        %v1643 = vmul.f32 %v1598, 1.442695
        %v1644 = vpow.pop %v1643
        %v1645 = vmul.f32 %v1599, 1.442695
        %v1646 = vpow.pop %v1645
        %v1647 = vmul.f32 %v1600, 1.442695
        %v1648 = vpow.pop %v1647
        %v1649 = vmul.f32 %v1601, 1.442695
        %v1650 = vpow.pop %v1649
        %v1651 = vmul.f32 %v1602, 1.442695
        %v1652 = vpow.pop %v1651
        %v1653 = vmul.f32 %v1603, 1.442695
        %v1654 = vpow.pop %v1653
        %v1655 = vmul.f32 %v1604, 1.442695
        %v1656 = vpow.pop %v1655
        %v1657 = vmul.f32 %v1605, 1.442695
        %v1658 = vpow.pop %v1657
        %v1659 = vmul.f32 %v1606, 1.442695
        %v1660 = vpow.pop %v1659
        %v1661 = vmul.f32 %v1607, 1.442695
        %v1662 = vpow.pop %v1661
        %v1663 = vmul.f32 %v1608, 1.442695
        %v1664 = vpow.pop %v1663
        %v1665 = vmul.f32 %v1609, 1.442695
        %v1666 = vpow.pop %v1665
        %v1667 = vmul.f32 %v1610, 1.442695
        %v1668 = vpow.pop %v1667
        %v1669 = vmul.f32 %v1611, 1.442695
        %v1670 = vpow.pop %v1669
        %v1671 = vmul.f32 %v1612, 1.442695
        %v1672 = vpow.pop %v1671
        %v1673 = vmul.f32 %v1613, 1.442695
        %v1674 = vpow.pop %v1673
        %v1675 = vmul.f32 %v1614, 1.442695
        %v1676 = vpow.pop %v1675
        %v1677 = vmul.f32 %v1615, 1.442695
        %v1678 = vpow.pop %v1677
        %v1679 = vmul.f32 %v1616, 1.442695
        %v1680 = vpow.pop %v1679
        %1681 = vadd.xlane.f32.xlu0 %v1618
        %v1682 = vpop.xlane.xlu0 %1681
        %1683 = vadd.xlane.f32.xlu0 %v1620
        %v1684 = vpop.xlane.xlu0 %1683
        %1685 = vadd.xlane.f32.xlu0 %v1622
        %v1686 = vpop.xlane.xlu0 %1685
        %1687 = vadd.xlane.f32.xlu0 %v1624
        %v1688 = vpop.xlane.xlu0 %1687
        %1689 = vadd.xlane.f32.xlu0 %v1626
        %v1690 = vpop.xlane.xlu0 %1689
        %1691 = vadd.xlane.f32.xlu0 %v1628
        %v1692 = vpop.xlane.xlu0 %1691
        %1693 = vadd.xlane.f32.xlu0 %v1630
        %v1694 = vpop.xlane.xlu0 %1693
        %1695 = vadd.xlane.f32.xlu0 %v1632
        %v1696 = vpop.xlane.xlu0 %1695
        %1697 = vadd.xlane.f32.xlu0 %v1634
        %v1698 = vpop.xlane.xlu0 %1697
        %1699 = vadd.xlane.f32.xlu0 %v1636
        %v1700 = vpop.xlane.xlu0 %1699
        %1701 = vadd.xlane.f32.xlu0 %v1638
        %v1702 = vpop.xlane.xlu0 %1701
        %1703 = vadd.xlane.f32.xlu0 %v1640
        %v1704 = vpop.xlane.xlu0 %1703
        %1705 = vadd.xlane.f32.xlu0 %v1642
        %v1706 = vpop.xlane.xlu0 %1705
        %1707 = vadd.xlane.f32.xlu0 %v1644
        %v1708 = vpop.xlane.xlu0 %1707
        %1709 = vadd.xlane.f32.xlu0 %v1646
        %v1710 = vpop.xlane.xlu0 %1709
        %1711 = vadd.xlane.f32.xlu0 %v1648
        %v1712 = vpop.xlane.xlu0 %1711
        %1713 = vadd.xlane.f32.xlu0 %v1650
        %v1714 = vpop.xlane.xlu0 %1713
        %1715 = vadd.xlane.f32.xlu0 %v1652
        %v1716 = vpop.xlane.xlu0 %1715
        %1717 = vadd.xlane.f32.xlu0 %v1654
        %v1718 = vpop.xlane.xlu0 %1717
        %1719 = vadd.xlane.f32.xlu0 %v1656
        %v1720 = vpop.xlane.xlu0 %1719
        %1721 = vadd.xlane.f32.xlu0 %v1658
        %v1722 = vpop.xlane.xlu0 %1721
        %1723 = vadd.xlane.f32.xlu0 %v1660
        %v1724 = vpop.xlane.xlu0 %1723
        %1725 = vadd.xlane.f32.xlu0 %v1662
        %v1726 = vpop.xlane.xlu0 %1725
        %1727 = vadd.xlane.f32.xlu0 %v1664
        %v1728 = vpop.xlane.xlu0 %1727
        %1729 = vadd.xlane.f32.xlu0 %v1666
        %v1730 = vpop.xlane.xlu0 %1729
        %1731 = vadd.xlane.f32.xlu0 %v1668
        %v1732 = vpop.xlane.xlu0 %1731
        %1733 = vadd.xlane.f32.xlu0 %v1670
        %v1734 = vpop.xlane.xlu0 %1733
        %1735 = vadd.xlane.f32.xlu0 %v1672
        %v1736 = vpop.xlane.xlu0 %1735
        %1737 = vadd.xlane.f32.xlu0 %v1674
        %v1738 = vpop.xlane.xlu0 %1737
        %1739 = vadd.xlane.f32.xlu0 %v1676
        %v1740 = vpop.xlane.xlu0 %1739
        %1741 = vadd.xlane.f32.xlu0 %v1678
        %v1742 = vpop.xlane.xlu0 %1741
        %1743 = vadd.xlane.f32.xlu0 %v1680
        %v1744 = vpop.xlane.xlu0 %1743
        %v1745 = vrcp.pop %v1682
        %v1746 = vrcp.pop %v1684
        %v1747 = vrcp.pop %v1686
        %v1748 = vrcp.pop %v1688
        %v1749 = vrcp.pop %v1690
        %v1750 = vrcp.pop %v1692
        %v1751 = vrcp.pop %v1694
        %v1752 = vrcp.pop %v1696
        %v1753 = vrcp.pop %v1698
        %v1754 = vrcp.pop %v1700
        %v1755 = vrcp.pop %v1702
        %v1756 = vrcp.pop %v1704
        %v1757 = vrcp.pop %v1706
        %v1758 = vrcp.pop %v1708
        %v1759 = vrcp.pop %v1710
        %v1760 = vrcp.pop %v1712
        %v1761 = vrcp.pop %v1714
        %v1762 = vrcp.pop %v1716
        %v1763 = vrcp.pop %v1718
        %v1764 = vrcp.pop %v1720
        %v1765 = vrcp.pop %v1722
        %v1766 = vrcp.pop %v1724
        %v1767 = vrcp.pop %v1726
        %v1768 = vrcp.pop %v1728
        %v1769 = vrcp.pop %v1730
        %v1770 = vrcp.pop %v1732
        %v1771 = vrcp.pop %v1734
        %v1772 = vrcp.pop %v1736
        %v1773 = vrcp.pop %v1738
        %v1774 = vrcp.pop %v1740
        %v1775 = vrcp.pop %v1742
        %v1776 = vrcp.pop %v1744
        %v1777 = vpack.c.bf16 %v1620, %v1618
        %v1778 = vpack.c.bf16 %v1624, %v1622
        %v1779 = vpack.c.bf16 %v1628, %v1626
        %v1780 = vpack.c.bf16 %v1632, %v1630
        %v1781 = vpack.c.bf16 %v1636, %v1634
        %v1782 = vpack.c.bf16 %v1640, %v1638
        %v1783 = vpack.c.bf16 %v1644, %v1642
        %v1784 = vpack.c.bf16 %v1648, %v1646
        %v1785 = vpack.c.bf16 %v1652, %v1650
        %v1786 = vpack.c.bf16 %v1656, %v1654
        %v1787 = vpack.c.bf16 %v1660, %v1658
        %v1788 = vpack.c.bf16 %v1664, %v1662
        %v1789 = vpack.c.bf16 %v1668, %v1666
        %v1790 = vpack.c.bf16 %v1672, %v1670
        %v1791 = vpack.c.bf16 %v1676, %v1674
        %v1792 = vpack.c.bf16 %v1680, %v1678
        %1793 = vmatprep.subr.bf16.mxu0 0
        %1794 = vmatpush1.bf16.msra.mxu0 %v1344
        %1795 = vmatprep.subr.bf16.mxu0 0
        %1796 = vmatpush1.bf16.msra.mxu0 %v1345
        %1797 = vmatprep.subr.bf16.mxu0 0
        %1798 = vmatpush1.bf16.msra.mxu0 %v1346
        %1799 = vmatprep.subr.bf16.mxu0 0
        %1800 = vmatpush1.bf16.msra.mxu0 %v1347
        %1801 = vmatprep.subr.bf16.mxu0 0
        %1802 = vmatpush1.bf16.msra.mxu0 %v1348
        %1803 = vmatprep.subr.bf16.mxu0 0
        %1804 = vmatpush1.bf16.msra.mxu0 %v1349
        %1805 = vmatprep.subr.bf16.mxu0 0
        %1806 = vmatpush1.bf16.msra.mxu0 %v1350
        %1807 = vmatprep.subr.bf16.mxu0 0
        %1808 = vmatpush1.bf16.msra.mxu0 %v1351
        %1809 = vmatprep.subr.bf16.mxu0 0
        %1810 = vmatpush1.bf16.msra.mxu0 0
        %1811 = vmatprep.subr.bf16.mxu0 0
        %1812 = vmatpush1.bf16.msra.mxu0 0
        %1813 = vmatprep.subr.bf16.mxu0 0
        %1814 = vmatpush1.bf16.msra.mxu0 0
        %1815 = vmatprep.subr.bf16.mxu0 0
        %1816 = vmatpush1.bf16.msra.mxu0 0
        %1817 = vmatprep.subr.bf16.mxu0 0
        %1818 = vmatpush1.bf16.msra.mxu0 0
        %1819 = vmatprep.subr.bf16.mxu0 0
        %1820 = vmatpush1.bf16.msra.mxu0 0
        %1821 = vmatprep.subr.bf16.mxu0 0
        %1822 = vmatpush1.bf16.msra.mxu0 0
        %1823 = vmatprep.subr.bf16.mxu0 0
        %1824 = vmatpush1.bf16.msra.mxu0 0
        %1825 = vmatprep.mubr.bf16.mxu0 0
        %1826 = vmatmul.mubr.bf16.gmra.mrb[0].mxu0 %v1777
        %v1827 = vpop.f32.mrb[0].mxu0
        %v1828 = vadd.f32 0.0, %v1827
        %v1829 = vpop.f32.mrb[0].mxu0
        %v1830 = vpop.f32.mrb[0].mxu0
        %v1831 = vadd.f32 0.0, %v1830
        %v1832 = vpop.f32.mrb[0].mxu0
        %1833 = vmatprep.mubr.bf16.mxu0 0
        %1834 = vmatmul.mubr.bf16.gmra.mrb[0].mxu0 %v1778
        %v1835 = vpop.f32.mrb[0].mxu0
        %v1836 = vadd.f32 0.0, %v1835
        %v1837 = vpop.f32.mrb[0].mxu0
        %v1838 = vpop.f32.mrb[0].mxu0
        %v1839 = vadd.f32 0.0, %v1838
        %v1840 = vpop.f32.mrb[0].mxu0
        %1841 = vmatprep.mubr.bf16.mxu0 0
        %1842 = vmatmul.mubr.bf16.gmra.mrb[0].mxu0 %v1779
        %v1843 = vpop.f32.mrb[0].mxu0
        %v1844 = vadd.f32 0.0, %v1843
        %v1845 = vpop.f32.mrb[0].mxu0
        %v1846 = vpop.f32.mrb[0].mxu0
        %v1847 = vadd.f32 0.0, %v1846
        %v1848 = vpop.f32.mrb[0].mxu0
        %1849 = vmatprep.mubr.bf16.mxu0 0
        %1850 = vmatmul.mubr.bf16.gmra.mrb[0].mxu0 %v1780
        %v1851 = vpop.f32.mrb[0].mxu0
        %v1852 = vadd.f32 0.0, %v1851
        %v1853 = vpop.f32.mrb[0].mxu0
        %v1854 = vpop.f32.mrb[0].mxu0
        %v1855 = vadd.f32 0.0, %v1854
        %v1856 = vpop.f32.mrb[0].mxu0
        %1857 = vmatprep.mubr.bf16.mxu0 0
        %1858 = vmatmul.mubr.bf16.gmra.mrb[0].mxu0 %v1781
        %v1859 = vpop.f32.mrb[0].mxu0
        %v1860 = vadd.f32 0.0, %v1859
        %v1861 = vpop.f32.mrb[0].mxu0
        %v1862 = vpop.f32.mrb[0].mxu0
        %v1863 = vadd.f32 0.0, %v1862
        %v1864 = vpop.f32.mrb[0].mxu0
        %1865 = vmatprep.mubr.bf16.mxu0 0
        %1866 = vmatmul.mubr.bf16.gmra.mrb[0].mxu0 %v1782
        %v1867 = vpop.f32.mrb[0].mxu0
        %v1868 = vadd.f32 0.0, %v1867
        %v1869 = vpop.f32.mrb[0].mxu0
        %v1870 = vpop.f32.mrb[0].mxu0
        %v1871 = vadd.f32 0.0, %v1870
        %v1872 = vpop.f32.mrb[0].mxu0
        %1873 = vmatprep.mubr.bf16.mxu0 0
        %1874 = vmatmul.mubr.bf16.gmra.mrb[0].mxu0 %v1783
        %v1875 = vpop.f32.mrb[0].mxu0
        %v1876 = vadd.f32 0.0, %v1875
        %v1877 = vpop.f32.mrb[0].mxu0
        %v1878 = vpop.f32.mrb[0].mxu0
        %v1879 = vadd.f32 0.0, %v1878
        %v1880 = vpop.f32.mrb[0].mxu0
        %1881 = vmatprep.mubr.bf16.mxu0 0
        %1882 = vmatmul.mubr.bf16.gmra.mrb[0].mxu0 %v1784
        %v1883 = vpop.f32.mrb[0].mxu0
        %v1884 = vadd.f32 0.0, %v1883
        %v1885 = vpop.f32.mrb[0].mxu0
        %v1886 = vpop.f32.mrb[0].mxu0
        %v1887 = vadd.f32 0.0, %v1886
        %v1888 = vpop.f32.mrb[0].mxu0
        %1889 = vmatprep.mubr.bf16.mxu0 0
        %1890 = vmatmul.mubr.bf16.gmra.mrb[0].mxu0 %v1785
        %v1891 = vpop.f32.mrb[0].mxu0
        %v1892 = vadd.f32 0.0, %v1891
        %v1893 = vpop.f32.mrb[0].mxu0
        %v1894 = vpop.f32.mrb[0].mxu0
        %v1895 = vadd.f32 0.0, %v1894
        %v1896 = vpop.f32.mrb[0].mxu0
        %1897 = vmatprep.mubr.bf16.mxu0 0
        %1898 = vmatmul.mubr.bf16.gmra.mrb[0].mxu0 %v1786
        %v1899 = vpop.f32.mrb[0].mxu0
        %v1900 = vadd.f32 0.0, %v1899
        %v1901 = vpop.f32.mrb[0].mxu0
        %v1902 = vpop.f32.mrb[0].mxu0
        %v1903 = vadd.f32 0.0, %v1902
        %v1904 = vpop.f32.mrb[0].mxu0
        %1905 = vmatprep.mubr.bf16.mxu0 0
        %1906 = vmatmul.mubr.bf16.gmra.mrb[0].mxu0 %v1787
        %v1907 = vpop.f32.mrb[0].mxu0
        %v1908 = vadd.f32 0.0, %v1907
        %v1909 = vpop.f32.mrb[0].mxu0
        %v1910 = vpop.f32.mrb[0].mxu0
        %v1911 = vadd.f32 0.0, %v1910
        %v1912 = vpop.f32.mrb[0].mxu0
        %1913 = vmatprep.mubr.bf16.mxu0 0
        %1914 = vmatmul.mubr.bf16.gmra.mrb[0].mxu0 %v1788
        %v1915 = vpop.f32.mrb[0].mxu0
        %v1916 = vadd.f32 0.0, %v1915
        %v1917 = vpop.f32.mrb[0].mxu0
        %v1918 = vpop.f32.mrb[0].mxu0
        %v1919 = vadd.f32 0.0, %v1918
        %v1920 = vpop.f32.mrb[0].mxu0
        %1921 = vmatprep.mubr.bf16.mxu0 0
        %1922 = vmatmul.mubr.bf16.gmra.mrb[0].mxu0 %v1789
        %v1923 = vpop.f32.mrb[0].mxu0
        %v1924 = vadd.f32 0.0, %v1923
        %v1925 = vpop.f32.mrb[0].mxu0
        %v1926 = vpop.f32.mrb[0].mxu0
        %v1927 = vadd.f32 0.0, %v1926
        %v1928 = vpop.f32.mrb[0].mxu0
        %1929 = vmatprep.mubr.bf16.mxu0 0
        %1930 = vmatmul.mubr.bf16.gmra.mrb[0].mxu0 %v1790
        %v1931 = vpop.f32.mrb[0].mxu0
        %v1932 = vadd.f32 0.0, %v1931
        %v1933 = vpop.f32.mrb[0].mxu0
        %v1934 = vpop.f32.mrb[0].mxu0
        %v1935 = vadd.f32 0.0, %v1934
        %v1936 = vpop.f32.mrb[0].mxu0
        %1937 = vmatprep.mubr.bf16.mxu0 0
        %1938 = vmatmul.mubr.bf16.gmra.mrb[0].mxu0 %v1791
        %v1939 = vpop.f32.mrb[0].mxu0
        %v1940 = vadd.f32 0.0, %v1939
        %v1941 = vpop.f32.mrb[0].mxu0
        %v1942 = vpop.f32.mrb[0].mxu0
        %v1943 = vadd.f32 0.0, %v1942
        %v1944 = vpop.f32.mrb[0].mxu0
        %1945 = vmatprep.mubr.bf16.mxu0 0
        %1946 = vmatmul.mubr.bf16.gmra.mrb[0].mxu0 %v1792
        %v1947 = vpop.f32.mrb[0].mxu0
        %v1948 = vadd.f32 0.0, %v1947
        %v1949 = vpop.f32.mrb[0].mxu0
        %v1950 = vpop.f32.mrb[0].mxu0
        %v1951 = vadd.f32 0.0, %v1950
        %v1952 = vpop.f32.mrb[0].mxu0
        %1953 = vdwg.mxu0
        %v1954 = vmul.f32 %v1828, %v1745
        %v1955 = vmul.f32 %v1831, %v1746
        %v1956 = vmul.f32 %v1836, %v1747
        %v1957 = vmul.f32 %v1839, %v1748
        %v1958 = vmul.f32 %v1844, %v1749
        %v1959 = vmul.f32 %v1847, %v1750
        %v1960 = vmul.f32 %v1852, %v1751
        %v1961 = vmul.f32 %v1855, %v1752
        %v1962 = vmul.f32 %v1860, %v1753
        %v1963 = vmul.f32 %v1863, %v1754
        %v1964 = vmul.f32 %v1868, %v1755
        %v1965 = vmul.f32 %v1871, %v1756
        %v1966 = vmul.f32 %v1876, %v1757
        %v1967 = vmul.f32 %v1879, %v1758
        %v1968 = vmul.f32 %v1884, %v1759
        %v1969 = vmul.f32 %v1887, %v1760
        %v1970 = vmul.f32 %v1892, %v1761
        %v1971 = vmul.f32 %v1895, %v1762
        %v1972 = vmul.f32 %v1900, %v1763
        %v1973 = vmul.f32 %v1903, %v1764
        %v1974 = vmul.f32 %v1908, %v1765
        %v1975 = vmul.f32 %v1911, %v1766
        %v1976 = vmul.f32 %v1916, %v1767
        %v1977 = vmul.f32 %v1919, %v1768
        %v1978 = vmul.f32 %v1924, %v1769
        %v1979 = vmul.f32 %v1927, %v1770
        %v1980 = vmul.f32 %v1932, %v1771
        %v1981 = vmul.f32 %v1935, %v1772
        %v1982 = vmul.f32 %v1940, %v1773
        %v1983 = vmul.f32 %v1943, %v1774
        %v1984 = vmul.f32 %v1948, %v1775
        %v1985 = vmul.f32 %v1951, %v1776
        %v1986 = vpack.c.bf16 %v1955, %v1954
        %v1987 = vpack.c.bf16 %v1957, %v1956
        %v1988 = vpack.c.bf16 %v1959, %v1958
        %v1989 = vpack.c.bf16 %v1961, %v1960
        %v1990 = vpack.c.bf16 %v1963, %v1962
        %v1991 = vpack.c.bf16 %v1965, %v1964
        %v1992 = vpack.c.bf16 %v1967, %v1966
        %v1993 = vpack.c.bf16 %v1969, %v1968
        %v1994 = vpack.c.bf16 %v1971, %v1970
        %v1995 = vpack.c.bf16 %v1973, %v1972
        %v1996 = vpack.c.bf16 %v1975, %v1974
        %v1997 = vpack.c.bf16 %v1977, %v1976
        %v1998 = vpack.c.bf16 %v1979, %v1978
        %v1999 = vpack.c.bf16 %v1981, %v1980
        %v2000 = vpack.c.bf16 %v1983, %v1982
        %v2001 = vpack.c.bf16 %v1985, %v1984
        %v2002 = vld [vmem:[#allocation8] sm:$0xf]
        %v2003 = vld [vmem:[#allocation8 + $0x4] sm:$0xf]
        %v2004 = vld [vmem:[#allocation8 + $0x8] sm:$0xf]
        %v2005 = vld [vmem:[#allocation8 + $0xc] sm:$0xf]
        %v2006 = vld [vmem:[#allocation8 + $0x10] sm:$0xf]
        %v2007 = vld [vmem:[#allocation8 + $0x14] sm:$0xf]
        %v2008 = vld [vmem:[#allocation8 + $0x18] sm:$0xf]
        %v2009 = vld [vmem:[#allocation8 + $0x1c] sm:$0xf]
        %v2010 = vld [vmem:[#allocation8 + $0x20] sm:$0xf]
        %v2011 = vld [vmem:[#allocation8 + $0x24] sm:$0xf]
        %v2012 = vld [vmem:[#allocation8 + $0x28] sm:$0xf]
        %v2013 = vld [vmem:[#allocation8 + $0x2c] sm:$0xf]
        %v2014 = vld [vmem:[#allocation8 + $0x30] sm:$0xf]
        %v2015 = vld [vmem:[#allocation8 + $0x34] sm:$0xf]
        %v2016 = vld [vmem:[#allocation8 + $0x38] sm:$0xf]
        %v2017 = vld [vmem:[#allocation8 + $0x3c] sm:$0xf]
        %v2018 = vld [vmem:[%s8] sm:$0x1]
        %v2020 = vlaneseq
        %v2021 = vshrl.u32 %v2020, 7
        %v2022 = vsub.s32 0, %v2021
        %v2023 = vrot.slane %v2018, %v2022
        %v2041 = vunpack.c.l.b16 %v2002
        %v2042 = vunpack.c.l.b16 %v2003
        %v2043 = vunpack.c.l.b16 %v2004
        %v2044 = vunpack.c.l.b16 %v2005
        %v2045 = vunpack.c.l.b16 %v2006
        %v2046 = vunpack.c.l.b16 %v2007
        %v2047 = vunpack.c.l.b16 %v2008
        %v2048 = vunpack.c.l.b16 %v2009
        %v2049 = vunpack.c.l.b16 %v2010
        %v2050 = vunpack.c.l.b16 %v2011
        %v2051 = vunpack.c.l.b16 %v2012
        %v2052 = vunpack.c.l.b16 %v2013
        %v2053 = vunpack.c.l.b16 %v2014
        %v2054 = vunpack.c.l.b16 %v2015
        %v2055 = vunpack.c.l.b16 %v2016
        %v2056 = vunpack.c.l.b16 %v2017
        %v2057 = vpack.c.b16 %v2042, %v2041
        %v2058 = vpack.c.b16 %v2044, %v2043
        %v2059 = vpack.c.b16 %v2046, %v2045
        %v2060 = vpack.c.b16 %v2048, %v2047
        %v2061 = vpack.c.b16 %v2050, %v2049
        %v2062 = vpack.c.b16 %v2052, %v2051
        %v2063 = vpack.c.b16 %v2054, %v2053
        %v2064 = vpack.c.b16 %v2056, %v2055
        %2073 = vmatprep.subr.bf16.mxu0 0
        %2074 = vmatpush1.bf16.msra.mxu0 %v2057
        %2075 = vmatprep.subr.bf16.mxu0 0
        %2076 = vmatpush1.bf16.msra.mxu0 %v2058
        %2077 = vmatprep.subr.bf16.mxu0 0
        %2078 = vmatpush1.bf16.msra.mxu0 %v2059
        %2079 = vmatprep.subr.bf16.mxu0 0
        %2080 = vmatpush1.bf16.msra.mxu0 %v2060
        %2081 = vmatprep.subr.bf16.mxu0 0
        %2082 = vmatpush1.bf16.msra.mxu0 %v2061
        %2083 = vmatprep.subr.bf16.mxu0 0
        %2084 = vmatpush1.bf16.msra.mxu0 %v2062
        %2085 = vmatprep.subr.bf16.mxu0 0
        %2086 = vmatpush1.bf16.msra.mxu0 %v2063
        %2087 = vmatprep.subr.bf16.mxu0 0
        %2088 = vmatpush1.bf16.msra.mxu0 %v2064
        %2089 = vmatprep.subr.bf16.mxu0 0
        %2090 = vmatpush1.bf16.msra.mxu0 0
        %2091 = vmatprep.subr.bf16.mxu0 0
        %2092 = vmatpush1.bf16.msra.mxu0 0
        %2093 = vmatprep.subr.bf16.mxu0 0
        %2094 = vmatpush1.bf16.msra.mxu0 0
        %2095 = vmatprep.subr.bf16.mxu0 0
        %2096 = vmatpush1.bf16.msra.mxu0 0
        %2097 = vmatprep.subr.bf16.mxu0 0
        %2098 = vmatpush1.bf16.msra.mxu0 0
        %2099 = vmatprep.subr.bf16.mxu0 0
        %2100 = vmatpush1.bf16.msra.mxu0 0
        %2101 = vmatprep.subr.bf16.mxu0 0
        %2102 = vmatpush1.bf16.msra.mxu0 0
        %2103 = vmatprep.subr.bf16.mxu0 0
        %2104 = vmatpush1.bf16.msra.mxu0 0
        %2105 = vmatprep.mubr.bf16.mxu0 0
        %2106 = vmatmul.mubr.bf16.gmra.mrb[0].mxu0 %v1986
        %v2107 = vpop.f32.mrb[0].mxu0
        %v2108 = vadd.f32 %v2023, %v2107
        %v2109 = vpop.f32.mrb[0].mxu0
        %v2110 = vpop.f32.mrb[0].mxu0
        %v2111 = vadd.f32 %v2023, %v2110
        %v2112 = vpop.f32.mrb[0].mxu0
        %2113 = vmatprep.mubr.bf16.mxu0 0
        %2114 = vmatmul.mubr.bf16.gmra.mrb[0].mxu0 %v1987
        %v2115 = vpop.f32.mrb[0].mxu0
        %v2116 = vadd.f32 %v2023, %v2115
        %v2117 = vpop.f32.mrb[0].mxu0
        %v2118 = vpop.f32.mrb[0].mxu0
        %v2119 = vadd.f32 %v2023, %v2118
        %v2120 = vpop.f32.mrb[0].mxu0
        %2121 = vmatprep.mubr.bf16.mxu0 0
        %2122 = vmatmul.mubr.bf16.gmra.mrb[0].mxu0 %v1988
        %v2123 = vpop.f32.mrb[0].mxu0
        %v2124 = vadd.f32 %v2023, %v2123
        %v2125 = vpop.f32.mrb[0].mxu0
        %v2126 = vpop.f32.mrb[0].mxu0
        %v2127 = vadd.f32 %v2023, %v2126
        %v2128 = vpop.f32.mrb[0].mxu0
        %2129 = vmatprep.mubr.bf16.mxu0 0
        %2130 = vmatmul.mubr.bf16.gmra.mrb[0].mxu0 %v1989
        %v2131 = vpop.f32.mrb[0].mxu0
        %v2132 = vadd.f32 %v2023, %v2131
        %v2133 = vpop.f32.mrb[0].mxu0
        %v2134 = vpop.f32.mrb[0].mxu0
        %v2135 = vadd.f32 %v2023, %v2134
        %v2136 = vpop.f32.mrb[0].mxu0
        %2137 = vmatprep.mubr.bf16.mxu0 0
        %2138 = vmatmul.mubr.bf16.gmra.mrb[0].mxu0 %v1990
        %v2139 = vpop.f32.mrb[0].mxu0
        %v2140 = vadd.f32 %v2023, %v2139
        %v2141 = vpop.f32.mrb[0].mxu0
        %v2142 = vpop.f32.mrb[0].mxu0
        %v2143 = vadd.f32 %v2023, %v2142
        %v2144 = vpop.f32.mrb[0].mxu0
        %2145 = vmatprep.mubr.bf16.mxu0 0
        %2146 = vmatmul.mubr.bf16.gmra.mrb[0].mxu0 %v1991
        %v2147 = vpop.f32.mrb[0].mxu0
        %v2148 = vadd.f32 %v2023, %v2147
        %v2149 = vpop.f32.mrb[0].mxu0
        %v2150 = vpop.f32.mrb[0].mxu0
        %v2151 = vadd.f32 %v2023, %v2150
        %v2152 = vpop.f32.mrb[0].mxu0
        %2153 = vmatprep.mubr.bf16.mxu0 0
        %2154 = vmatmul.mubr.bf16.gmra.mrb[0].mxu0 %v1992
        %v2155 = vpop.f32.mrb[0].mxu0
        %v2156 = vadd.f32 %v2023, %v2155
        %v2157 = vpop.f32.mrb[0].mxu0
        %v2158 = vpop.f32.mrb[0].mxu0
        %v2159 = vadd.f32 %v2023, %v2158
        %v2160 = vpop.f32.mrb[0].mxu0
        %2161 = vmatprep.mubr.bf16.mxu0 0
        %2162 = vmatmul.mubr.bf16.gmra.mrb[0].mxu0 %v1993
        %v2163 = vpop.f32.mrb[0].mxu0
        %v2164 = vadd.f32 %v2023, %v2163
        %v2165 = vpop.f32.mrb[0].mxu0
        %v2166 = vpop.f32.mrb[0].mxu0
        %v2167 = vadd.f32 %v2023, %v2166
        %v2168 = vpop.f32.mrb[0].mxu0
        %2169 = vmatprep.mubr.bf16.mxu0 0
        %2170 = vmatmul.mubr.bf16.gmra.mrb[0].mxu0 %v1994
        %v2171 = vpop.f32.mrb[0].mxu0
        %v2172 = vadd.f32 %v2023, %v2171
        %v2173 = vpop.f32.mrb[0].mxu0
        %v2174 = vpop.f32.mrb[0].mxu0
        %v2175 = vadd.f32 %v2023, %v2174
        %v2176 = vpop.f32.mrb[0].mxu0
        %2177 = vmatprep.mubr.bf16.mxu0 0
        %2178 = vmatmul.mubr.bf16.gmra.mrb[0].mxu0 %v1995
        %v2179 = vpop.f32.mrb[0].mxu0
        %v2180 = vadd.f32 %v2023, %v2179
        %v2181 = vpop.f32.mrb[0].mxu0
        %v2182 = vpop.f32.mrb[0].mxu0
        %v2183 = vadd.f32 %v2023, %v2182
        %v2184 = vpop.f32.mrb[0].mxu0
        %2185 = vmatprep.mubr.bf16.mxu0 0
        %2186 = vmatmul.mubr.bf16.gmra.mrb[0].mxu0 %v1996
        %v2187 = vpop.f32.mrb[0].mxu0
        %v2188 = vadd.f32 %v2023, %v2187
        %v2189 = vpop.f32.mrb[0].mxu0
        %v2190 = vpop.f32.mrb[0].mxu0
        %v2191 = vadd.f32 %v2023, %v2190
        %v2192 = vpop.f32.mrb[0].mxu0
        %2193 = vmatprep.mubr.bf16.mxu0 0
        %2194 = vmatmul.mubr.bf16.gmra.mrb[0].mxu0 %v1997
        %v2195 = vpop.f32.mrb[0].mxu0
        %v2196 = vadd.f32 %v2023, %v2195
        %v2197 = vpop.f32.mrb[0].mxu0
        %v2198 = vpop.f32.mrb[0].mxu0
        %v2199 = vadd.f32 %v2023, %v2198
        %v2200 = vpop.f32.mrb[0].mxu0
        %2201 = vmatprep.mubr.bf16.mxu0 0
        %2202 = vmatmul.mubr.bf16.gmra.mrb[0].mxu0 %v1998
        %v2203 = vpop.f32.mrb[0].mxu0
        %v2204 = vadd.f32 %v2023, %v2203
        %v2205 = vpop.f32.mrb[0].mxu0
        %v2206 = vpop.f32.mrb[0].mxu0
        %v2207 = vadd.f32 %v2023, %v2206
        %v2208 = vpop.f32.mrb[0].mxu0
        %2209 = vmatprep.mubr.bf16.mxu0 0
        %2210 = vmatmul.mubr.bf16.gmra.mrb[0].mxu0 %v1999
        %v2211 = vpop.f32.mrb[0].mxu0
        %v2212 = vadd.f32 %v2023, %v2211
        %v2213 = vpop.f32.mrb[0].mxu0
        %v2214 = vpop.f32.mrb[0].mxu0
        %v2215 = vadd.f32 %v2023, %v2214
        %v2216 = vpop.f32.mrb[0].mxu0
        %2217 = vmatprep.mubr.bf16.mxu0 0
        %2218 = vmatmul.mubr.bf16.gmra.mrb[0].mxu0 %v2000
        %v2219 = vpop.f32.mrb[0].mxu0
        %v2220 = vadd.f32 %v2023, %v2219
        %v2221 = vpop.f32.mrb[0].mxu0
        %v2222 = vpop.f32.mrb[0].mxu0
        %v2223 = vadd.f32 %v2023, %v2222
        %v2224 = vpop.f32.mrb[0].mxu0
        %2225 = vmatprep.mubr.bf16.mxu0 0
        %2226 = vmatmul.mubr.bf16.gmra.mrb[0].mxu0 %v2001
        %v2227 = vpop.f32.mrb[0].mxu0
        %v2228 = vadd.f32 %v2023, %v2227
        %v2229 = vpop.f32.mrb[0].mxu0
        %v2230 = vpop.f32.mrb[0].mxu0
        %v2231 = vadd.f32 %v2023, %v2230
        %v2232 = vpop.f32.mrb[0].mxu0
        %2233 = vdwg.mxu0
        %v2234 = vpack.c.bf16 %v2111, %v2108
        %v2235 = vpack.c.bf16 %v2119, %v2116
        %v2236 = vpack.c.bf16 %v2127, %v2124
        %v2237 = vpack.c.bf16 %v2135, %v2132
        %v2238 = vpack.c.bf16 %v2143, %v2140
        %v2239 = vpack.c.bf16 %v2151, %v2148
        %v2240 = vpack.c.bf16 %v2159, %v2156
        %v2241 = vpack.c.bf16 %v2167, %v2164
        %v2242 = vpack.c.bf16 %v2175, %v2172
        %v2243 = vpack.c.bf16 %v2183, %v2180
        %v2244 = vpack.c.bf16 %v2191, %v2188
        %v2245 = vpack.c.bf16 %v2199, %v2196
        %v2246 = vpack.c.bf16 %v2207, %v2204
        %v2247 = vpack.c.bf16 %v2215, %v2212
        %v2248 = vpack.c.bf16 %v2223, %v2220
        %v2249 = vpack.c.bf16 %v2231, %v2228
        %v2250 = vld [vmem:[#allocation10] sm:$0xf]
        %v2251 = vld [vmem:[#allocation10 + $0x4] sm:$0xf]
        %v2252 = vld [vmem:[#allocation10 + $0x8] sm:$0xf]
        %v2253 = vld [vmem:[#allocation10 + $0xc] sm:$0xf]
        %v2254 = vld [vmem:[#allocation10 + $0x10] sm:$0xf]
        %v2255 = vld [vmem:[#allocation10 + $0x14] sm:$0xf]
        %v2256 = vld [vmem:[#allocation10 + $0x18] sm:$0xf]
        %v2257 = vld [vmem:[#allocation10 + $0x1c] sm:$0xf]
        %v2258 = vld [vmem:[#allocation10 + $0x20] sm:$0xf]
        %v2259 = vld [vmem:[#allocation10 + $0x24] sm:$0xf]
        %v2260 = vld [vmem:[#allocation10 + $0x28] sm:$0xf]
        %v2261 = vld [vmem:[#allocation10 + $0x2c] sm:$0xf]
        %v2262 = vld [vmem:[#allocation10 + $0x30] sm:$0xf]
        %v2263 = vld [vmem:[#allocation10 + $0x34] sm:$0xf]
        %v2264 = vld [vmem:[#allocation10 + $0x38] sm:$0xf]
        %v2265 = vld [vmem:[#allocation10 + $0x3c] sm:$0xf]
        %v2266 = vld [vmem:[#allocation10 + $0x40] sm:$0xf]
        %v2267 = vld [vmem:[#allocation10 + $0x44] sm:$0xf]
        %v2268 = vld [vmem:[#allocation10 + $0x48] sm:$0xf]
        %v2269 = vld [vmem:[#allocation10 + $0x4c] sm:$0xf]
        %v2270 = vld [vmem:[#allocation10 + $0x50] sm:$0xf]
        %v2271 = vld [vmem:[#allocation10 + $0x54] sm:$0xf]
        %v2272 = vld [vmem:[#allocation10 + $0x58] sm:$0xf]
        %v2273 = vld [vmem:[#allocation10 + $0x5c] sm:$0xf]
        %v2274 = vld [vmem:[#allocation10 + $0x60] sm:$0xf]
        %v2275 = vld [vmem:[#allocation10 + $0x64] sm:$0xf]
        %v2276 = vld [vmem:[#allocation10 + $0x68] sm:$0xf]
        %v2277 = vld [vmem:[#allocation10 + $0x6c] sm:$0xf]
        %v2278 = vld [vmem:[#allocation10 + $0x70] sm:$0xf]
        %v2279 = vld [vmem:[#allocation10 + $0x74] sm:$0xf]
        %v2280 = vld [vmem:[#allocation10 + $0x78] sm:$0xf]
        %v2281 = vld [vmem:[#allocation10 + $0x7c] sm:$0xf]
        %v2282 = vld [vmem:[%s10] sm:$0x1]
        %v2284 = vlaneseq
        %v2285 = vshrl.u32 %v2284, 7
        %v2286 = vsub.s32 0, %v2285
        %v2287 = vrot.slane %v2282, %v2286
        %v2321 = vunpack.c.l.b16 %v2250
        %v2322 = vunpack.c.l.b16 %v2251
        %v2323 = vunpack.c.l.b16 %v2252
        %v2324 = vunpack.c.l.b16 %v2253
        %v2325 = vunpack.c.l.b16 %v2254
        %v2326 = vunpack.c.l.b16 %v2255
        %v2327 = vunpack.c.l.b16 %v2256
        %v2328 = vunpack.c.l.b16 %v2257
        %v2329 = vunpack.c.l.b16 %v2258
        %v2330 = vunpack.c.l.b16 %v2259
        %v2331 = vunpack.c.l.b16 %v2260
        %v2332 = vunpack.c.l.b16 %v2261
        %v2333 = vunpack.c.l.b16 %v2262
        %v2334 = vunpack.c.l.b16 %v2263
        %v2335 = vunpack.c.l.b16 %v2264
        %v2336 = vunpack.c.l.b16 %v2265
        %v2337 = vunpack.c.l.b16 %v2266
        %v2338 = vunpack.c.l.b16 %v2267
        %v2339 = vunpack.c.l.b16 %v2268
        %v2340 = vunpack.c.l.b16 %v2269
        %v2341 = vunpack.c.l.b16 %v2270
        %v2342 = vunpack.c.l.b16 %v2271
        %v2343 = vunpack.c.l.b16 %v2272
        %v2344 = vunpack.c.l.b16 %v2273
        %v2345 = vunpack.c.l.b16 %v2274
        %v2346 = vunpack.c.l.b16 %v2275
        %v2347 = vunpack.c.l.b16 %v2276
        %v2348 = vunpack.c.l.b16 %v2277
        %v2349 = vunpack.c.l.b16 %v2278
        %v2350 = vunpack.c.l.b16 %v2279
        %v2351 = vunpack.c.l.b16 %v2280
        %v2352 = vunpack.c.l.b16 %v2281
        %v2353 = vpack.c.b16 %v2322, %v2321
        %v2354 = vpack.c.b16 %v2324, %v2323
        %v2355 = vpack.c.b16 %v2326, %v2325
        %v2356 = vpack.c.b16 %v2328, %v2327
        %v2357 = vpack.c.b16 %v2330, %v2329
        %v2358 = vpack.c.b16 %v2332, %v2331
        %v2359 = vpack.c.b16 %v2334, %v2333
        %v2360 = vpack.c.b16 %v2336, %v2335
        %v2361 = vpack.c.b16 %v2338, %v2337
        %v2362 = vpack.c.b16 %v2340, %v2339
        %v2363 = vpack.c.b16 %v2342, %v2341
        %v2364 = vpack.c.b16 %v2344, %v2343
        %v2365 = vpack.c.b16 %v2346, %v2345
        %v2366 = vpack.c.b16 %v2348, %v2347
        %v2367 = vpack.c.b16 %v2350, %v2349
        %v2368 = vpack.c.b16 %v2352, %v2351
        %2385 = vmatprep.subr.bf16.mxu0 0
        %2386 = vmatpush1.bf16.msra.mxu0 %v2353
        %2387 = vmatprep.subr.bf16.mxu0 0
        %2388 = vmatpush1.bf16.msra.mxu0 %v2354
        %2389 = vmatprep.subr.bf16.mxu0 0
        %2390 = vmatpush1.bf16.msra.mxu0 %v2355
        %2391 = vmatprep.subr.bf16.mxu0 0
        %2392 = vmatpush1.bf16.msra.mxu0 %v2356
        %2393 = vmatprep.subr.bf16.mxu0 0
        %2394 = vmatpush1.bf16.msra.mxu0 %v2357
        %2395 = vmatprep.subr.bf16.mxu0 0
        %2396 = vmatpush1.bf16.msra.mxu0 %v2358
        %2397 = vmatprep.subr.bf16.mxu0 0
        %2398 = vmatpush1.bf16.msra.mxu0 %v2359
        %2399 = vmatprep.subr.bf16.mxu0 0
        %2400 = vmatpush1.bf16.msra.mxu0 %v2360
        %2401 = vmatprep.subr.bf16.mxu0 0
        %2402 = vmatpush1.bf16.msra.mxu0 %v2361
        %2403 = vmatprep.subr.bf16.mxu0 0
        %2404 = vmatpush1.bf16.msra.mxu0 %v2362
        %2405 = vmatprep.subr.bf16.mxu0 0
        %2406 = vmatpush1.bf16.msra.mxu0 %v2363
        %2407 = vmatprep.subr.bf16.mxu0 0
        %2408 = vmatpush1.bf16.msra.mxu0 %v2364
        %2409 = vmatprep.subr.bf16.mxu0 0
        %2410 = vmatpush1.bf16.msra.mxu0 %v2365
        %2411 = vmatprep.subr.bf16.mxu0 0
        %2412 = vmatpush1.bf16.msra.mxu0 %v2366
        %2413 = vmatprep.subr.bf16.mxu0 0
        %2414 = vmatpush1.bf16.msra.mxu0 %v2367
        %2415 = vmatprep.subr.bf16.mxu0 0
        %2416 = vmatpush1.bf16.msra.mxu0 %v2368
        %2417 = vmatprep.mubr.bf16.mxu0 %v2234
        %2418 = vmatmul.mubr.bf16.gmra.mrb[0].mxu0 %v1273
        %v2419 = vpop.f32.mrb[0].mxu0
        %v2420 = vadd.f32 %v2287, %v2419
        %v2421 = vpop.f32.mrb[0].mxu0
        %v2422 = vpop.f32.mrb[0].mxu0
        %v2423 = vadd.f32 %v2287, %v2422
        %v2424 = vpop.f32.mrb[0].mxu0
        %2425 = vmatprep.mubr.bf16.mxu0 %v2235
        %2426 = vmatmul.mubr.bf16.gmra.mrb[0].mxu0 %v1274
        %v2427 = vpop.f32.mrb[0].mxu0
        %v2428 = vadd.f32 %v2287, %v2427
        %v2429 = vpop.f32.mrb[0].mxu0
        %v2430 = vpop.f32.mrb[0].mxu0
        %v2431 = vadd.f32 %v2287, %v2430
        %v2432 = vpop.f32.mrb[0].mxu0
        %2433 = vmatprep.mubr.bf16.mxu0 %v2236
        %2434 = vmatmul.mubr.bf16.gmra.mrb[0].mxu0 %v1275
        %v2435 = vpop.f32.mrb[0].mxu0
        %v2436 = vadd.f32 %v2287, %v2435
        %v2437 = vpop.f32.mrb[0].mxu0
        %v2438 = vpop.f32.mrb[0].mxu0
        %v2439 = vadd.f32 %v2287, %v2438
        %v2440 = vpop.f32.mrb[0].mxu0
        %2441 = vmatprep.mubr.bf16.mxu0 %v2237
        %2442 = vmatmul.mubr.bf16.gmra.mrb[0].mxu0 %v1276
        %v2443 = vpop.f32.mrb[0].mxu0
        %v2444 = vadd.f32 %v2287, %v2443
        %v2445 = vpop.f32.mrb[0].mxu0
        %v2446 = vpop.f32.mrb[0].mxu0
        %v2447 = vadd.f32 %v2287, %v2446
        %v2448 = vpop.f32.mrb[0].mxu0
        %2449 = vmatprep.mubr.bf16.mxu0 %v2238
        %2450 = vmatmul.mubr.bf16.gmra.mrb[0].mxu0 %v1277
        %v2451 = vpop.f32.mrb[0].mxu0
        %v2452 = vadd.f32 %v2287, %v2451
        %v2453 = vpop.f32.mrb[0].mxu0
        %v2454 = vpop.f32.mrb[0].mxu0
        %v2455 = vadd.f32 %v2287, %v2454
        %v2456 = vpop.f32.mrb[0].mxu0
        %2457 = vmatprep.mubr.bf16.mxu0 %v2239
        %2458 = vmatmul.mubr.bf16.gmra.mrb[0].mxu0 %v1278
        %v2459 = vpop.f32.mrb[0].mxu0
        %v2460 = vadd.f32 %v2287, %v2459
        %v2461 = vpop.f32.mrb[0].mxu0
        %v2462 = vpop.f32.mrb[0].mxu0
        %v2463 = vadd.f32 %v2287, %v2462
        %v2464 = vpop.f32.mrb[0].mxu0
        %2465 = vmatprep.mubr.bf16.mxu0 %v2240
        %2466 = vmatmul.mubr.bf16.gmra.mrb[0].mxu0 %v1279
        %v2467 = vpop.f32.mrb[0].mxu0
        %v2468 = vadd.f32 %v2287, %v2467
        %v2469 = vpop.f32.mrb[0].mxu0
        %v2470 = vpop.f32.mrb[0].mxu0
        %v2471 = vadd.f32 %v2287, %v2470
        %v2472 = vpop.f32.mrb[0].mxu0
        %2473 = vmatprep.mubr.bf16.mxu0 %v2241
        %2474 = vmatmul.mubr.bf16.gmra.mrb[0].mxu0 %v1280
        %v2475 = vpop.f32.mrb[0].mxu0
        %v2476 = vadd.f32 %v2287, %v2475
        %v2477 = vpop.f32.mrb[0].mxu0
        %v2478 = vpop.f32.mrb[0].mxu0
        %v2479 = vadd.f32 %v2287, %v2478
        %v2480 = vpop.f32.mrb[0].mxu0
        %2481 = vmatprep.mubr.bf16.mxu0 %v2242
        %2482 = vmatmul.mubr.bf16.gmra.mrb[0].mxu0 %v1281
        %v2483 = vpop.f32.mrb[0].mxu0
        %v2484 = vadd.f32 %v2287, %v2483
        %v2485 = vpop.f32.mrb[0].mxu0
        %v2486 = vpop.f32.mrb[0].mxu0
        %v2487 = vadd.f32 %v2287, %v2486
        %v2488 = vpop.f32.mrb[0].mxu0
        %2489 = vmatprep.mubr.bf16.mxu0 %v2243
        %2490 = vmatmul.mubr.bf16.gmra.mrb[0].mxu0 %v1282
        %v2491 = vpop.f32.mrb[0].mxu0
        %v2492 = vadd.f32 %v2287, %v2491
        %v2493 = vpop.f32.mrb[0].mxu0
        %v2494 = vpop.f32.mrb[0].mxu0
        %v2495 = vadd.f32 %v2287, %v2494
        %v2496 = vpop.f32.mrb[0].mxu0
        %2497 = vmatprep.mubr.bf16.mxu0 %v2244
        %2498 = vmatmul.mubr.bf16.gmra.mrb[0].mxu0 %v1283
        %v2499 = vpop.f32.mrb[0].mxu0
        %v2500 = vadd.f32 %v2287, %v2499
        %v2501 = vpop.f32.mrb[0].mxu0
        %v2502 = vpop.f32.mrb[0].mxu0
        %v2503 = vadd.f32 %v2287, %v2502
        %v2504 = vpop.f32.mrb[0].mxu0
        %2505 = vmatprep.mubr.bf16.mxu0 %v2245
        %2506 = vmatmul.mubr.bf16.gmra.mrb[0].mxu0 %v1284
        %v2507 = vpop.f32.mrb[0].mxu0
        %v2508 = vadd.f32 %v2287, %v2507
        %v2509 = vpop.f32.mrb[0].mxu0
        %v2510 = vpop.f32.mrb[0].mxu0
        %v2511 = vadd.f32 %v2287, %v2510
        %v2512 = vpop.f32.mrb[0].mxu0
        %2513 = vmatprep.mubr.bf16.mxu0 %v2246
        %2514 = vmatmul.mubr.bf16.gmra.mrb[0].mxu0 %v1285
        %v2515 = vpop.f32.mrb[0].mxu0
        %v2516 = vadd.f32 %v2287, %v2515
        %v2517 = vpop.f32.mrb[0].mxu0
        %v2518 = vpop.f32.mrb[0].mxu0
        %v2519 = vadd.f32 %v2287, %v2518
        %v2520 = vpop.f32.mrb[0].mxu0
        %2521 = vmatprep.mubr.bf16.mxu0 %v2247
        %2522 = vmatmul.mubr.bf16.gmra.mrb[0].mxu0 %v1286
        %v2523 = vpop.f32.mrb[0].mxu0
        %v2524 = vadd.f32 %v2287, %v2523
        %v2525 = vpop.f32.mrb[0].mxu0
        %v2526 = vpop.f32.mrb[0].mxu0
        %v2527 = vadd.f32 %v2287, %v2526
        %v2528 = vpop.f32.mrb[0].mxu0
        %2529 = vmatprep.mubr.bf16.mxu0 %v2248
        %2530 = vmatmul.mubr.bf16.gmra.mrb[0].mxu0 %v1287
        %v2531 = vpop.f32.mrb[0].mxu0
        %v2532 = vadd.f32 %v2287, %v2531
        %v2533 = vpop.f32.mrb[0].mxu0
        %v2534 = vpop.f32.mrb[0].mxu0
        %v2535 = vadd.f32 %v2287, %v2534
        %v2536 = vpop.f32.mrb[0].mxu0
        %2537 = vmatprep.mubr.bf16.mxu0 %v2249
        %2538 = vmatmul.mubr.bf16.gmra.mrb[0].mxu0 %v1288
        %v2539 = vpop.f32.mrb[0].mxu0
        %v2540 = vadd.f32 %v2287, %v2539
        %v2541 = vpop.f32.mrb[0].mxu0
        %v2542 = vpop.f32.mrb[0].mxu0
        %v2543 = vadd.f32 %v2287, %v2542
        %v2544 = vpop.f32.mrb[0].mxu0
        %2545 = vdwg.mxu0
        %v2546 = vadd.f32 %v2420, %v993
        %v2547 = vadd.f32 %v2423, %v994
        %v2548 = vadd.f32 %v2428, %v995
        %v2549 = vadd.f32 %v2431, %v996
        %v2550 = vadd.f32 %v2436, %v997
        %v2551 = vadd.f32 %v2439, %v998
        %v2552 = vadd.f32 %v2444, %v999
        %v2553 = vadd.f32 %v2447, %v1000
        %v2554 = vadd.f32 %v2452, %v1001
        %v2555 = vadd.f32 %v2455, %v1002
        %v2556 = vadd.f32 %v2460, %v1003
        %v2557 = vadd.f32 %v2463, %v1004
        %v2558 = vadd.f32 %v2468, %v1005
        %v2559 = vadd.f32 %v2471, %v1006
        %v2560 = vadd.f32 %v2476, %v1007
        %v2561 = vadd.f32 %v2479, %v1008
        %v2562 = vadd.f32 %v2484, %v1009
        %v2563 = vadd.f32 %v2487, %v1010
        %v2564 = vadd.f32 %v2492, %v1011
        %v2565 = vadd.f32 %v2495, %v1012
        %v2566 = vadd.f32 %v2500, %v1013
        %v2567 = vadd.f32 %v2503, %v1014
        %v2568 = vadd.f32 %v2508, %v1015
        %v2569 = vadd.f32 %v2511, %v1016
        %v2570 = vadd.f32 %v2516, %v1017
        %v2571 = vadd.f32 %v2519, %v1018
        %v2572 = vadd.f32 %v2524, %v1019
        %v2573 = vadd.f32 %v2527, %v1020
        %v2574 = vadd.f32 %v2532, %v1021
        %v2575 = vadd.f32 %v2535, %v1022
        %v2576 = vadd.f32 %v2540, %v1023
        %v2577 = vadd.f32 %v2543, %v1024
        %2578 = vst [vmem:[%s462] sm:$0xff] %v2546
        %2579 = vst [vmem:[%s462 + $0x8] sm:$0xff] %v2547
        %2580 = vst [vmem:[%s462 + $0x10] sm:$0xff] %v2548
        %2581 = vst [vmem:[%s462 + $0x18] sm:$0xff] %v2549
        %2582 = vst [vmem:[%s462 + $0x20] sm:$0xff] %v2550
        %2583 = vst [vmem:[%s462 + $0x28] sm:$0xff] %v2551
        %2584 = vst [vmem:[%s462 + $0x30] sm:$0xff] %v2552
        %2585 = vst [vmem:[%s462 + $0x38] sm:$0xff] %v2553
        %2586 = vst [vmem:[%s462 + $0x40] sm:$0xff] %v2554
        %2587 = vst [vmem:[%s462 + $0x48] sm:$0xff] %v2555
        %2588 = vst [vmem:[%s462 + $0x50] sm:$0xff] %v2556
        %2589 = vst [vmem:[%s462 + $0x58] sm:$0xff] %v2557
        %2590 = vst [vmem:[%s462 + $0x60] sm:$0xff] %v2558
        %2591 = vst [vmem:[%s462 + $0x68] sm:$0xff] %v2559
        %2592 = vst [vmem:[%s462 + $0x70] sm:$0xff] %v2560
        %2593 = vst [vmem:[%s462 + $0x78] sm:$0xff] %v2561
        %2594 = vst [vmem:[%s462 + $0x80] sm:$0xff] %v2562
        %2595 = vst [vmem:[%s462 + $0x88] sm:$0xff] %v2563
        %2596 = vst [vmem:[%s462 + $0x90] sm:$0xff] %v2564
        %2597 = vst [vmem:[%s462 + $0x98] sm:$0xff] %v2565
        %2598 = vst [vmem:[%s462 + $0xa0] sm:$0xff] %v2566
        %2599 = vst [vmem:[%s462 + $0xa8] sm:$0xff] %v2567
        %2600 = vst [vmem:[%s462 + $0xb0] sm:$0xff] %v2568
        %2601 = vst [vmem:[%s462 + $0xb8] sm:$0xff] %v2569
        %2602 = vst [vmem:[%s462 + $0xc0] sm:$0xff] %v2570
        %2603 = vst [vmem:[%s462 + $0xc8] sm:$0xff] %v2571
        %2604 = vst [vmem:[%s462 + $0xd0] sm:$0xff] %v2572
        %2605 = vst [vmem:[%s462 + $0xd8] sm:$0xff] %v2573
        %2606 = vst [vmem:[%s462 + $0xe0] sm:$0xff] %v2574
        %2607 = vst [vmem:[%s462 + $0xe8] sm:$0xff] %v2575
        %2608 = vst [vmem:[%s462 + $0xf0] sm:$0xff] %v2576
        %2609 = vst [vmem:[%s462 + $0xf8] sm:$0xff] %v2577
        %s2610 = sand.u32 %s274, 1
        %s2611 = scalar_lea.sflag [#allocation4], %s2610
        %s2612 = sand.u32 %s274, 1
        %s2613 = smul.addr %s2612, 256
        %s2614 = scalar_lea.vmem [#allocation11], %s2613
        // Predicated region
        $region85: #{tpu_custom_call.1} parent=63 // pred_check
          %p2615 = pneg %p284
        $region86: #{tpu_custom_call.1} parent=63 // pred_check_branch
          %2617 = sbr.rel (%p2615) target = $region88
        $region87: #{tpu_custom_call.1} parent=63 // pred_region
          %s2618 = smul.u32 32, %s30
          %s2620 = ssub.s32 4096, 4096
          %2621 = vsyncadd %s2611, %s2620
          %s2622 = smul.addr %s2618, 128
          %s2623 = scalar_lea.hbm %s11, %s2622
          %s2624 = sshll.u32 %s2614, 4
          %s2625 = int_to_ptr.vmem [resolvable:$true] %s2624
          %2630 = dma.vmem_to_hbm [thread:$0]  %s2625, 4096, %s2623, %s2611, 128, 128, 8
        $region88: #{tpu_custom_call.1} parent=63 // pred_fallthru
          _
      $region64: #{tpu_custom_call.1} parent=5 // pred_fallthru
        _
      %p2631 = scmp.le.s32.totalorder 2, %s25
      // Predicated region
      $region89: #{tpu_custom_call.1} parent=5 // pred_check
        %p2632 = pneg %p2631
      $region90: #{tpu_custom_call.1} parent=5 // pred_check_branch
        %2634 = sbr.rel (%p2632) target = $region92
      $region91: #{tpu_custom_call.1} parent=5 // pred_region
        %s2635 = ssub.s32 %s25, 2
        // Predicated region
        $region93: #{tpu_custom_call.1} parent=91 // pred_check
          %p2636 = pneg %p290
        $region94: #{tpu_custom_call.1} parent=91 // pred_check_branch
          %2638 = sbr.rel (%p2636) target = $region96
        $region95: #{tpu_custom_call.1} parent=91 // pred_region
          %s2639 = sand.u32 %s275, 1
          %s2640 = scalar_lea.sflag [#allocation4], %s2639
          %s2641 = sand.u32 %s275, 1
          %s2642 = smul.addr %s2641, 256
          %s2643 = scalar_lea.vmem [#allocation11], %s2642
          %2644 = dma.done %s2640, 4096
        $region96: #{tpu_custom_call.1} parent=91 // pred_fallthru
          _
      $region92: #{tpu_custom_call.1} parent=5 // pred_fallthru
        _
    $region6: #{tpu_custom_call.1} parent=1 // loop_footer
      %s29 = sadd.s32 1, %s25
    $region7: #{tpu_custom_call.1} parent=1 // loop_footer_branch
      %24 = sbr.rel target = $region3
    $region8: #{tpu_custom_call.1} parent=1 // loop_exit
      _
    %2645 = vsyncpa [#allocation3], 1
    %s2646 = scalar_lea.sflag [#allocation3], 1
    %2647 = vsyncpa %s2646, 1
    %2648 = vsyncpa [#allocation6], 1
    %2649 = vsyncpa [#allocation9], 1
    %2650 = vsyncpa [#allocation4], 1
    %s2651 = scalar_lea.sflag [#allocation4], 1
    %2652 = vsyncpa %s2651, 1

// kernel: tpu_custom_call.1
$region0: #{tpu_custom_call.1}
  #allocation0 [shape = 'u32[]', space=smem, size = 0x4, offset = 0x4, fixed_abs, tag = 'smem constant byte address 0x4 - core index']
  #allocation1 [shape = 'u32[144,128]{1,0:T(1,128)}', space=vmem, size = 0x12000, scoped, tag = 'internal scratch']
  %s0 = inlined_call_operand.hbm [shape: f32[512,128], index: 0, kind: input, shape index: {}]
  %s1 = inlined_call_operand.hbm [shape: bf16[128,128], index: 1, kind: input, shape index: {}]
  %s2 = inlined_call_operand.vmem [shape: f32[1,128], index: 2, kind: input, shape index: {}]
  %s3 = inlined_call_operand.vmem [shape: f32[1,128], index: 3, kind: input, shape index: {}]
  %s4 = inlined_call_operand.vmem [shape: f32[1,128], index: 4, kind: input, shape index: {}]
  %s5 = inlined_call_operand.hbm [shape: bf16[128,128], index: 5, kind: input, shape index: {}]
  %s6 = inlined_call_operand.vmem [shape: f32[1,128], index: 6, kind: input, shape index: {}]
  %s7 = inlined_call_operand.hbm [shape: bf16[128,128], index: 7, kind: input, shape index: {}]
  %s8 = inlined_call_operand.vmem [shape: f32[1,128], index: 8, kind: input, shape index: {}]
  %s9 = inlined_call_operand.hbm [shape: bf16[256,128], index: 9, kind: input, shape index: {}]
  %s10 = inlined_call_operand.vmem [shape: f32[1,128], index: 10, kind: input, shape index: {}]
  %s11 = inlined_call_operand.hbm [shape: f32[512,128], index: 11, kind: output, shape index: {}]
  %s12 = sld [smem:[#allocation0]]
  $region97: #{tpu_custom_call.1} parent=0
    _
  %s14 = ssub.s32 1, %s12
  %s15 = scalar_select 0, %s14, %s12
  $region1: #{tpu_custom_call.1} parent=0
    #allocation2 [shape = 'u8[262144]{0}', space=vmem, size = 0x40000, scoped, tag = 'input window, operand 0']
    #allocation3 [shape = 's32[2]{0}', space=sflag, size = 0x8, scoped, tag = 'scoped memory for tpu_custom_call.1']
    #allocation4 [shape = 's32[2]{0}', space=sflag, size = 0x8, scoped, tag = 'scoped memory for tpu_custom_call.1']
    #allocation5 [shape = 'u8[32768]{0}', space=vmem, size = 0x8000, scoped, tag = 'input window, operand 1, single buffered']
    #allocation6 [shape = 's32[1]{0}', space=sflag, size = 0x4, scoped, tag = 'scoped memory for tpu_custom_call.1']
    #allocation7 [shape = 'u8[32768]{0}', space=vmem, size = 0x8000, scoped, tag = 'input window, operand 5, single buffered']
    #allocation8 [shape = 'u8[32768]{0}', space=vmem, size = 0x8000, scoped, tag = 'input window, operand 7, single buffered']
    #allocation9 [shape = 's32[1]{0}', space=sflag, size = 0x4, scoped, tag = 'scoped memory for tpu_custom_call.1']
    #allocation10 [shape = 'u8[65536]{0}', space=vmem, size = 0x10000, scoped, tag = 'input window, operand 9, single buffered']
    #allocation11 [shape = 'u8[262144]{0}', space=vmem, size = 0x40000, scoped, tag = 'output window, operand 0']
    %16 = vsyncpa [#allocation3], 0
    %s17 = scalar_lea.sflag [#allocation3], 1
    %18 = vsyncpa %s17, 0
    %19 = vsyncpa [#allocation6], 0
    %20 = vsyncpa [#allocation9], 0
    %21 = vsyncpa [#allocation4], 0
    %s22 = scalar_lea.sflag [#allocation4], 1
    %23 = vsyncpa %s22, 0
    loop: start=0, step=1, limit=4
    $region2: #{tpu_custom_call.1} parent=1 // loop_pre_header
      _
    $region3: #{tpu_custom_call.1} parent=1 // loop_header
      %s25 = sphi 0, %s29
      %p26 = scmp.ge.s32.totalorder %s25, 4
      %s35 = sphi 0, %s37
      %s38 = sphi 0, %s35
      %s39 = sphi 0, %s38
      %s55 = sphi 0, %s39
      %s59 = sphi 0, %s59
      %s61 = sphi 0, %s59
      %s62 = sphi 0, %s61
      %s76 = sphi 0, %s62
      %s80 = sphi 0, %s80
      %s82 = sphi 0, %s80
      %s83 = sphi 0, %s82
      %s97 = sphi 0, %s83
      %s101 = sphi 0, %s101
      %s103 = sphi 0, %s101
      %s104 = sphi 0, %s103
      %s118 = sphi 0, %s104
      %s122 = sphi 0, %s122
      %s124 = sphi 0, %s122
      %s125 = sphi 0, %s124
      %s139 = sphi 0, %s125
      %s143 = sphi 0, %s143
      %s145 = sphi 0, %s143
      %s146 = sphi 0, %s145
      %s160 = sphi 0, %s146
      %s164 = sphi 0, %s164
      %s166 = sphi 0, %s164
      %s167 = sphi 0, %s166
      %s181 = sphi 0, %s167
      %s185 = sphi 0, %s185
      %s187 = sphi 0, %s185
      %s188 = sphi 0, %s187
      %s202 = sphi 0, %s188
      %s206 = sphi 0, %s206
      %s208 = sphi 0, %s206
      %s209 = sphi 0, %s208
      %s223 = sphi 0, %s209
      %s227 = sphi 0, %s227
      %s229 = sphi 0, %s227
      %s230 = sphi 0, %s229
      %s244 = sphi 0, %s230
      %s248 = sphi 0, %s248
      %s250 = sphi 0, %s248
      %s251 = sphi 0, %s250
      %s265 = sphi 0, %s251
      %s271 = sphi 0, %s273
      %s274 = sphi 0, %s271
      %s275 = sphi 0, %s274
      %s291 = sphi 0, %s275
    $region4: #{tpu_custom_call.1} parent=1 // loop_header_branch
      %28 = sbr.rel (%p26) target = $region8
    $region5: #{tpu_custom_call.1} parent=1 // loop_body
      %s30 = ssub.s32 %s25, 1
      %s31 = ssub.s32 %s25, 2
      %s32 = sadd.s32 %s25, 1
      %s33 = ssub.s32 %s25, %s32
      %p34 = scmp.eq.s32.totalorder %s33, 0
      %s36 = sadd.s32 %s35, 1
      %s37 = scalar_select %p34, %s35, %s36
      %p40 = pneg %p34
      %p41 = scmp.eq.s32.totalorder %s25, 1
      %p42 = por %p40, %p41
      %p43 = scmp.ne.s32.totalorder %s35, %s38
      %p44 = scmp.eq.s32.totalorder %s25, 0
      %p45 = por %p43, %p44
      %p46 = scmp.ne.s32.totalorder %s35, %s38
      %p47 = scmp.eq.s32.totalorder %s30, 1
      %p48 = por %p46, %p47
      %p49 = scmp.ne.s32.totalorder %s38, %s39
      %p50 = scmp.eq.s32.totalorder %s30, 0
      %p51 = por %p49, %p50
      %p52 = scmp.ne.s32.totalorder %s38, %s39
      %p53 = scmp.eq.s32.totalorder %s31, 1
      %p54 = por %p52, %p53
      %p56 = scmp.ne.s32.totalorder %s39, %s55
      %p57 = scmp.eq.s32.totalorder %s31, 0
      %p58 = por %p56, %p57
      %s60 = sadd.s32 %s59, 1
      %p63 = scmp.eq.s32.totalorder %s25, 1
      %p64 = scmp.ne.s32.totalorder %s59, %s61
      %p65 = scmp.eq.s32.totalorder %s25, 0
      %p66 = por %p64, %p65
      %p67 = scmp.ne.s32.totalorder %s59, %s61
      %p68 = scmp.eq.s32.totalorder %s30, 1
      %p69 = por %p67, %p68
      %p70 = scmp.ne.s32.totalorder %s61, %s62
      %p71 = scmp.eq.s32.totalorder %s30, 0
      %p72 = por %p70, %p71
      %p73 = scmp.ne.s32.totalorder %s61, %s62
      %p74 = scmp.eq.s32.totalorder %s31, 1
      %p75 = por %p73, %p74
      %p77 = scmp.ne.s32.totalorder %s62, %s76
      %p78 = scmp.eq.s32.totalorder %s31, 0
      %p79 = por %p77, %p78
      %s81 = sadd.s32 %s80, 1
      %p84 = scmp.eq.s32.totalorder %s25, 1
      %p85 = scmp.ne.s32.totalorder %s80, %s82
      %p86 = scmp.eq.s32.totalorder %s25, 0
      %p87 = por %p85, %p86
      %p88 = scmp.ne.s32.totalorder %s80, %s82
      %p89 = scmp.eq.s32.totalorder %s30, 1
      %p90 = por %p88, %p89
      %p91 = scmp.ne.s32.totalorder %s82, %s83
      %p92 = scmp.eq.s32.totalorder %s30, 0
      %p93 = por %p91, %p92
      %p94 = scmp.ne.s32.totalorder %s82, %s83
      %p95 = scmp.eq.s32.totalorder %s31, 1
      %p96 = por %p94, %p95
      %p98 = scmp.ne.s32.totalorder %s83, %s97
      %p99 = scmp.eq.s32.totalorder %s31, 0
      %p100 = por %p98, %p99
      %s102 = sadd.s32 %s101, 1
      %p105 = scmp.eq.s32.totalorder %s25, 1
      %p106 = scmp.ne.s32.totalorder %s101, %s103
      %p107 = scmp.eq.s32.totalorder %s25, 0
      %p108 = por %p106, %p107
      %p109 = scmp.ne.s32.totalorder %s101, %s103
      %p110 = scmp.eq.s32.totalorder %s30, 1
      %p111 = por %p109, %p110
      %p112 = scmp.ne.s32.totalorder %s103, %s104
      %p113 = scmp.eq.s32.totalorder %s30, 0
      %p114 = por %p112, %p113
      %p115 = scmp.ne.s32.totalorder %s103, %s104
      %p116 = scmp.eq.s32.totalorder %s31, 1
      %p117 = por %p115, %p116
      %p119 = scmp.ne.s32.totalorder %s104, %s118
      %p120 = scmp.eq.s32.totalorder %s31, 0
      %p121 = por %p119, %p120
      %s123 = sadd.s32 %s122, 1
      %p126 = scmp.eq.s32.totalorder %s25, 1
      %p127 = scmp.ne.s32.totalorder %s122, %s124
      %p128 = scmp.eq.s32.totalorder %s25, 0
      %p129 = por %p127, %p128
      %p130 = scmp.ne.s32.totalorder %s122, %s124
      %p131 = scmp.eq.s32.totalorder %s30, 1
      %p132 = por %p130, %p131
      %p133 = scmp.ne.s32.totalorder %s124, %s125
      %p134 = scmp.eq.s32.totalorder %s30, 0
      %p135 = por %p133, %p134
      %p136 = scmp.ne.s32.totalorder %s124, %s125
      %p137 = scmp.eq.s32.totalorder %s31, 1
      %p138 = por %p136, %p137
      %p140 = scmp.ne.s32.totalorder %s125, %s139
      %p141 = scmp.eq.s32.totalorder %s31, 0
      %p142 = por %p140, %p141
      %s144 = sadd.s32 %s143, 1
      %p147 = scmp.eq.s32.totalorder %s25, 1
      %p148 = scmp.ne.s32.totalorder %s143, %s145
      %p149 = scmp.eq.s32.totalorder %s25, 0
      %p150 = por %p148, %p149
      %p151 = scmp.ne.s32.totalorder %s143, %s145
      %p152 = scmp.eq.s32.totalorder %s30, 1
      %p153 = por %p151, %p152
      %p154 = scmp.ne.s32.totalorder %s145, %s146
      %p155 = scmp.eq.s32.totalorder %s30, 0
      %p156 = por %p154, %p155
      %p157 = scmp.ne.s32.totalorder %s145, %s146
      %p158 = scmp.eq.s32.totalorder %s31, 1
      %p159 = por %p157, %p158
      %p161 = scmp.ne.s32.totalorder %s146, %s160
      %p162 = scmp.eq.s32.totalorder %s31, 0
      %p163 = por %p161, %p162
      %s165 = sadd.s32 %s164, 1
      %p168 = scmp.eq.s32.totalorder %s25, 1
      %p169 = scmp.ne.s32.totalorder %s164, %s166
      %p170 = scmp.eq.s32.totalorder %s25, 0
      %p171 = por %p169, %p170
      %p172 = scmp.ne.s32.totalorder %s164, %s166
      %p173 = scmp.eq.s32.totalorder %s30, 1
      %p174 = por %p172, %p173
      %p175 = scmp.ne.s32.totalorder %s166, %s167
      %p176 = scmp.eq.s32.totalorder %s30, 0
      %p177 = por %p175, %p176
      %p178 = scmp.ne.s32.totalorder %s166, %s167
      %p179 = scmp.eq.s32.totalorder %s31, 1
      %p180 = por %p178, %p179
      %p182 = scmp.ne.s32.totalorder %s167, %s181
      %p183 = scmp.eq.s32.totalorder %s31, 0
      %p184 = por %p182, %p183
      %s186 = sadd.s32 %s185, 1
      %p189 = scmp.eq.s32.totalorder %s25, 1
      %p190 = scmp.ne.s32.totalorder %s185, %s187
      %p191 = scmp.eq.s32.totalorder %s25, 0
      %p192 = por %p190, %p191
      %p193 = scmp.ne.s32.totalorder %s185, %s187
      %p194 = scmp.eq.s32.totalorder %s30, 1
      %p195 = por %p193, %p194
      %p196 = scmp.ne.s32.totalorder %s187, %s188
      %p197 = scmp.eq.s32.totalorder %s30, 0
      %p198 = por %p196, %p197
      %p199 = scmp.ne.s32.totalorder %s187, %s188
      %p200 = scmp.eq.s32.totalorder %s31, 1
      %p201 = por %p199, %p200
      %p203 = scmp.ne.s32.totalorder %s188, %s202
      %p204 = scmp.eq.s32.totalorder %s31, 0
      %p205 = por %p203, %p204
      %s207 = sadd.s32 %s206, 1
      %p210 = scmp.eq.s32.totalorder %s25, 1
      %p211 = scmp.ne.s32.totalorder %s206, %s208
      %p212 = scmp.eq.s32.totalorder %s25, 0
      %p213 = por %p211, %p212
      %p214 = scmp.ne.s32.totalorder %s206, %s208
      %p215 = scmp.eq.s32.totalorder %s30, 1
      %p216 = por %p214, %p215
      %p217 = scmp.ne.s32.totalorder %s208, %s209
      %p218 = scmp.eq.s32.totalorder %s30, 0
      %p219 = por %p217, %p218
      %p220 = scmp.ne.s32.totalorder %s208, %s209
      %p221 = scmp.eq.s32.totalorder %s31, 1
      %p222 = por %p220, %p221
      %p224 = scmp.ne.s32.totalorder %s209, %s223
      %p225 = scmp.eq.s32.totalorder %s31, 0
      %p226 = por %p224, %p225
      %s228 = sadd.s32 %s227, 1
      %p231 = scmp.eq.s32.totalorder %s25, 1
      %p232 = scmp.ne.s32.totalorder %s227, %s229
      %p233 = scmp.eq.s32.totalorder %s25, 0
      %p234 = por %p232, %p233
      %p235 = scmp.ne.s32.totalorder %s227, %s229
      %p236 = scmp.eq.s32.totalorder %s30, 1
      %p237 = por %p235, %p236
      %p238 = scmp.ne.s32.totalorder %s229, %s230
      %p239 = scmp.eq.s32.totalorder %s30, 0
      %p240 = por %p238, %p239
      %p241 = scmp.ne.s32.totalorder %s229, %s230
      %p242 = scmp.eq.s32.totalorder %s31, 1
      %p243 = por %p241, %p242
      %p245 = scmp.ne.s32.totalorder %s230, %s244
      %p246 = scmp.eq.s32.totalorder %s31, 0
      %p247 = por %p245, %p246
      %s249 = sadd.s32 %s248, 1
      %p252 = scmp.eq.s32.totalorder %s25, 1
      %p253 = scmp.ne.s32.totalorder %s248, %s250
      %p254 = scmp.eq.s32.totalorder %s25, 0
      %p255 = por %p253, %p254
      %p256 = scmp.ne.s32.totalorder %s248, %s250
      %p257 = scmp.eq.s32.totalorder %s30, 1
      %p258 = por %p256, %p257
      %p259 = scmp.ne.s32.totalorder %s250, %s251
      %p260 = scmp.eq.s32.totalorder %s30, 0
      %p261 = por %p259, %p260
      %p262 = scmp.ne.s32.totalorder %s250, %s251
      %p263 = scmp.eq.s32.totalorder %s31, 1
      %p264 = por %p262, %p263
      %p266 = scmp.ne.s32.totalorder %s251, %s265
      %p267 = scmp.eq.s32.totalorder %s31, 0
      %p268 = por %p266, %p267
      %s269 = ssub.s32 %s25, %s32
      %p270 = scmp.eq.s32.totalorder %s269, 0
      %s272 = sadd.s32 %s271, 1
      %s273 = scalar_select %p270, %s271, %s272
      %p276 = pneg %p270
      %p277 = scmp.eq.s32.totalorder %s25, 1
      %p278 = por %p276, %p277
      %p279 = scmp.ne.s32.totalorder %s271, %s274
      %p280 = scmp.eq.s32.totalorder %s25, 0
      %p281 = por %p279, %p280
      %p282 = scmp.ne.s32.totalorder %s271, %s274
      %p283 = scmp.eq.s32.totalorder %s30, 1
      %p284 = por %p282, %p283
      %p285 = scmp.ne.s32.totalorder %s274, %s275
      %p286 = scmp.eq.s32.totalorder %s30, 0
      %p287 = por %p285, %p286
      %p288 = scmp.ne.s32.totalorder %s274, %s275
      %p289 = scmp.eq.s32.totalorder %s31, 1
      %p290 = por %p288, %p289
      %p292 = scmp.ne.s32.totalorder %s275, %s291
      %p293 = scmp.eq.s32.totalorder %s31, 0
      %p294 = por %p292, %p293
      %p295 = scmp.le.s32.totalorder 1, %s25
      %p296 = scmp.lt.s32.totalorder %s25, 3
      %p297 = pnand %p295, %p296
      %p298 = pneg %p297
      // Predicated region
      $region9: #{tpu_custom_call.1} parent=5 // pred_check
        _
      $region10: #{tpu_custom_call.1} parent=5 // pred_check_branch
        %300 = sbr.rel (%p297) target = $region12
      $region11: #{tpu_custom_call.1} parent=5 // pred_region
        %s301 = ssub.s32 %s25, 1
        // Predicated region
        $region13: #{tpu_custom_call.1} parent=11 // pred_check
          %p302 = pneg %p72
        $region14: #{tpu_custom_call.1} parent=11 // pred_check_branch
          %304 = sbr.rel (%p302) target = $region16
        $region15: #{tpu_custom_call.1} parent=11 // pred_region
          %s306 = ssub.s32 1024, 1024
          %307 = vsyncadd [#allocation6], %s306
          %s308 = sshll.u32 [#allocation5], 4
          %s309 = int_to_ptr.vmem [resolvable:$true] %s308
          %314 = dma.hbm_to_vmem [thread:$0]  %s1, 1024, %s309, [#allocation6], 64, 64, 4
        $region16: #{tpu_custom_call.1} parent=11 // pred_fallthru
          _
        // Predicated region
        $region17: #{tpu_custom_call.1} parent=11 // pred_check
          %p315 = pneg %p93
        $region18: #{tpu_custom_call.1} parent=11 // pred_check_branch
          %317 = sbr.rel (%p315) target = $region20
        $region19: #{tpu_custom_call.1} parent=11 // pred_region
          _
        $region20: #{tpu_custom_call.1} parent=11 // pred_fallthru
          _
        // Predicated region
        $region21: #{tpu_custom_call.1} parent=11 // pred_check
          %p318 = pneg %p114
        $region22: #{tpu_custom_call.1} parent=11 // pred_check_branch
          %320 = sbr.rel (%p318) target = $region24
        $region23: #{tpu_custom_call.1} parent=11 // pred_region
          _
        $region24: #{tpu_custom_call.1} parent=11 // pred_fallthru
          _
        // Predicated region
        $region25: #{tpu_custom_call.1} parent=11 // pred_check
          %p321 = pneg %p135
        $region26: #{tpu_custom_call.1} parent=11 // pred_check_branch
          %323 = sbr.rel (%p321) target = $region28
        $region27: #{tpu_custom_call.1} parent=11 // pred_region
          _
        $region28: #{tpu_custom_call.1} parent=11 // pred_fallthru
          _
        // Predicated region
        $region29: #{tpu_custom_call.1} parent=11 // pred_check
          %p324 = pneg %p156
        $region30: #{tpu_custom_call.1} parent=11 // pred_check_branch
          %326 = sbr.rel (%p324) target = $region32
        $region31: #{tpu_custom_call.1} parent=11 // pred_region
          %s328 = ssub.s32 1024, 1024
          %329 = vsyncadd [#allocation6], %s328
          %s330 = sshll.u32 [#allocation7], 4
          %s331 = int_to_ptr.vmem [resolvable:$true] %s330
          %336 = dma.hbm_to_vmem [thread:$0]  %s5, 1024, %s331, [#allocation6], 64, 64, 4
        $region32: #{tpu_custom_call.1} parent=11 // pred_fallthru
          _
        // Predicated region
        $region33: #{tpu_custom_call.1} parent=11 // pred_check
          %p337 = pneg %p177
        $region34: #{tpu_custom_call.1} parent=11 // pred_check_branch
          %339 = sbr.rel (%p337) target = $region36
        $region35: #{tpu_custom_call.1} parent=11 // pred_region
          _
        $region36: #{tpu_custom_call.1} parent=11 // pred_fallthru
          _
        // Predicated region
        $region37: #{tpu_custom_call.1} parent=11 // pred_check
          %p340 = pneg %p198
        $region38: #{tpu_custom_call.1} parent=11 // pred_check_branch
          %342 = sbr.rel (%p340) target = $region40
        $region39: #{tpu_custom_call.1} parent=11 // pred_region
          %s344 = ssub.s32 1024, 1024
          %345 = vsyncadd [#allocation9], %s344
          %s346 = sshll.u32 [#allocation8], 4
          %s347 = int_to_ptr.vmem [resolvable:$true] %s346
          %352 = dma.hbm_to_vmem [thread:$0]  %s7, 1024, %s347, [#allocation9], 64, 64, 4
        $region40: #{tpu_custom_call.1} parent=11 // pred_fallthru
          _
        // Predicated region
        $region41: #{tpu_custom_call.1} parent=11 // pred_check
          %p353 = pneg %p219
        $region42: #{tpu_custom_call.1} parent=11 // pred_check_branch
          %355 = sbr.rel (%p353) target = $region44
        $region43: #{tpu_custom_call.1} parent=11 // pred_region
          _
        $region44: #{tpu_custom_call.1} parent=11 // pred_fallthru
          _
        // Predicated region
        $region45: #{tpu_custom_call.1} parent=11 // pred_check
          %p356 = pneg %p240
        $region46: #{tpu_custom_call.1} parent=11 // pred_check_branch
          %358 = sbr.rel (%p356) target = $region48
        $region47: #{tpu_custom_call.1} parent=11 // pred_region
          %s360 = ssub.s32 2048, 2048
          %361 = vsyncadd [#allocation9], %s360
          %s362 = sshll.u32 [#allocation10], 4
          %s363 = int_to_ptr.vmem [resolvable:$true] %s362
          %368 = dma.hbm_to_vmem [thread:$0]  %s9, 2048, %s363, [#allocation9], 64, 64, 4
        $region48: #{tpu_custom_call.1} parent=11 // pred_fallthru
          _
        // Predicated region
        $region49: #{tpu_custom_call.1} parent=11 // pred_check
          %p369 = pneg %p261
        $region50: #{tpu_custom_call.1} parent=11 // pred_check_branch
          %371 = sbr.rel (%p369) target = $region52
        $region51: #{tpu_custom_call.1} parent=11 // pred_region
          _
        $region52: #{tpu_custom_call.1} parent=11 // pred_fallthru
          _
      $region12: #{tpu_custom_call.1} parent=5 // pred_fallthru
        _
      %p372 = scmp.lt.s32.totalorder %s25, 2
      // Predicated region
      $region53: #{tpu_custom_call.1} parent=5 // pred_check
        %p373 = pneg %p372
      $region54: #{tpu_custom_call.1} parent=5 // pred_check_branch
        %375 = sbr.rel (%p373) target = $region56
      $region55: #{tpu_custom_call.1} parent=5 // pred_region
        // Predicated region
        $region57: #{tpu_custom_call.1} parent=55 // pred_check
          %p376 = pneg %p45
        $region58: #{tpu_custom_call.1} parent=55 // pred_check_branch
          %378 = sbr.rel (%p376) target = $region60
        $region59: #{tpu_custom_call.1} parent=55 // pred_region
          %s379 = sand.u32 %s35, 1
          %s380 = scalar_lea.sflag [#allocation3], %s379
          %s381 = sand.u32 %s35, 1
          %s382 = smul.addr %s381, 256
          %s383 = scalar_lea.vmem [#allocation2], %s382
          %s384 = smul.u32 32, %s25
          %s386 = ssub.s32 4096, 4096
          %387 = vsyncadd %s380, %s386
          %s388 = smul.addr %s384, 128
          %s389 = scalar_lea.hbm %s0, %s388
          %s390 = sshll.u32 %s383, 4
          %s391 = int_to_ptr.vmem [resolvable:$true] %s390
          %396 = dma.hbm_to_vmem [thread:$0]  %s389, 4096, %s391, %s380, 128, 128, 8
        $region60: #{tpu_custom_call.1} parent=55 // pred_fallthru
          _
      $region56: #{tpu_custom_call.1} parent=5 // pred_fallthru
        _
      %p397 = scmp.le.s32.totalorder 1, %s25
      %p398 = scmp.lt.s32.totalorder %s25, 3
      %p399 = pnand %p397, %p398
      %p400 = pneg %p399
      // Predicated region
      $region61: #{tpu_custom_call.1} parent=5 // pred_check
        _
      $region62: #{tpu_custom_call.1} parent=5 // pred_check_branch
        %402 = sbr.rel (%p399) target = $region64
      $region63: #{tpu_custom_call.1} parent=5 // pred_region
        %s403 = ssub.s32 %s25, 1
        %s404 = sand.u32 %s38, 1
        %s405 = scalar_lea.sflag [#allocation3], %s404
        %s406 = sand.u32 %s38, 1
        %s407 = smul.addr %s406, 256
        %s408 = scalar_lea.vmem [#allocation2], %s407
        // Predicated region
        $region65: #{tpu_custom_call.1} parent=63 // pred_check
          %p409 = pneg %p51
        $region66: #{tpu_custom_call.1} parent=63 // pred_check_branch
          %411 = sbr.rel (%p409) target = $region68
        $region67: #{tpu_custom_call.1} parent=63 // pred_region
          %412 = dma.done %s405, 4096
        $region68: #{tpu_custom_call.1} parent=63 // pred_fallthru
          _
        // Predicated region
        $region69: #{tpu_custom_call.1} parent=63 // pred_check
          %p413 = pneg %p72
        $region70: #{tpu_custom_call.1} parent=63 // pred_check_branch
          %415 = sbr.rel (%p413) target = $region72
        $region71: #{tpu_custom_call.1} parent=63 // pred_region
          %416 = dma.done [#allocation6], 1024
        $region72: #{tpu_custom_call.1} parent=63 // pred_fallthru
          _
        // Predicated region
        $region73: #{tpu_custom_call.1} parent=63 // pred_check
          %p417 = pneg %p156
        $region74: #{tpu_custom_call.1} parent=63 // pred_check_branch
          %419 = sbr.rel (%p417) target = $region76
        $region75: #{tpu_custom_call.1} parent=63 // pred_region
          %420 = dma.done [#allocation6], 1024
        $region76: #{tpu_custom_call.1} parent=63 // pred_fallthru
          _
        // Predicated region
        $region77: #{tpu_custom_call.1} parent=63 // pred_check
          %p421 = pneg %p198
        $region78: #{tpu_custom_call.1} parent=63 // pred_check_branch
          %423 = sbr.rel (%p421) target = $region80
        $region79: #{tpu_custom_call.1} parent=63 // pred_region
          %424 = dma.done [#allocation9], 1024
        $region80: #{tpu_custom_call.1} parent=63 // pred_fallthru
          _
        // Predicated region
        $region81: #{tpu_custom_call.1} parent=63 // pred_check
          %p425 = pneg %p240
        $region82: #{tpu_custom_call.1} parent=63 // pred_check_branch
          %427 = sbr.rel (%p425) target = $region84
        $region83: #{tpu_custom_call.1} parent=63 // pred_region
          %428 = dma.done [#allocation9], 2048
        $region84: #{tpu_custom_call.1} parent=63 // pred_fallthru
          _
        %s429 = sand.u32 %s38, 1
        %s430 = scalar_lea.sflag [#allocation3], %s429
        %s431 = sand.u32 %s38, 1
        %s432 = smul.addr %s431, 256
        %s433 = scalar_lea.vmem [#allocation2], %s432
        %p434 = pneg %p51
        %p435 = pneg %p48
        %p436 = pneg %p72
        %p437 = pneg %p69
        %p438 = pneg %p93
        %p439 = pneg %p90
        %p440 = pneg %p114
        %p441 = pneg %p111
        %p442 = pneg %p135
        %p443 = pneg %p132
        %p444 = pneg %p156
        %p445 = pneg %p153
        %p446 = pneg %p177
        %p447 = pneg %p174
        %p448 = pneg %p198
        %p449 = pneg %p195
        %p450 = pneg %p219
        %p451 = pneg %p216
        %p452 = pneg %p240
        %p453 = pneg %p237
        %p454 = pneg %p261
        %p455 = pneg %p258
        %p456 = pneg %p287
        %p457 = pneg %p284
        %s458 = sand.u32 %s274, 1
        %s459 = scalar_lea.sflag [#allocation4], %s458
        %s460 = sand.u32 %s274, 1
        %s461 = smul.addr %s460, 256
        %s462 = scalar_lea.vmem [#allocation11], %s461
        %s463 = smul.u32 32, %s30
        %s464 = smul.u32 32, %s30
        %v466 = vld [vmem:[%s408] sm:$0xff]
        %v467 = vld [vmem:[%s408 + $0x8] sm:$0xff]
        %v468 = vld [vmem:[%s408 + $0x10] sm:$0xff]
        %v469 = vld [vmem:[%s408 + $0x18] sm:$0xff]
        %v470 = vld [vmem:[%s408 + $0x20] sm:$0xff]
        %v471 = vld [vmem:[%s408 + $0x28] sm:$0xff]
        %v472 = vld [vmem:[%s408 + $0x30] sm:$0xff]
        %v473 = vld [vmem:[%s408 + $0x38] sm:$0xff]
        %v474 = vld [vmem:[%s408 + $0x40] sm:$0xff]
        %v475 = vld [vmem:[%s408 + $0x48] sm:$0xff]
        %v476 = vld [vmem:[%s408 + $0x50] sm:$0xff]
        %v477 = vld [vmem:[%s408 + $0x58] sm:$0xff]
        %v478 = vld [vmem:[%s408 + $0x60] sm:$0xff]
        %v479 = vld [vmem:[%s408 + $0x68] sm:$0xff]
        %v480 = vld [vmem:[%s408 + $0x70] sm:$0xff]
        %v481 = vld [vmem:[%s408 + $0x78] sm:$0xff]
        %v482 = vld [vmem:[%s408 + $0x80] sm:$0xff]
        %v483 = vld [vmem:[%s408 + $0x88] sm:$0xff]
        %v484 = vld [vmem:[%s408 + $0x90] sm:$0xff]
        %v485 = vld [vmem:[%s408 + $0x98] sm:$0xff]
        %v486 = vld [vmem:[%s408 + $0xa0] sm:$0xff]
        %v487 = vld [vmem:[%s408 + $0xa8] sm:$0xff]
        %v488 = vld [vmem:[%s408 + $0xb0] sm:$0xff]
        %v489 = vld [vmem:[%s408 + $0xb8] sm:$0xff]
        %v490 = vld [vmem:[%s408 + $0xc0] sm:$0xff]
        %v491 = vld [vmem:[%s408 + $0xc8] sm:$0xff]
        %v492 = vld [vmem:[%s408 + $0xd0] sm:$0xff]
        %v493 = vld [vmem:[%s408 + $0xd8] sm:$0xff]
        %v494 = vld [vmem:[%s408 + $0xe0] sm:$0xff]
        %v495 = vld [vmem:[%s408 + $0xe8] sm:$0xff]
        %v496 = vld [vmem:[%s408 + $0xf0] sm:$0xff]
        %v497 = vld [vmem:[%s408 + $0xf8] sm:$0xff]
        %498 = vadd.xlane.f32.xlu0 %v466
        %v499 = vpop.xlane.xlu0 %498
        %500 = vadd.xlane.f32.xlu0 %v467
        %v501 = vpop.xlane.xlu0 %500
        %502 = vadd.xlane.f32.xlu0 %v468
        %v503 = vpop.xlane.xlu0 %502
        %504 = vadd.xlane.f32.xlu0 %v469
        %v505 = vpop.xlane.xlu0 %504
        %506 = vadd.xlane.f32.xlu0 %v470
        %v507 = vpop.xlane.xlu0 %506
        %508 = vadd.xlane.f32.xlu0 %v471
        %v509 = vpop.xlane.xlu0 %508
        %510 = vadd.xlane.f32.xlu0 %v472
        %v511 = vpop.xlane.xlu0 %510
        %512 = vadd.xlane.f32.xlu0 %v473
        %v513 = vpop.xlane.xlu0 %512
        %514 = vadd.xlane.f32.xlu0 %v474
        %v515 = vpop.xlane.xlu0 %514
        %516 = vadd.xlane.f32.xlu0 %v475
        %v517 = vpop.xlane.xlu0 %516
        %518 = vadd.xlane.f32.xlu0 %v476
        %v519 = vpop.xlane.xlu0 %518
        %520 = vadd.xlane.f32.xlu0 %v477
        %v521 = vpop.xlane.xlu0 %520
        %522 = vadd.xlane.f32.xlu0 %v478
        %v523 = vpop.xlane.xlu0 %522
        %524 = vadd.xlane.f32.xlu0 %v479
        %v525 = vpop.xlane.xlu0 %524
        %526 = vadd.xlane.f32.xlu0 %v480
        %v527 = vpop.xlane.xlu0 %526
        %528 = vadd.xlane.f32.xlu0 %v481
        %v529 = vpop.xlane.xlu0 %528
        %530 = vadd.xlane.f32.xlu0 %v482
        %v531 = vpop.xlane.xlu0 %530
        %532 = vadd.xlane.f32.xlu0 %v483
        %v533 = vpop.xlane.xlu0 %532
        %534 = vadd.xlane.f32.xlu0 %v484
        %v535 = vpop.xlane.xlu0 %534
        %536 = vadd.xlane.f32.xlu0 %v485
        %v537 = vpop.xlane.xlu0 %536
        %538 = vadd.xlane.f32.xlu0 %v486
        %v539 = vpop.xlane.xlu0 %538
        %540 = vadd.xlane.f32.xlu0 %v487
        %v541 = vpop.xlane.xlu0 %540
        %542 = vadd.xlane.f32.xlu0 %v488
        %v543 = vpop.xlane.xlu0 %542
        %544 = vadd.xlane.f32.xlu0 %v489
        %v545 = vpop.xlane.xlu0 %544
        %546 = vadd.xlane.f32.xlu0 %v490
        %v547 = vpop.xlane.xlu0 %546
        %548 = vadd.xlane.f32.xlu0 %v491
        %v549 = vpop.xlane.xlu0 %548
        %550 = vadd.xlane.f32.xlu0 %v492
        %v551 = vpop.xlane.xlu0 %550
        %552 = vadd.xlane.f32.xlu0 %v493
        %v553 = vpop.xlane.xlu0 %552
        %554 = vadd.xlane.f32.xlu0 %v494
        %v555 = vpop.xlane.xlu0 %554
        %556 = vadd.xlane.f32.xlu0 %v495
        %v557 = vpop.xlane.xlu0 %556
        %558 = vadd.xlane.f32.xlu0 %v496
        %v559 = vpop.xlane.xlu0 %558
        %560 = vadd.xlane.f32.xlu0 %v497
        %v561 = vpop.xlane.xlu0 %560
        %v562 = vrcp.pop 128.0
        %v563 = vmul.f32 %v499, %v562
        %v564 = vmul.f32 %v501, %v562
        %v565 = vmul.f32 %v503, %v562
        %v566 = vmul.f32 %v505, %v562
        %v567 = vmul.f32 %v507, %v562
        %v568 = vmul.f32 %v509, %v562
        %v569 = vmul.f32 %v511, %v562
        %v570 = vmul.f32 %v513, %v562
        %v571 = vmul.f32 %v515, %v562
        %v572 = vmul.f32 %v517, %v562
        %v573 = vmul.f32 %v519, %v562
        %v574 = vmul.f32 %v521, %v562
        %v575 = vmul.f32 %v523, %v562
        %v576 = vmul.f32 %v525, %v562
        %v577 = vmul.f32 %v527, %v562
        %v578 = vmul.f32 %v529, %v562
        %v579 = vmul.f32 %v531, %v562
        %v580 = vmul.f32 %v533, %v562
        %v581 = vmul.f32 %v535, %v562
        %v582 = vmul.f32 %v537, %v562
        %v583 = vmul.f32 %v539, %v562
        %v584 = vmul.f32 %v541, %v562
        %v585 = vmul.f32 %v543, %v562
        %v586 = vmul.f32 %v545, %v562
        %v587 = vmul.f32 %v547, %v562
        %v588 = vmul.f32 %v549, %v562
        %v589 = vmul.f32 %v551, %v562
        %v590 = vmul.f32 %v553, %v562
        %v591 = vmul.f32 %v555, %v562
        %v592 = vmul.f32 %v557, %v562
        %v593 = vmul.f32 %v559, %v562
        %v594 = vmul.f32 %v561, %v562
        %v595 = vmul.f32 %v466, %v466
        %v596 = vmul.f32 %v467, %v467
        %v597 = vmul.f32 %v468, %v468
        %v598 = vmul.f32 %v469, %v469
        %v599 = vmul.f32 %v470, %v470
        %v600 = vmul.f32 %v471, %v471
        %v601 = vmul.f32 %v472, %v472
        %v602 = vmul.f32 %v473, %v473
        %v603 = vmul.f32 %v474, %v474
        %v604 = vmul.f32 %v475, %v475
        %v605 = vmul.f32 %v476, %v476
        %v606 = vmul.f32 %v477, %v477
        %v607 = vmul.f32 %v478, %v478
        %v608 = vmul.f32 %v479, %v479
        %v609 = vmul.f32 %v480, %v480
        %v610 = vmul.f32 %v481, %v481
        %v611 = vmul.f32 %v482, %v482
        %v612 = vmul.f32 %v483, %v483
        %v613 = vmul.f32 %v484, %v484
        %v614 = vmul.f32 %v485, %v485
        %v615 = vmul.f32 %v486, %v486
        %v616 = vmul.f32 %v487, %v487
        %v617 = vmul.f32 %v488, %v488
        %v618 = vmul.f32 %v489, %v489
        %v619 = vmul.f32 %v490, %v490
        %v620 = vmul.f32 %v491, %v491
        %v621 = vmul.f32 %v492, %v492
        %v622 = vmul.f32 %v493, %v493
        %v623 = vmul.f32 %v494, %v494
        %v624 = vmul.f32 %v495, %v495
        %v625 = vmul.f32 %v496, %v496
        %v626 = vmul.f32 %v497, %v497
        %627 = vadd.xlane.f32.xlu0 %v595
        %v628 = vpop.xlane.xlu0 %627
        %629 = vadd.xlane.f32.xlu0 %v596
        %v630 = vpop.xlane.xlu0 %629
        %631 = vadd.xlane.f32.xlu0 %v597
        %v632 = vpop.xlane.xlu0 %631
        %633 = vadd.xlane.f32.xlu0 %v598
        %v634 = vpop.xlane.xlu0 %633
        %635 = vadd.xlane.f32.xlu0 %v599
        %v636 = vpop.xlane.xlu0 %635
        %637 = vadd.xlane.f32.xlu0 %v600
        %v638 = vpop.xlane.xlu0 %637
        %639 = vadd.xlane.f32.xlu0 %v601
        %v640 = vpop.xlane.xlu0 %639
        %641 = vadd.xlane.f32.xlu0 %v602
        %v642 = vpop.xlane.xlu0 %641
        %643 = vadd.xlane.f32.xlu0 %v603
        %v644 = vpop.xlane.xlu0 %643
        %645 = vadd.xlane.f32.xlu0 %v604
        %v646 = vpop.xlane.xlu0 %645
        %647 = vadd.xlane.f32.xlu0 %v605
        %v648 = vpop.xlane.xlu0 %647
        %649 = vadd.xlane.f32.xlu0 %v606
        %v650 = vpop.xlane.xlu0 %649
        %651 = vadd.xlane.f32.xlu0 %v607
        %v652 = vpop.xlane.xlu0 %651
        %653 = vadd.xlane.f32.xlu0 %v608
        %v654 = vpop.xlane.xlu0 %653
        %655 = vadd.xlane.f32.xlu0 %v609
        %v656 = vpop.xlane.xlu0 %655
        %657 = vadd.xlane.f32.xlu0 %v610
        %v658 = vpop.xlane.xlu0 %657
        %659 = vadd.xlane.f32.xlu0 %v611
        %v660 = vpop.xlane.xlu0 %659
        %661 = vadd.xlane.f32.xlu0 %v612
        %v662 = vpop.xlane.xlu0 %661
        %663 = vadd.xlane.f32.xlu0 %v613
        %v664 = vpop.xlane.xlu0 %663
        %665 = vadd.xlane.f32.xlu0 %v614
        %v666 = vpop.xlane.xlu0 %665
        %667 = vadd.xlane.f32.xlu0 %v615
        %v668 = vpop.xlane.xlu0 %667
        %669 = vadd.xlane.f32.xlu0 %v616
        %v670 = vpop.xlane.xlu0 %669
        %671 = vadd.xlane.f32.xlu0 %v617
        %v672 = vpop.xlane.xlu0 %671
        %673 = vadd.xlane.f32.xlu0 %v618
        %v674 = vpop.xlane.xlu0 %673
        %675 = vadd.xlane.f32.xlu0 %v619
        %v676 = vpop.xlane.xlu0 %675
        %677 = vadd.xlane.f32.xlu0 %v620
        %v678 = vpop.xlane.xlu0 %677
        %679 = vadd.xlane.f32.xlu0 %v621
        %v680 = vpop.xlane.xlu0 %679
        %681 = vadd.xlane.f32.xlu0 %v622
        %v682 = vpop.xlane.xlu0 %681
        %683 = vadd.xlane.f32.xlu0 %v623
        %v684 = vpop.xlane.xlu0 %683
        %685 = vadd.xlane.f32.xlu0 %v624
        %v686 = vpop.xlane.xlu0 %685
        %687 = vadd.xlane.f32.xlu0 %v625
        %v688 = vpop.xlane.xlu0 %687
        %689 = vadd.xlane.f32.xlu0 %v626
        %v690 = vpop.xlane.xlu0 %689
        %v691 = vmul.f32 %v628, %v562
        %v692 = vmul.f32 %v630, %v562
        %v693 = vmul.f32 %v632, %v562
        %v694 = vmul.f32 %v634, %v562
        %v695 = vmul.f32 %v636, %v562
        %v696 = vmul.f32 %v638, %v562
        %v697 = vmul.f32 %v640, %v562
        %v698 = vmul.f32 %v642, %v562
        %v699 = vmul.f32 %v644, %v562
        %v700 = vmul.f32 %v646, %v562
        %v701 = vmul.f32 %v648, %v562
        %v702 = vmul.f32 %v650, %v562
        %v703 = vmul.f32 %v652, %v562
        %v704 = vmul.f32 %v654, %v562
        %v705 = vmul.f32 %v656, %v562
        %v706 = vmul.f32 %v658, %v562
        %v707 = vmul.f32 %v660, %v562
        %v708 = vmul.f32 %v662, %v562
        %v709 = vmul.f32 %v664, %v562
        %v710 = vmul.f32 %v666, %v562
        %v711 = vmul.f32 %v668, %v562
        %v712 = vmul.f32 %v670, %v562
        %v713 = vmul.f32 %v672, %v562
        %v714 = vmul.f32 %v674, %v562
        %v715 = vmul.f32 %v676, %v562
        %v716 = vmul.f32 %v678, %v562
        %v717 = vmul.f32 %v680, %v562
        %v718 = vmul.f32 %v682, %v562
        %v719 = vmul.f32 %v684, %v562
        %v720 = vmul.f32 %v686, %v562
        %v721 = vmul.f32 %v688, %v562
        %v722 = vmul.f32 %v690, %v562
        %v723 = vmul.f32 %v563, %v563
        %v724 = vmul.f32 %v564, %v564
        %v725 = vmul.f32 %v565, %v565
        %v726 = vmul.f32 %v566, %v566
        %v727 = vmul.f32 %v567, %v567
        %v728 = vmul.f32 %v568, %v568
        %v729 = vmul.f32 %v569, %v569
        %v730 = vmul.f32 %v570, %v570
        %v731 = vmul.f32 %v571, %v571
        %v732 = vmul.f32 %v572, %v572
        %v733 = vmul.f32 %v573, %v573
        %v734 = vmul.f32 %v574, %v574
        %v735 = vmul.f32 %v575, %v575
        %v736 = vmul.f32 %v576, %v576
        %v737 = vmul.f32 %v577, %v577
        %v738 = vmul.f32 %v578, %v578
        %v739 = vmul.f32 %v579, %v579
        %v740 = vmul.f32 %v580, %v580
        %v741 = vmul.f32 %v581, %v581
        %v742 = vmul.f32 %v582, %v582
        %v743 = vmul.f32 %v583, %v583
        %v744 = vmul.f32 %v584, %v584
        %v745 = vmul.f32 %v585, %v585
        %v746 = vmul.f32 %v586, %v586
        %v747 = vmul.f32 %v587, %v587
        %v748 = vmul.f32 %v588, %v588
        %v749 = vmul.f32 %v589, %v589
        %v750 = vmul.f32 %v590, %v590
        %v751 = vmul.f32 %v591, %v591
        %v752 = vmul.f32 %v592, %v592
        %v753 = vmul.f32 %v593, %v593
        %v754 = vmul.f32 %v594, %v594
        %v755 = vsub.f32 %v691, %v723
        %v756 = vsub.f32 %v692, %v724
        %v757 = vsub.f32 %v693, %v725
        %v758 = vsub.f32 %v694, %v726
        %v759 = vsub.f32 %v695, %v727
        %v760 = vsub.f32 %v696, %v728
        %v761 = vsub.f32 %v697, %v729
        %v762 = vsub.f32 %v698, %v730
        %v763 = vsub.f32 %v699, %v731
        %v764 = vsub.f32 %v700, %v732
        %v765 = vsub.f32 %v701, %v733
        %v766 = vsub.f32 %v702, %v734
        %v767 = vsub.f32 %v703, %v735
        %v768 = vsub.f32 %v704, %v736
        %v769 = vsub.f32 %v705, %v737
        %v770 = vsub.f32 %v706, %v738
        %v771 = vsub.f32 %v707, %v739
        %v772 = vsub.f32 %v708, %v740
        %v773 = vsub.f32 %v709, %v741
        %v774 = vsub.f32 %v710, %v742
        %v775 = vsub.f32 %v711, %v743
        %v776 = vsub.f32 %v712, %v744
        %v777 = vsub.f32 %v713, %v745
        %v778 = vsub.f32 %v714, %v746
        %v779 = vsub.f32 %v715, %v747
        %v780 = vsub.f32 %v716, %v748
        %v781 = vsub.f32 %v717, %v749
        %v782 = vsub.f32 %v718, %v750
        %v783 = vsub.f32 %v719, %v751
        %v784 = vsub.f32 %v720, %v752
        %v785 = vsub.f32 %v721, %v753
        %v786 = vsub.f32 %v722, %v754
        %v787 = vmax.f32 %v755, 0.0
        %v788 = vmax.f32 %v756, 0.0
        %v789 = vmax.f32 %v757, 0.0
        %v790 = vmax.f32 %v758, 0.0
        %v791 = vmax.f32 %v759, 0.0
        %v792 = vmax.f32 %v760, 0.0
        %v793 = vmax.f32 %v761, 0.0
        %v794 = vmax.f32 %v762, 0.0
        %v795 = vmax.f32 %v763, 0.0
        %v796 = vmax.f32 %v764, 0.0
        %v797 = vmax.f32 %v765, 0.0
        %v798 = vmax.f32 %v766, 0.0
        %v799 = vmax.f32 %v767, 0.0
        %v800 = vmax.f32 %v768, 0.0
        %v801 = vmax.f32 %v769, 0.0
        %v802 = vmax.f32 %v770, 0.0
        %v803 = vmax.f32 %v771, 0.0
        %v804 = vmax.f32 %v772, 0.0
        %v805 = vmax.f32 %v773, 0.0
        %v806 = vmax.f32 %v774, 0.0
        %v807 = vmax.f32 %v775, 0.0
        %v808 = vmax.f32 %v776, 0.0
        %v809 = vmax.f32 %v777, 0.0
        %v810 = vmax.f32 %v778, 0.0
        %v811 = vmax.f32 %v779, 0.0
        %v812 = vmax.f32 %v780, 0.0
        %v813 = vmax.f32 %v781, 0.0
        %v814 = vmax.f32 %v782, 0.0
        %v815 = vmax.f32 %v783, 0.0
        %v816 = vmax.f32 %v784, 0.0
        %v817 = vmax.f32 %v785, 0.0
        %v818 = vmax.f32 %v786, 0.0
        %v819 = vsub.f32 %v466, %v563
        %v820 = vsub.f32 %v467, %v564
        %v821 = vsub.f32 %v468, %v565
        %v822 = vsub.f32 %v469, %v566
        %v823 = vsub.f32 %v470, %v567
        %v824 = vsub.f32 %v471, %v568
        %v825 = vsub.f32 %v472, %v569
        %v826 = vsub.f32 %v473, %v570
        %v827 = vsub.f32 %v474, %v571
        %v828 = vsub.f32 %v475, %v572
        %v829 = vsub.f32 %v476, %v573
        %v830 = vsub.f32 %v477, %v574
        %v831 = vsub.f32 %v478, %v575
        %v832 = vsub.f32 %v479, %v576
        %v833 = vsub.f32 %v480, %v577
        %v834 = vsub.f32 %v481, %v578
        %v835 = vsub.f32 %v482, %v579
        %v836 = vsub.f32 %v483, %v580
        %v837 = vsub.f32 %v484, %v581
        %v838 = vsub.f32 %v485, %v582
        %v839 = vsub.f32 %v486, %v583
        %v840 = vsub.f32 %v487, %v584
        %v841 = vsub.f32 %v488, %v585
        %v842 = vsub.f32 %v489, %v586
        %v843 = vsub.f32 %v490, %v587
        %v844 = vsub.f32 %v491, %v588
        %v845 = vsub.f32 %v492, %v589
        %v846 = vsub.f32 %v493, %v590
        %v847 = vsub.f32 %v494, %v591
        %v848 = vsub.f32 %v495, %v592
        %v849 = vsub.f32 %v496, %v593
        %v850 = vsub.f32 %v497, %v594
        %v851 = vadd.f32 %v787, 1e-05
        %v852 = vadd.f32 %v788, 1e-05
        %v853 = vadd.f32 %v789, 1e-05
        %v854 = vadd.f32 %v790, 1e-05
        %v855 = vadd.f32 %v791, 1e-05
        %v856 = vadd.f32 %v792, 1e-05
        %v857 = vadd.f32 %v793, 1e-05
        %v858 = vadd.f32 %v794, 1e-05
        %v859 = vadd.f32 %v795, 1e-05
        %v860 = vadd.f32 %v796, 1e-05
        %v861 = vadd.f32 %v797, 1e-05
        %v862 = vadd.f32 %v798, 1e-05
        %v863 = vadd.f32 %v799, 1e-05
        %v864 = vadd.f32 %v800, 1e-05
        %v865 = vadd.f32 %v801, 1e-05
        %v866 = vadd.f32 %v802, 1e-05
        %v867 = vadd.f32 %v803, 1e-05
        %v868 = vadd.f32 %v804, 1e-05
        %v869 = vadd.f32 %v805, 1e-05
        %v870 = vadd.f32 %v806, 1e-05
        %v871 = vadd.f32 %v807, 1e-05
        %v872 = vadd.f32 %v808, 1e-05
        %v873 = vadd.f32 %v809, 1e-05
        %v874 = vadd.f32 %v810, 1e-05
        %v875 = vadd.f32 %v811, 1e-05
        %v876 = vadd.f32 %v812, 1e-05
        %v877 = vadd.f32 %v813, 1e-05
        %v878 = vadd.f32 %v814, 1e-05
        %v879 = vadd.f32 %v815, 1e-05
        %v880 = vadd.f32 %v816, 1e-05
        %v881 = vadd.f32 %v817, 1e-05
        %v882 = vadd.f32 %v818, 1e-05
        %v883 = vrsqrt.pop %v851
        %v884 = vrsqrt.pop %v852
        %v885 = vrsqrt.pop %v853
        %v886 = vrsqrt.pop %v854
        %v887 = vrsqrt.pop %v855
        %v888 = vrsqrt.pop %v856
        %v889 = vrsqrt.pop %v857
        %v890 = vrsqrt.pop %v858
        %v891 = vrsqrt.pop %v859
        %v892 = vrsqrt.pop %v860
        %v893 = vrsqrt.pop %v861
        %v894 = vrsqrt.pop %v862
        %v895 = vrsqrt.pop %v863
        %v896 = vrsqrt.pop %v864
        %v897 = vrsqrt.pop %v865
        %v898 = vrsqrt.pop %v866
        %v899 = vrsqrt.pop %v867
        %v900 = vrsqrt.pop %v868
        %v901 = vrsqrt.pop %v869
        %v902 = vrsqrt.pop %v870
        %v903 = vrsqrt.pop %v871
        %v904 = vrsqrt.pop %v872
        %v905 = vrsqrt.pop %v873
        %v906 = vrsqrt.pop %v874
        %v907 = vrsqrt.pop %v875
        %v908 = vrsqrt.pop %v876
        %v909 = vrsqrt.pop %v877
        %v910 = vrsqrt.pop %v878
        %v911 = vrsqrt.pop %v879
        %v912 = vrsqrt.pop %v880
        %v913 = vrsqrt.pop %v881
        %v914 = vrsqrt.pop %v882
        %v915 = vmul.f32 %v819, %v883
        %v916 = vmul.f32 %v820, %v884
        %v917 = vmul.f32 %v821, %v885
        %v918 = vmul.f32 %v822, %v886
        %v919 = vmul.f32 %v823, %v887
        %v920 = vmul.f32 %v824, %v888
        %v921 = vmul.f32 %v825, %v889
        %v922 = vmul.f32 %v826, %v890
        %v923 = vmul.f32 %v827, %v891
        %v924 = vmul.f32 %v828, %v892
        %v925 = vmul.f32 %v829, %v893
        %v926 = vmul.f32 %v830, %v894
        %v927 = vmul.f32 %v831, %v895
        %v928 = vmul.f32 %v832, %v896
        %v929 = vmul.f32 %v833, %v897
        %v930 = vmul.f32 %v834, %v898
        %v931 = vmul.f32 %v835, %v899
        %v932 = vmul.f32 %v836, %v900
        %v933 = vmul.f32 %v837, %v901
        %v934 = vmul.f32 %v838, %v902
        %v935 = vmul.f32 %v839, %v903
        %v936 = vmul.f32 %v840, %v904
        %v937 = vmul.f32 %v841, %v905
        %v938 = vmul.f32 %v842, %v906
        %v939 = vmul.f32 %v843, %v907
        %v940 = vmul.f32 %v844, %v908
        %v941 = vmul.f32 %v845, %v909
        %v942 = vmul.f32 %v846, %v910
        %v943 = vmul.f32 %v847, %v911
        %v944 = vmul.f32 %v848, %v912
        %v945 = vmul.f32 %v849, %v913
        %v946 = vmul.f32 %v850, %v914
        %v947 = vld [vmem:[%s3] sm:$0x1]
        %v949 = vlaneseq
        %v950 = vshrl.u32 %v949, 7
        %v951 = vsub.s32 0, %v950
        %v952 = vrot.slane %v947, %v951
        %v954 = vmul.f32 %v915, %v952
        %v955 = vmul.f32 %v916, %v952
        %v956 = vmul.f32 %v917, %v952
        %v957 = vmul.f32 %v918, %v952
        %v958 = vmul.f32 %v919, %v952
        %v959 = vmul.f32 %v920, %v952
        %v960 = vmul.f32 %v921, %v952
        %v961 = vmul.f32 %v922, %v952
        %v962 = vmul.f32 %v923, %v952
        %v963 = vmul.f32 %v924, %v952
        %v964 = vmul.f32 %v925, %v952
        %v965 = vmul.f32 %v926, %v952
        %v966 = vmul.f32 %v927, %v952
        %v967 = vmul.f32 %v928, %v952
        %v968 = vmul.f32 %v929, %v952
        %v969 = vmul.f32 %v930, %v952
        %v970 = vmul.f32 %v931, %v952
        %v971 = vmul.f32 %v932, %v952
        %v972 = vmul.f32 %v933, %v952
        %v973 = vmul.f32 %v934, %v952
        %v974 = vmul.f32 %v935, %v952
        %v975 = vmul.f32 %v936, %v952
        %v976 = vmul.f32 %v937, %v952
        %v977 = vmul.f32 %v938, %v952
        %v978 = vmul.f32 %v939, %v952
        %v979 = vmul.f32 %v940, %v952
        %v980 = vmul.f32 %v941, %v952
        %v981 = vmul.f32 %v942, %v952
        %v982 = vmul.f32 %v943, %v952
        %v983 = vmul.f32 %v944, %v952
        %v984 = vmul.f32 %v945, %v952
        %v985 = vmul.f32 %v946, %v952
        %v986 = vld [vmem:[%s4] sm:$0x1]
        %v988 = vlaneseq
        %v989 = vshrl.u32 %v988, 7
        %v990 = vsub.s32 0, %v989
        %v991 = vrot.slane %v986, %v990
        %v993 = vadd.f32 %v954, %v991
        %v994 = vadd.f32 %v955, %v991
        %v995 = vadd.f32 %v956, %v991
        %v996 = vadd.f32 %v957, %v991
        %v997 = vadd.f32 %v958, %v991
        %v998 = vadd.f32 %v959, %v991
        %v999 = vadd.f32 %v960, %v991
        %v1000 = vadd.f32 %v961, %v991
        %v1001 = vadd.f32 %v962, %v991
        %v1002 = vadd.f32 %v963, %v991
        %v1003 = vadd.f32 %v964, %v991
        %v1004 = vadd.f32 %v965, %v991
        %v1005 = vadd.f32 %v966, %v991
        %v1006 = vadd.f32 %v967, %v991
        %v1007 = vadd.f32 %v968, %v991
        %v1008 = vadd.f32 %v969, %v991
        %v1009 = vadd.f32 %v970, %v991
        %v1010 = vadd.f32 %v971, %v991
        %v1011 = vadd.f32 %v972, %v991
        %v1012 = vadd.f32 %v973, %v991
        %v1013 = vadd.f32 %v974, %v991
        %v1014 = vadd.f32 %v975, %v991
        %v1015 = vadd.f32 %v976, %v991
        %v1016 = vadd.f32 %v977, %v991
        %v1017 = vadd.f32 %v978, %v991
        %v1018 = vadd.f32 %v979, %v991
        %v1019 = vadd.f32 %v980, %v991
        %v1020 = vadd.f32 %v981, %v991
        %v1021 = vadd.f32 %v982, %v991
        %v1022 = vadd.f32 %v983, %v991
        %v1023 = vadd.f32 %v984, %v991
        %v1024 = vadd.f32 %v985, %v991
        %v1025 = vpack.c.bf16 %v994, %v993
        %v1026 = vpack.c.bf16 %v996, %v995
        %v1027 = vpack.c.bf16 %v998, %v997
        %v1028 = vpack.c.bf16 %v1000, %v999
        %v1029 = vpack.c.bf16 %v1002, %v1001
        %v1030 = vpack.c.bf16 %v1004, %v1003
        %v1031 = vpack.c.bf16 %v1006, %v1005
        %v1032 = vpack.c.bf16 %v1008, %v1007
        %v1033 = vpack.c.bf16 %v1010, %v1009
        %v1034 = vpack.c.bf16 %v1012, %v1011
        %v1035 = vpack.c.bf16 %v1014, %v1013
        %v1036 = vpack.c.bf16 %v1016, %v1015
        %v1037 = vpack.c.bf16 %v1018, %v1017
        %v1038 = vpack.c.bf16 %v1020, %v1019
        %v1039 = vpack.c.bf16 %v1022, %v1021
        %v1040 = vpack.c.bf16 %v1024, %v1023
        %v1041 = vld [vmem:[#allocation7] sm:$0xf]
        %v1042 = vld [vmem:[#allocation7 + $0x4] sm:$0xf]
        %v1043 = vld [vmem:[#allocation7 + $0x8] sm:$0xf]
        %v1044 = vld [vmem:[#allocation7 + $0xc] sm:$0xf]
        %v1045 = vld [vmem:[#allocation7 + $0x10] sm:$0xf]
        %v1046 = vld [vmem:[#allocation7 + $0x14] sm:$0xf]
        %v1047 = vld [vmem:[#allocation7 + $0x18] sm:$0xf]
        %v1048 = vld [vmem:[#allocation7 + $0x1c] sm:$0xf]
        %v1049 = vld [vmem:[#allocation7 + $0x20] sm:$0xf]
        %v1050 = vld [vmem:[#allocation7 + $0x24] sm:$0xf]
        %v1051 = vld [vmem:[#allocation7 + $0x28] sm:$0xf]
        %v1052 = vld [vmem:[#allocation7 + $0x2c] sm:$0xf]
        %v1053 = vld [vmem:[#allocation7 + $0x30] sm:$0xf]
        %v1054 = vld [vmem:[#allocation7 + $0x34] sm:$0xf]
        %v1055 = vld [vmem:[#allocation7 + $0x38] sm:$0xf]
        %v1056 = vld [vmem:[#allocation7 + $0x3c] sm:$0xf]
        %v1057 = vld [vmem:[%s6] sm:$0x1]
        %v1059 = vlaneseq
        %v1060 = vshrl.u32 %v1059, 7
        %v1061 = vsub.s32 0, %v1060
        %v1062 = vrot.slane %v1057, %v1061
        %v1080 = vunpack.c.l.b16 %v1041
        %v1081 = vunpack.c.l.b16 %v1042
        %v1082 = vunpack.c.l.b16 %v1043
        %v1083 = vunpack.c.l.b16 %v1044
        %v1084 = vunpack.c.l.b16 %v1045
        %v1085 = vunpack.c.l.b16 %v1046
        %v1086 = vunpack.c.l.b16 %v1047
        %v1087 = vunpack.c.l.b16 %v1048
        %v1088 = vunpack.c.l.b16 %v1049
        %v1089 = vunpack.c.l.b16 %v1050
        %v1090 = vunpack.c.l.b16 %v1051
        %v1091 = vunpack.c.l.b16 %v1052
        %v1092 = vunpack.c.l.b16 %v1053
        %v1093 = vunpack.c.l.b16 %v1054
        %v1094 = vunpack.c.l.b16 %v1055
        %v1095 = vunpack.c.l.b16 %v1056
        %v1096 = vpack.c.b16 %v1081, %v1080
        %v1097 = vpack.c.b16 %v1083, %v1082
        %v1098 = vpack.c.b16 %v1085, %v1084
        %v1099 = vpack.c.b16 %v1087, %v1086
        %v1100 = vpack.c.b16 %v1089, %v1088
        %v1101 = vpack.c.b16 %v1091, %v1090
        %v1102 = vpack.c.b16 %v1093, %v1092
        %v1103 = vpack.c.b16 %v1095, %v1094
        %1112 = vmatprep.subr.bf16.mxu0 0
        %1113 = vmatpush1.bf16.msra.mxu0 %v1096
        %1114 = vmatprep.subr.bf16.mxu0 0
        %1115 = vmatpush1.bf16.msra.mxu0 %v1097
        %1116 = vmatprep.subr.bf16.mxu0 0
        %1117 = vmatpush1.bf16.msra.mxu0 %v1098
        %1118 = vmatprep.subr.bf16.mxu0 0
        %1119 = vmatpush1.bf16.msra.mxu0 %v1099
        %1120 = vmatprep.subr.bf16.mxu0 0
        %1121 = vmatpush1.bf16.msra.mxu0 %v1100
        %1122 = vmatprep.subr.bf16.mxu0 0
        %1123 = vmatpush1.bf16.msra.mxu0 %v1101
        %1124 = vmatprep.subr.bf16.mxu0 0
        %1125 = vmatpush1.bf16.msra.mxu0 %v1102
        %1126 = vmatprep.subr.bf16.mxu0 0
        %1127 = vmatpush1.bf16.msra.mxu0 %v1103
        %1128 = vmatprep.subr.bf16.mxu0 0
        %1129 = vmatpush1.bf16.msra.mxu0 0
        %1130 = vmatprep.subr.bf16.mxu0 0
        %1131 = vmatpush1.bf16.msra.mxu0 0
        %1132 = vmatprep.subr.bf16.mxu0 0
        %1133 = vmatpush1.bf16.msra.mxu0 0
        %1134 = vmatprep.subr.bf16.mxu0 0
        %1135 = vmatpush1.bf16.msra.mxu0 0
        %1136 = vmatprep.subr.bf16.mxu0 0
        %1137 = vmatpush1.bf16.msra.mxu0 0
        %1138 = vmatprep.subr.bf16.mxu0 0
        %1139 = vmatpush1.bf16.msra.mxu0 0
        %1140 = vmatprep.subr.bf16.mxu0 0
        %1141 = vmatpush1.bf16.msra.mxu0 0
        %1142 = vmatprep.subr.bf16.mxu0 0
        %1143 = vmatpush1.bf16.msra.mxu0 0
        %1144 = vmatprep.mubr.bf16.mxu0 0
        %1145 = vmatmul.mubr.bf16.gmra.mrb[0].mxu0 %v1025
        %v1146 = vpop.f32.mrb[0].mxu0
        %v1147 = vadd.f32 %v1062, %v1146
        %v1148 = vpop.f32.mrb[0].mxu0
        %v1149 = vpop.f32.mrb[0].mxu0
        %v1150 = vadd.f32 %v1062, %v1149
        %v1151 = vpop.f32.mrb[0].mxu0
        %1152 = vmatprep.mubr.bf16.mxu0 0
        %1153 = vmatmul.mubr.bf16.gmra.mrb[0].mxu0 %v1026
        %v1154 = vpop.f32.mrb[0].mxu0
        %v1155 = vadd.f32 %v1062, %v1154
        %v1156 = vpop.f32.mrb[0].mxu0
        %v1157 = vpop.f32.mrb[0].mxu0
        %v1158 = vadd.f32 %v1062, %v1157
        %v1159 = vpop.f32.mrb[0].mxu0
        %1160 = vmatprep.mubr.bf16.mxu0 0
        %1161 = vmatmul.mubr.bf16.gmra.mrb[0].mxu0 %v1027
        %v1162 = vpop.f32.mrb[0].mxu0
        %v1163 = vadd.f32 %v1062, %v1162
        %v1164 = vpop.f32.mrb[0].mxu0
        %v1165 = vpop.f32.mrb[0].mxu0
        %v1166 = vadd.f32 %v1062, %v1165
        %v1167 = vpop.f32.mrb[0].mxu0
        %1168 = vmatprep.mubr.bf16.mxu0 0
        %1169 = vmatmul.mubr.bf16.gmra.mrb[0].mxu0 %v1028
        %v1170 = vpop.f32.mrb[0].mxu0
        %v1171 = vadd.f32 %v1062, %v1170
        %v1172 = vpop.f32.mrb[0].mxu0
        %v1173 = vpop.f32.mrb[0].mxu0
        %v1174 = vadd.f32 %v1062, %v1173
        %v1175 = vpop.f32.mrb[0].mxu0
        %1176 = vmatprep.mubr.bf16.mxu0 0
        %1177 = vmatmul.mubr.bf16.gmra.mrb[0].mxu0 %v1029
        %v1178 = vpop.f32.mrb[0].mxu0
        %v1179 = vadd.f32 %v1062, %v1178
        %v1180 = vpop.f32.mrb[0].mxu0
        %v1181 = vpop.f32.mrb[0].mxu0
        %v1182 = vadd.f32 %v1062, %v1181
        %v1183 = vpop.f32.mrb[0].mxu0
        %1184 = vmatprep.mubr.bf16.mxu0 0
        %1185 = vmatmul.mubr.bf16.gmra.mrb[0].mxu0 %v1030
        %v1186 = vpop.f32.mrb[0].mxu0
        %v1187 = vadd.f32 %v1062, %v1186
        %v1188 = vpop.f32.mrb[0].mxu0
        %v1189 = vpop.f32.mrb[0].mxu0
        %v1190 = vadd.f32 %v1062, %v1189
        %v1191 = vpop.f32.mrb[0].mxu0
        %1192 = vmatprep.mubr.bf16.mxu0 0
        %1193 = vmatmul.mubr.bf16.gmra.mrb[0].mxu0 %v1031
        %v1194 = vpop.f32.mrb[0].mxu0
        %v1195 = vadd.f32 %v1062, %v1194
        %v1196 = vpop.f32.mrb[0].mxu0
        %v1197 = vpop.f32.mrb[0].mxu0
        %v1198 = vadd.f32 %v1062, %v1197
        %v1199 = vpop.f32.mrb[0].mxu0
        %1200 = vmatprep.mubr.bf16.mxu0 0
        %1201 = vmatmul.mubr.bf16.gmra.mrb[0].mxu0 %v1032
        %v1202 = vpop.f32.mrb[0].mxu0
        %v1203 = vadd.f32 %v1062, %v1202
        %v1204 = vpop.f32.mrb[0].mxu0
        %v1205 = vpop.f32.mrb[0].mxu0
        %v1206 = vadd.f32 %v1062, %v1205
        %v1207 = vpop.f32.mrb[0].mxu0
        %1208 = vmatprep.mubr.bf16.mxu0 0
        %1209 = vmatmul.mubr.bf16.gmra.mrb[0].mxu0 %v1033
        %v1210 = vpop.f32.mrb[0].mxu0
        %v1211 = vadd.f32 %v1062, %v1210
        %v1212 = vpop.f32.mrb[0].mxu0
        %v1213 = vpop.f32.mrb[0].mxu0
        %v1214 = vadd.f32 %v1062, %v1213
        %v1215 = vpop.f32.mrb[0].mxu0
        %1216 = vmatprep.mubr.bf16.mxu0 0
        %1217 = vmatmul.mubr.bf16.gmra.mrb[0].mxu0 %v1034
        %v1218 = vpop.f32.mrb[0].mxu0
        %v1219 = vadd.f32 %v1062, %v1218
        %v1220 = vpop.f32.mrb[0].mxu0
        %v1221 = vpop.f32.mrb[0].mxu0
        %v1222 = vadd.f32 %v1062, %v1221
        %v1223 = vpop.f32.mrb[0].mxu0
        %1224 = vmatprep.mubr.bf16.mxu0 0
        %1225 = vmatmul.mubr.bf16.gmra.mrb[0].mxu0 %v1035
        %v1226 = vpop.f32.mrb[0].mxu0
        %v1227 = vadd.f32 %v1062, %v1226
        %v1228 = vpop.f32.mrb[0].mxu0
        %v1229 = vpop.f32.mrb[0].mxu0
        %v1230 = vadd.f32 %v1062, %v1229
        %v1231 = vpop.f32.mrb[0].mxu0
        %1232 = vmatprep.mubr.bf16.mxu0 0
        %1233 = vmatmul.mubr.bf16.gmra.mrb[0].mxu0 %v1036
        %v1234 = vpop.f32.mrb[0].mxu0
        %v1235 = vadd.f32 %v1062, %v1234
        %v1236 = vpop.f32.mrb[0].mxu0
        %v1237 = vpop.f32.mrb[0].mxu0
        %v1238 = vadd.f32 %v1062, %v1237
        %v1239 = vpop.f32.mrb[0].mxu0
        %1240 = vmatprep.mubr.bf16.mxu0 0
        %1241 = vmatmul.mubr.bf16.gmra.mrb[0].mxu0 %v1037
        %v1242 = vpop.f32.mrb[0].mxu0
        %v1243 = vadd.f32 %v1062, %v1242
        %v1244 = vpop.f32.mrb[0].mxu0
        %v1245 = vpop.f32.mrb[0].mxu0
        %v1246 = vadd.f32 %v1062, %v1245
        %v1247 = vpop.f32.mrb[0].mxu0
        %1248 = vmatprep.mubr.bf16.mxu0 0
        %1249 = vmatmul.mubr.bf16.gmra.mrb[0].mxu0 %v1038
        %v1250 = vpop.f32.mrb[0].mxu0
        %v1251 = vadd.f32 %v1062, %v1250
        %v1252 = vpop.f32.mrb[0].mxu0
        %v1253 = vpop.f32.mrb[0].mxu0
        %v1254 = vadd.f32 %v1062, %v1253
        %v1255 = vpop.f32.mrb[0].mxu0
        %1256 = vmatprep.mubr.bf16.mxu0 0
        %1257 = vmatmul.mubr.bf16.gmra.mrb[0].mxu0 %v1039
        %v1258 = vpop.f32.mrb[0].mxu0
        %v1259 = vadd.f32 %v1062, %v1258
        %v1260 = vpop.f32.mrb[0].mxu0
        %v1261 = vpop.f32.mrb[0].mxu0
        %v1262 = vadd.f32 %v1062, %v1261
        %v1263 = vpop.f32.mrb[0].mxu0
        %1264 = vmatprep.mubr.bf16.mxu0 0
        %1265 = vmatmul.mubr.bf16.gmra.mrb[0].mxu0 %v1040
        %v1266 = vpop.f32.mrb[0].mxu0
        %v1267 = vadd.f32 %v1062, %v1266
        %v1268 = vpop.f32.mrb[0].mxu0
        %v1269 = vpop.f32.mrb[0].mxu0
        %v1270 = vadd.f32 %v1062, %v1269
        %v1271 = vpop.f32.mrb[0].mxu0
        %1272 = vdwg.mxu0
        %v1273 = vpack.c.bf16 %v1150, %v1147
        %v1274 = vpack.c.bf16 %v1158, %v1155
        %v1275 = vpack.c.bf16 %v1166, %v1163
        %v1276 = vpack.c.bf16 %v1174, %v1171
        %v1277 = vpack.c.bf16 %v1182, %v1179
        %v1278 = vpack.c.bf16 %v1190, %v1187
        %v1279 = vpack.c.bf16 %v1198, %v1195
        %v1280 = vpack.c.bf16 %v1206, %v1203
        %v1281 = vpack.c.bf16 %v1214, %v1211
        %v1282 = vpack.c.bf16 %v1222, %v1219
        %v1283 = vpack.c.bf16 %v1230, %v1227
        %v1284 = vpack.c.bf16 %v1238, %v1235
        %v1285 = vpack.c.bf16 %v1246, %v1243
        %v1286 = vpack.c.bf16 %v1254, %v1251
        %v1287 = vpack.c.bf16 %v1262, %v1259
        %v1288 = vpack.c.bf16 %v1270, %v1267
        %v1289 = vld [vmem:[#allocation5] sm:$0xf]
        %v1290 = vld [vmem:[#allocation5 + $0x4] sm:$0xf]
        %v1291 = vld [vmem:[#allocation5 + $0x8] sm:$0xf]
        %v1292 = vld [vmem:[#allocation5 + $0xc] sm:$0xf]
        %v1293 = vld [vmem:[#allocation5 + $0x10] sm:$0xf]
        %v1294 = vld [vmem:[#allocation5 + $0x14] sm:$0xf]
        %v1295 = vld [vmem:[#allocation5 + $0x18] sm:$0xf]
        %v1296 = vld [vmem:[#allocation5 + $0x1c] sm:$0xf]
        %v1297 = vld [vmem:[#allocation5 + $0x20] sm:$0xf]
        %v1298 = vld [vmem:[#allocation5 + $0x24] sm:$0xf]
        %v1299 = vld [vmem:[#allocation5 + $0x28] sm:$0xf]
        %v1300 = vld [vmem:[#allocation5 + $0x2c] sm:$0xf]
        %v1301 = vld [vmem:[#allocation5 + $0x30] sm:$0xf]
        %v1302 = vld [vmem:[#allocation5 + $0x34] sm:$0xf]
        %v1303 = vld [vmem:[#allocation5 + $0x38] sm:$0xf]
        %v1304 = vld [vmem:[#allocation5 + $0x3c] sm:$0xf]
        %v1305 = vld [vmem:[%s2] sm:$0x1]
        %v1307 = vlaneseq
        %v1308 = vshrl.u32 %v1307, 7
        %v1309 = vsub.s32 0, %v1308
        %v1310 = vrot.slane %v1305, %v1309
        %v1328 = vunpack.c.l.b16 %v1289
        %v1329 = vunpack.c.l.b16 %v1290
        %v1330 = vunpack.c.l.b16 %v1291
        %v1331 = vunpack.c.l.b16 %v1292
        %v1332 = vunpack.c.l.b16 %v1293
        %v1333 = vunpack.c.l.b16 %v1294
        %v1334 = vunpack.c.l.b16 %v1295
        %v1335 = vunpack.c.l.b16 %v1296
        %v1336 = vunpack.c.l.b16 %v1297
        %v1337 = vunpack.c.l.b16 %v1298
        %v1338 = vunpack.c.l.b16 %v1299
        %v1339 = vunpack.c.l.b16 %v1300
        %v1340 = vunpack.c.l.b16 %v1301
        %v1341 = vunpack.c.l.b16 %v1302
        %v1342 = vunpack.c.l.b16 %v1303
        %v1343 = vunpack.c.l.b16 %v1304
        %v1344 = vpack.c.b16 %v1329, %v1328
        %v1345 = vpack.c.b16 %v1331, %v1330
        %v1346 = vpack.c.b16 %v1333, %v1332
        %v1347 = vpack.c.b16 %v1335, %v1334
        %v1348 = vpack.c.b16 %v1337, %v1336
        %v1349 = vpack.c.b16 %v1339, %v1338
        %v1350 = vpack.c.b16 %v1341, %v1340
        %v1351 = vpack.c.b16 %v1343, %v1342
        %1360 = vmatprep.subr.bf16.mxu0 0
        %1361 = vmatpush1.bf16.xpose.msra.mxu0 %v1344
        %1362 = vmatprep.subr.bf16.mxu0 0
        %1363 = vmatpush1.bf16.xpose.msra.mxu0 %v1345
        %1364 = vmatprep.subr.bf16.mxu0 0
        %1365 = vmatpush1.bf16.xpose.msra.mxu0 %v1346
        %1366 = vmatprep.subr.bf16.mxu0 0
        %1367 = vmatpush1.bf16.xpose.msra.mxu0 %v1347
        %1368 = vmatprep.subr.bf16.mxu0 0
        %1369 = vmatpush1.bf16.xpose.msra.mxu0 %v1348
        %1370 = vmatprep.subr.bf16.mxu0 0
        %1371 = vmatpush1.bf16.xpose.msra.mxu0 %v1349
        %1372 = vmatprep.subr.bf16.mxu0 0
        %1373 = vmatpush1.bf16.xpose.msra.mxu0 %v1350
        %1374 = vmatprep.subr.bf16.mxu0 0
        %1375 = vmatpush1.bf16.xpose.msra.mxu0 %v1351
        %1376 = vmatprep.subr.bf16.mxu0 0
        %1377 = vmatpush1.bf16.xpose.msra.mxu0 0
        %1378 = vmatprep.subr.bf16.mxu0 0
        %1379 = vmatpush1.bf16.xpose.msra.mxu0 0
        %1380 = vmatprep.subr.bf16.mxu0 0
        %1381 = vmatpush1.bf16.xpose.msra.mxu0 0
        %1382 = vmatprep.subr.bf16.mxu0 0
        %1383 = vmatpush1.bf16.xpose.msra.mxu0 0
        %1384 = vmatprep.subr.bf16.mxu0 0
        %1385 = vmatpush1.bf16.xpose.msra.mxu0 0
        %1386 = vmatprep.subr.bf16.mxu0 0
        %1387 = vmatpush1.bf16.xpose.msra.mxu0 0
        %1388 = vmatprep.subr.bf16.mxu0 0
        %1389 = vmatpush1.bf16.xpose.msra.mxu0 0
        %1390 = vmatprep.subr.bf16.mxu0 0
        %1391 = vmatpush1.bf16.xpose.msra.mxu0 0
        %1392 = vmatprep.mubr.bf16.mxu0 0
        %1393 = vmatmul.mubr.bf16.gmra.mrb[0].mxu0 %v1273
        %v1394 = vpop.f32.mrb[0].mxu0
        %v1395 = vadd.f32 %v1310, %v1394
        %v1396 = vpop.f32.mrb[0].mxu0
        %v1397 = vpop.f32.mrb[0].mxu0
        %v1398 = vadd.f32 %v1310, %v1397
        %v1399 = vpop.f32.mrb[0].mxu0
        %1400 = vmatprep.mubr.bf16.mxu0 0
        %1401 = vmatmul.mubr.bf16.gmra.mrb[0].mxu0 %v1274
        %v1402 = vpop.f32.mrb[0].mxu0
        %v1403 = vadd.f32 %v1310, %v1402
        %v1404 = vpop.f32.mrb[0].mxu0
        %v1405 = vpop.f32.mrb[0].mxu0
        %v1406 = vadd.f32 %v1310, %v1405
        %v1407 = vpop.f32.mrb[0].mxu0
        %1408 = vmatprep.mubr.bf16.mxu0 0
        %1409 = vmatmul.mubr.bf16.gmra.mrb[0].mxu0 %v1275
        %v1410 = vpop.f32.mrb[0].mxu0
        %v1411 = vadd.f32 %v1310, %v1410
        %v1412 = vpop.f32.mrb[0].mxu0
        %v1413 = vpop.f32.mrb[0].mxu0
        %v1414 = vadd.f32 %v1310, %v1413
        %v1415 = vpop.f32.mrb[0].mxu0
        %1416 = vmatprep.mubr.bf16.mxu0 0
        %1417 = vmatmul.mubr.bf16.gmra.mrb[0].mxu0 %v1276
        %v1418 = vpop.f32.mrb[0].mxu0
        %v1419 = vadd.f32 %v1310, %v1418
        %v1420 = vpop.f32.mrb[0].mxu0
        %v1421 = vpop.f32.mrb[0].mxu0
        %v1422 = vadd.f32 %v1310, %v1421
        %v1423 = vpop.f32.mrb[0].mxu0
        %1424 = vmatprep.mubr.bf16.mxu0 0
        %1425 = vmatmul.mubr.bf16.gmra.mrb[0].mxu0 %v1277
        %v1426 = vpop.f32.mrb[0].mxu0
        %v1427 = vadd.f32 %v1310, %v1426
        %v1428 = vpop.f32.mrb[0].mxu0
        %v1429 = vpop.f32.mrb[0].mxu0
        %v1430 = vadd.f32 %v1310, %v1429
        %v1431 = vpop.f32.mrb[0].mxu0
        %1432 = vmatprep.mubr.bf16.mxu0 0
        %1433 = vmatmul.mubr.bf16.gmra.mrb[0].mxu0 %v1278
        %v1434 = vpop.f32.mrb[0].mxu0
        %v1435 = vadd.f32 %v1310, %v1434
        %v1436 = vpop.f32.mrb[0].mxu0
        %v1437 = vpop.f32.mrb[0].mxu0
        %v1438 = vadd.f32 %v1310, %v1437
        %v1439 = vpop.f32.mrb[0].mxu0
        %1440 = vmatprep.mubr.bf16.mxu0 0
        %1441 = vmatmul.mubr.bf16.gmra.mrb[0].mxu0 %v1279
        %v1442 = vpop.f32.mrb[0].mxu0
        %v1443 = vadd.f32 %v1310, %v1442
        %v1444 = vpop.f32.mrb[0].mxu0
        %v1445 = vpop.f32.mrb[0].mxu0
        %v1446 = vadd.f32 %v1310, %v1445
        %v1447 = vpop.f32.mrb[0].mxu0
        %1448 = vmatprep.mubr.bf16.mxu0 0
        %1449 = vmatmul.mubr.bf16.gmra.mrb[0].mxu0 %v1280
        %v1450 = vpop.f32.mrb[0].mxu0
        %v1451 = vadd.f32 %v1310, %v1450
        %v1452 = vpop.f32.mrb[0].mxu0
        %v1453 = vpop.f32.mrb[0].mxu0
        %v1454 = vadd.f32 %v1310, %v1453
        %v1455 = vpop.f32.mrb[0].mxu0
        %1456 = vmatprep.mubr.bf16.mxu0 0
        %1457 = vmatmul.mubr.bf16.gmra.mrb[0].mxu0 %v1281
        %v1458 = vpop.f32.mrb[0].mxu0
        %v1459 = vadd.f32 %v1310, %v1458
        %v1460 = vpop.f32.mrb[0].mxu0
        %v1461 = vpop.f32.mrb[0].mxu0
        %v1462 = vadd.f32 %v1310, %v1461
        %v1463 = vpop.f32.mrb[0].mxu0
        %1464 = vmatprep.mubr.bf16.mxu0 0
        %1465 = vmatmul.mubr.bf16.gmra.mrb[0].mxu0 %v1282
        %v1466 = vpop.f32.mrb[0].mxu0
        %v1467 = vadd.f32 %v1310, %v1466
        %v1468 = vpop.f32.mrb[0].mxu0
        %v1469 = vpop.f32.mrb[0].mxu0
        %v1470 = vadd.f32 %v1310, %v1469
        %v1471 = vpop.f32.mrb[0].mxu0
        %1472 = vmatprep.mubr.bf16.mxu0 0
        %1473 = vmatmul.mubr.bf16.gmra.mrb[0].mxu0 %v1283
        %v1474 = vpop.f32.mrb[0].mxu0
        %v1475 = vadd.f32 %v1310, %v1474
        %v1476 = vpop.f32.mrb[0].mxu0
        %v1477 = vpop.f32.mrb[0].mxu0
        %v1478 = vadd.f32 %v1310, %v1477
        %v1479 = vpop.f32.mrb[0].mxu0
        %1480 = vmatprep.mubr.bf16.mxu0 0
        %1481 = vmatmul.mubr.bf16.gmra.mrb[0].mxu0 %v1284
        %v1482 = vpop.f32.mrb[0].mxu0
        %v1483 = vadd.f32 %v1310, %v1482
        %v1484 = vpop.f32.mrb[0].mxu0
        %v1485 = vpop.f32.mrb[0].mxu0
        %v1486 = vadd.f32 %v1310, %v1485
        %v1487 = vpop.f32.mrb[0].mxu0
        %1488 = vmatprep.mubr.bf16.mxu0 0
        %1489 = vmatmul.mubr.bf16.gmra.mrb[0].mxu0 %v1285
        %v1490 = vpop.f32.mrb[0].mxu0
        %v1491 = vadd.f32 %v1310, %v1490
        %v1492 = vpop.f32.mrb[0].mxu0
        %v1493 = vpop.f32.mrb[0].mxu0
        %v1494 = vadd.f32 %v1310, %v1493
        %v1495 = vpop.f32.mrb[0].mxu0
        %1496 = vmatprep.mubr.bf16.mxu0 0
        %1497 = vmatmul.mubr.bf16.gmra.mrb[0].mxu0 %v1286
        %v1498 = vpop.f32.mrb[0].mxu0
        %v1499 = vadd.f32 %v1310, %v1498
        %v1500 = vpop.f32.mrb[0].mxu0
        %v1501 = vpop.f32.mrb[0].mxu0
        %v1502 = vadd.f32 %v1310, %v1501
        %v1503 = vpop.f32.mrb[0].mxu0
        %1504 = vmatprep.mubr.bf16.mxu0 0
        %1505 = vmatmul.mubr.bf16.gmra.mrb[0].mxu0 %v1287
        %v1506 = vpop.f32.mrb[0].mxu0
        %v1507 = vadd.f32 %v1310, %v1506
        %v1508 = vpop.f32.mrb[0].mxu0
        %v1509 = vpop.f32.mrb[0].mxu0
        %v1510 = vadd.f32 %v1310, %v1509
        %v1511 = vpop.f32.mrb[0].mxu0
        %1512 = vmatprep.mubr.bf16.mxu0 0
        %1513 = vmatmul.mubr.bf16.gmra.mrb[0].mxu0 %v1288
        %v1514 = vpop.f32.mrb[0].mxu0
        %v1515 = vadd.f32 %v1310, %v1514
        %v1516 = vpop.f32.mrb[0].mxu0
        %v1517 = vpop.f32.mrb[0].mxu0
        %v1518 = vadd.f32 %v1310, %v1517
        %v1519 = vpop.f32.mrb[0].mxu0
        %1520 = vdwg.mxu0
        %1521 = vmax.xlane.f32.xlu0 %v1395
        %v1522 = vpop.xlane.xlu0 %1521
        %1523 = vmax.xlane.f32.xlu0 %v1398
        %v1524 = vpop.xlane.xlu0 %1523
        %1525 = vmax.xlane.f32.xlu0 %v1403
        %v1526 = vpop.xlane.xlu0 %1525
        %1527 = vmax.xlane.f32.xlu0 %v1406
        %v1528 = vpop.xlane.xlu0 %1527
        %1529 = vmax.xlane.f32.xlu0 %v1411
        %v1530 = vpop.xlane.xlu0 %1529
        %1531 = vmax.xlane.f32.xlu0 %v1414
        %v1532 = vpop.xlane.xlu0 %1531
        %1533 = vmax.xlane.f32.xlu0 %v1419
        %v1534 = vpop.xlane.xlu0 %1533
        %1535 = vmax.xlane.f32.xlu0 %v1422
        %v1536 = vpop.xlane.xlu0 %1535
        %1537 = vmax.xlane.f32.xlu0 %v1427
        %v1538 = vpop.xlane.xlu0 %1537
        %1539 = vmax.xlane.f32.xlu0 %v1430
        %v1540 = vpop.xlane.xlu0 %1539
        %1541 = vmax.xlane.f32.xlu0 %v1435
        %v1542 = vpop.xlane.xlu0 %1541
        %1543 = vmax.xlane.f32.xlu0 %v1438
        %v1544 = vpop.xlane.xlu0 %1543
        %1545 = vmax.xlane.f32.xlu0 %v1443
        %v1546 = vpop.xlane.xlu0 %1545
        %1547 = vmax.xlane.f32.xlu0 %v1446
        %v1548 = vpop.xlane.xlu0 %1547
        %1549 = vmax.xlane.f32.xlu0 %v1451
        %v1550 = vpop.xlane.xlu0 %1549
        %1551 = vmax.xlane.f32.xlu0 %v1454
        %v1552 = vpop.xlane.xlu0 %1551
        %1553 = vmax.xlane.f32.xlu0 %v1459
        %v1554 = vpop.xlane.xlu0 %1553
        %1555 = vmax.xlane.f32.xlu0 %v1462
        %v1556 = vpop.xlane.xlu0 %1555
        %1557 = vmax.xlane.f32.xlu0 %v1467
        %v1558 = vpop.xlane.xlu0 %1557
        %1559 = vmax.xlane.f32.xlu0 %v1470
        %v1560 = vpop.xlane.xlu0 %1559
        %1561 = vmax.xlane.f32.xlu0 %v1475
        %v1562 = vpop.xlane.xlu0 %1561
        %1563 = vmax.xlane.f32.xlu0 %v1478
        %v1564 = vpop.xlane.xlu0 %1563
        %1565 = vmax.xlane.f32.xlu0 %v1483
        %v1566 = vpop.xlane.xlu0 %1565
        %1567 = vmax.xlane.f32.xlu0 %v1486
        %v1568 = vpop.xlane.xlu0 %1567
        %1569 = vmax.xlane.f32.xlu0 %v1491
        %v1570 = vpop.xlane.xlu0 %1569
        %1571 = vmax.xlane.f32.xlu0 %v1494
        %v1572 = vpop.xlane.xlu0 %1571
        %1573 = vmax.xlane.f32.xlu0 %v1499
        %v1574 = vpop.xlane.xlu0 %1573
        %1575 = vmax.xlane.f32.xlu0 %v1502
        %v1576 = vpop.xlane.xlu0 %1575
        %1577 = vmax.xlane.f32.xlu0 %v1507
        %v1578 = vpop.xlane.xlu0 %1577
        %1579 = vmax.xlane.f32.xlu0 %v1510
        %v1580 = vpop.xlane.xlu0 %1579
        %1581 = vmax.xlane.f32.xlu0 %v1515
        %v1582 = vpop.xlane.xlu0 %1581
        %1583 = vmax.xlane.f32.xlu0 %v1518
        %v1584 = vpop.xlane.xlu0 %1583
        %v1585 = vsub.f32 %v1395, %v1522
        %v1586 = vsub.f32 %v1398, %v1524
        %v1587 = vsub.f32 %v1403, %v1526
        %v1588 = vsub.f32 %v1406, %v1528
        %v1589 = vsub.f32 %v1411, %v1530
        %v1590 = vsub.f32 %v1414, %v1532
        %v1591 = vsub.f32 %v1419, %v1534
        %v1592 = vsub.f32 %v1422, %v1536
        %v1593 = vsub.f32 %v1427, %v1538
        %v1594 = vsub.f32 %v1430, %v1540
        %v1595 = vsub.f32 %v1435, %v1542
        %v1596 = vsub.f32 %v1438, %v1544
        %v1597 = vsub.f32 %v1443, %v1546
        %v1598 = vsub.f32 %v1446, %v1548
        %v1599 = vsub.f32 %v1451, %v1550
        %v1600 = vsub.f32 %v1454, %v1552
        %v1601 = vsub.f32 %v1459, %v1554
        %v1602 = vsub.f32 %v1462, %v1556
        %v1603 = vsub.f32 %v1467, %v1558
        %v1604 = vsub.f32 %v1470, %v1560
        %v1605 = vsub.f32 %v1475, %v1562
        %v1606 = vsub.f32 %v1478, %v1564
        %v1607 = vsub.f32 %v1483, %v1566
        %v1608 = vsub.f32 %v1486, %v1568
        %v1609 = vsub.f32 %v1491, %v1570
        %v1610 = vsub.f32 %v1494, %v1572
        %v1611 = vsub.f32 %v1499, %v1574
        %v1612 = vsub.f32 %v1502, %v1576
        %v1613 = vsub.f32 %v1507, %v1578
        %v1614 = vsub.f32 %v1510, %v1580
        %v1615 = vsub.f32 %v1515, %v1582
        %v1616 = vsub.f32 %v1518, %v1584
        %v1617 = vmul.f32 %v1585, 1.442695
        %v1618 = vpow.pop %v1617
        %v1619 = vmul.f32 %v1586, 1.442695
        %v1620 = vpow.pop %v1619
        %v1621 = vmul.f32 %v1587, 1.442695
        %v1622 = vpow.pop %v1621
        %v1623 = vmul.f32 %v1588, 1.442695
        %v1624 = vpow.pop %v1623
        %v1625 = vmul.f32 %v1589, 1.442695
        %v1626 = vpow.pop %v1625
        %v1627 = vmul.f32 %v1590, 1.442695
        %v1628 = vpow.pop %v1627
        %v1629 = vmul.f32 %v1591, 1.442695
        %v1630 = vpow.pop %v1629
        %v1631 = vmul.f32 %v1592, 1.442695
        %v1632 = vpow.pop %v1631
        %v1633 = vmul.f32 %v1593, 1.442695
        %v1634 = vpow.pop %v1633
        %v1635 = vmul.f32 %v1594, 1.442695
        %v1636 = vpow.pop %v1635
        %v1637 = vmul.f32 %v1595, 1.442695
        %v1638 = vpow.pop %v1637
        %v1639 = vmul.f32 %v1596, 1.442695
        %v1640 = vpow.pop %v1639
        %v1641 = vmul.f32 %v1597, 1.442695
        %v1642 = vpow.pop %v1641
        %v1643 = vmul.f32 %v1598, 1.442695
        %v1644 = vpow.pop %v1643
        %v1645 = vmul.f32 %v1599, 1.442695
        %v1646 = vpow.pop %v1645
        %v1647 = vmul.f32 %v1600, 1.442695
        %v1648 = vpow.pop %v1647
        %v1649 = vmul.f32 %v1601, 1.442695
        %v1650 = vpow.pop %v1649
        %v1651 = vmul.f32 %v1602, 1.442695
        %v1652 = vpow.pop %v1651
        %v1653 = vmul.f32 %v1603, 1.442695
        %v1654 = vpow.pop %v1653
        %v1655 = vmul.f32 %v1604, 1.442695
        %v1656 = vpow.pop %v1655
        %v1657 = vmul.f32 %v1605, 1.442695
        %v1658 = vpow.pop %v1657
        %v1659 = vmul.f32 %v1606, 1.442695
        %v1660 = vpow.pop %v1659
        %v1661 = vmul.f32 %v1607, 1.442695
        %v1662 = vpow.pop %v1661
        %v1663 = vmul.f32 %v1608, 1.442695
        %v1664 = vpow.pop %v1663
        %v1665 = vmul.f32 %v1609, 1.442695
        %v1666 = vpow.pop %v1665
        %v1667 = vmul.f32 %v1610, 1.442695
        %v1668 = vpow.pop %v1667
        %v1669 = vmul.f32 %v1611, 1.442695
        %v1670 = vpow.pop %v1669
        %v1671 = vmul.f32 %v1612, 1.442695
        %v1672 = vpow.pop %v1671
        %v1673 = vmul.f32 %v1613, 1.442695
        %v1674 = vpow.pop %v1673
        %v1675 = vmul.f32 %v1614, 1.442695
        %v1676 = vpow.pop %v1675
        %v1677 = vmul.f32 %v1615, 1.442695
        %v1678 = vpow.pop %v1677
        %v1679 = vmul.f32 %v1616, 1.442695
        %v1680 = vpow.pop %v1679
        %1681 = vadd.xlane.f32.xlu0 %v1618
        %v1682 = vpop.xlane.xlu0 %1681
        %1683 = vadd.xlane.f32.xlu0 %v1620
        %v1684 = vpop.xlane.xlu0 %1683
        %1685 = vadd.xlane.f32.xlu0 %v1622
        %v1686 = vpop.xlane.xlu0 %1685
        %1687 = vadd.xlane.f32.xlu0 %v1624
        %v1688 = vpop.xlane.xlu0 %1687
        %1689 = vadd.xlane.f32.xlu0 %v1626
        %v1690 = vpop.xlane.xlu0 %1689
        %1691 = vadd.xlane.f32.xlu0 %v1628
        %v1692 = vpop.xlane.xlu0 %1691
        %1693 = vadd.xlane.f32.xlu0 %v1630
        %v1694 = vpop.xlane.xlu0 %1693
        %1695 = vadd.xlane.f32.xlu0 %v1632
        %v1696 = vpop.xlane.xlu0 %1695
        %1697 = vadd.xlane.f32.xlu0 %v1634
        %v1698 = vpop.xlane.xlu0 %1697
        %1699 = vadd.xlane.f32.xlu0 %v1636
        %v1700 = vpop.xlane.xlu0 %1699
        %1701 = vadd.xlane.f32.xlu0 %v1638
        %v1702 = vpop.xlane.xlu0 %1701
        %1703 = vadd.xlane.f32.xlu0 %v1640
        %v1704 = vpop.xlane.xlu0 %1703
        %1705 = vadd.xlane.f32.xlu0 %v1642
        %v1706 = vpop.xlane.xlu0 %1705
        %1707 = vadd.xlane.f32.xlu0 %v1644
        %v1708 = vpop.xlane.xlu0 %1707
        %1709 = vadd.xlane.f32.xlu0 %v1646
        %v1710 = vpop.xlane.xlu0 %1709
        %1711 = vadd.xlane.f32.xlu0 %v1648
        %v1712 = vpop.xlane.xlu0 %1711
        %1713 = vadd.xlane.f32.xlu0 %v1650
        %v1714 = vpop.xlane.xlu0 %1713
        %1715 = vadd.xlane.f32.xlu0 %v1652
        %v1716 = vpop.xlane.xlu0 %1715
        %1717 = vadd.xlane.f32.xlu0 %v1654
        %v1718 = vpop.xlane.xlu0 %1717
        %1719 = vadd.xlane.f32.xlu0 %v1656
        %v1720 = vpop.xlane.xlu0 %1719
        %1721 = vadd.xlane.f32.xlu0 %v1658
        %v1722 = vpop.xlane.xlu0 %1721
        %1723 = vadd.xlane.f32.xlu0 %v1660
        %v1724 = vpop.xlane.xlu0 %1723
        %1725 = vadd.xlane.f32.xlu0 %v1662
        %v1726 = vpop.xlane.xlu0 %1725
        %1727 = vadd.xlane.f32.xlu0 %v1664
        %v1728 = vpop.xlane.xlu0 %1727
        %1729 = vadd.xlane.f32.xlu0 %v1666
        %v1730 = vpop.xlane.xlu0 %1729
        %1731 = vadd.xlane.f32.xlu0 %v1668
        %v1732 = vpop.xlane.xlu0 %1731
        %1733 = vadd.xlane.f32.xlu0 %v1670
        %v1734 = vpop.xlane.xlu0 %1733
        %1735 = vadd.xlane.f32.xlu0 %v1672
        %v1736 = vpop.xlane.xlu0 %1735
        %1737 = vadd.xlane.f32.xlu0 %v1674
        %v1738 = vpop.xlane.xlu0 %1737
        %1739 = vadd.xlane.f32.xlu0 %v1676
        %v1740 = vpop.xlane.xlu0 %1739
        %1741 = vadd.xlane.f32.xlu0 %v1678
        %v1742 = vpop.xlane.xlu0 %1741
        %1743 = vadd.xlane.f32.xlu0 %v1680
        %v1744 = vpop.xlane.xlu0 %1743
        %v1745 = vrcp.pop %v1682
        %v1746 = vrcp.pop %v1684
        %v1747 = vrcp.pop %v1686
        %v1748 = vrcp.pop %v1688
        %v1749 = vrcp.pop %v1690
        %v1750 = vrcp.pop %v1692
        %v1751 = vrcp.pop %v1694
        %v1752 = vrcp.pop %v1696
        %v1753 = vrcp.pop %v1698
        %v1754 = vrcp.pop %v1700
        %v1755 = vrcp.pop %v1702
        %v1756 = vrcp.pop %v1704
        %v1757 = vrcp.pop %v1706
        %v1758 = vrcp.pop %v1708
        %v1759 = vrcp.pop %v1710
        %v1760 = vrcp.pop %v1712
        %v1761 = vrcp.pop %v1714
        %v1762 = vrcp.pop %v1716
        %v1763 = vrcp.pop %v1718
        %v1764 = vrcp.pop %v1720
        %v1765 = vrcp.pop %v1722
        %v1766 = vrcp.pop %v1724
        %v1767 = vrcp.pop %v1726
        %v1768 = vrcp.pop %v1728
        %v1769 = vrcp.pop %v1730
        %v1770 = vrcp.pop %v1732
        %v1771 = vrcp.pop %v1734
        %v1772 = vrcp.pop %v1736
        %v1773 = vrcp.pop %v1738
        %v1774 = vrcp.pop %v1740
        %v1775 = vrcp.pop %v1742
        %v1776 = vrcp.pop %v1744
        %v1777 = vpack.c.bf16 %v1620, %v1618
        %v1778 = vpack.c.bf16 %v1624, %v1622
        %v1779 = vpack.c.bf16 %v1628, %v1626
        %v1780 = vpack.c.bf16 %v1632, %v1630
        %v1781 = vpack.c.bf16 %v1636, %v1634
        %v1782 = vpack.c.bf16 %v1640, %v1638
        %v1783 = vpack.c.bf16 %v1644, %v1642
        %v1784 = vpack.c.bf16 %v1648, %v1646
        %v1785 = vpack.c.bf16 %v1652, %v1650
        %v1786 = vpack.c.bf16 %v1656, %v1654
        %v1787 = vpack.c.bf16 %v1660, %v1658
        %v1788 = vpack.c.bf16 %v1664, %v1662
        %v1789 = vpack.c.bf16 %v1668, %v1666
        %v1790 = vpack.c.bf16 %v1672, %v1670
        %v1791 = vpack.c.bf16 %v1676, %v1674
        %v1792 = vpack.c.bf16 %v1680, %v1678
        %1793 = vmatprep.subr.bf16.mxu0 0
        %1794 = vmatpush1.bf16.msra.mxu0 %v1344
        %1795 = vmatprep.subr.bf16.mxu0 0
        %1796 = vmatpush1.bf16.msra.mxu0 %v1345
        %1797 = vmatprep.subr.bf16.mxu0 0
        %1798 = vmatpush1.bf16.msra.mxu0 %v1346
        %1799 = vmatprep.subr.bf16.mxu0 0
        %1800 = vmatpush1.bf16.msra.mxu0 %v1347
        %1801 = vmatprep.subr.bf16.mxu0 0
        %1802 = vmatpush1.bf16.msra.mxu0 %v1348
        %1803 = vmatprep.subr.bf16.mxu0 0
        %1804 = vmatpush1.bf16.msra.mxu0 %v1349
        %1805 = vmatprep.subr.bf16.mxu0 0
        %1806 = vmatpush1.bf16.msra.mxu0 %v1350
        %1807 = vmatprep.subr.bf16.mxu0 0
        %1808 = vmatpush1.bf16.msra.mxu0 %v1351
        %1809 = vmatprep.subr.bf16.mxu0 0
        %1810 = vmatpush1.bf16.msra.mxu0 0
        %1811 = vmatprep.subr.bf16.mxu0 0
        %1812 = vmatpush1.bf16.msra.mxu0 0
        %1813 = vmatprep.subr.bf16.mxu0 0
        %1814 = vmatpush1.bf16.msra.mxu0 0
        %1815 = vmatprep.subr.bf16.mxu0 0
        %1816 = vmatpush1.bf16.msra.mxu0 0
        %1817 = vmatprep.subr.bf16.mxu0 0
        %1818 = vmatpush1.bf16.msra.mxu0 0
        %1819 = vmatprep.subr.bf16.mxu0 0
        %1820 = vmatpush1.bf16.msra.mxu0 0
        %1821 = vmatprep.subr.bf16.mxu0 0
        %1822 = vmatpush1.bf16.msra.mxu0 0
        %1823 = vmatprep.subr.bf16.mxu0 0
        %1824 = vmatpush1.bf16.msra.mxu0 0
        %1825 = vmatprep.mubr.bf16.mxu0 0
        %1826 = vmatmul.mubr.bf16.gmra.mrb[0].mxu0 %v1777
        %v1827 = vpop.f32.mrb[0].mxu0
        %v1828 = vadd.f32 0.0, %v1827
        %v1829 = vpop.f32.mrb[0].mxu0
        %v1830 = vpop.f32.mrb[0].mxu0
        %v1831 = vadd.f32 0.0, %v1830
        %v1832 = vpop.f32.mrb[0].mxu0
        %1833 = vmatprep.mubr.bf16.mxu0 0
        %1834 = vmatmul.mubr.bf16.gmra.mrb[0].mxu0 %v1778
        %v1835 = vpop.f32.mrb[0].mxu0
        %v1836 = vadd.f32 0.0, %v1835
        %v1837 = vpop.f32.mrb[0].mxu0
        %v1838 = vpop.f32.mrb[0].mxu0
        %v1839 = vadd.f32 0.0, %v1838
        %v1840 = vpop.f32.mrb[0].mxu0
        %1841 = vmatprep.mubr.bf16.mxu0 0
        %1842 = vmatmul.mubr.bf16.gmra.mrb[0].mxu0 %v1779
        %v1843 = vpop.f32.mrb[0].mxu0
        %v1844 = vadd.f32 0.0, %v1843
        %v1845 = vpop.f32.mrb[0].mxu0
        %v1846 = vpop.f32.mrb[0].mxu0
        %v1847 = vadd.f32 0.0, %v1846
        %v1848 = vpop.f32.mrb[0].mxu0
        %1849 = vmatprep.mubr.bf16.mxu0 0
        %1850 = vmatmul.mubr.bf16.gmra.mrb[0].mxu0 %v1780
        %v1851 = vpop.f32.mrb[0].mxu0
        %v1852 = vadd.f32 0.0, %v1851
        %v1853 = vpop.f32.mrb[0].mxu0
        %v1854 = vpop.f32.mrb[0].mxu0
        %v1855 = vadd.f32 0.0, %v1854
        %v1856 = vpop.f32.mrb[0].mxu0
        %1857 = vmatprep.mubr.bf16.mxu0 0
        %1858 = vmatmul.mubr.bf16.gmra.mrb[0].mxu0 %v1781
        %v1859 = vpop.f32.mrb[0].mxu0
        %v1860 = vadd.f32 0.0, %v1859
        %v1861 = vpop.f32.mrb[0].mxu0
        %v1862 = vpop.f32.mrb[0].mxu0
        %v1863 = vadd.f32 0.0, %v1862
        %v1864 = vpop.f32.mrb[0].mxu0
        %1865 = vmatprep.mubr.bf16.mxu0 0
        %1866 = vmatmul.mubr.bf16.gmra.mrb[0].mxu0 %v1782
        %v1867 = vpop.f32.mrb[0].mxu0
        %v1868 = vadd.f32 0.0, %v1867
        %v1869 = vpop.f32.mrb[0].mxu0
        %v1870 = vpop.f32.mrb[0].mxu0
        %v1871 = vadd.f32 0.0, %v1870
        %v1872 = vpop.f32.mrb[0].mxu0
        %1873 = vmatprep.mubr.bf16.mxu0 0
        %1874 = vmatmul.mubr.bf16.gmra.mrb[0].mxu0 %v1783
        %v1875 = vpop.f32.mrb[0].mxu0
        %v1876 = vadd.f32 0.0, %v1875
        %v1877 = vpop.f32.mrb[0].mxu0
        %v1878 = vpop.f32.mrb[0].mxu0
        %v1879 = vadd.f32 0.0, %v1878
        %v1880 = vpop.f32.mrb[0].mxu0
        %1881 = vmatprep.mubr.bf16.mxu0 0
        %1882 = vmatmul.mubr.bf16.gmra.mrb[0].mxu0 %v1784
        %v1883 = vpop.f32.mrb[0].mxu0
        %v1884 = vadd.f32 0.0, %v1883
        %v1885 = vpop.f32.mrb[0].mxu0
        %v1886 = vpop.f32.mrb[0].mxu0
        %v1887 = vadd.f32 0.0, %v1886
        %v1888 = vpop.f32.mrb[0].mxu0
        %1889 = vmatprep.mubr.bf16.mxu0 0
        %1890 = vmatmul.mubr.bf16.gmra.mrb[0].mxu0 %v1785
        %v1891 = vpop.f32.mrb[0].mxu0
        %v1892 = vadd.f32 0.0, %v1891
        %v1893 = vpop.f32.mrb[0].mxu0
        %v1894 = vpop.f32.mrb[0].mxu0
        %v1895 = vadd.f32 0.0, %v1894
        %v1896 = vpop.f32.mrb[0].mxu0
        %1897 = vmatprep.mubr.bf16.mxu0 0
        %1898 = vmatmul.mubr.bf16.gmra.mrb[0].mxu0 %v1786
        %v1899 = vpop.f32.mrb[0].mxu0
        %v1900 = vadd.f32 0.0, %v1899
        %v1901 = vpop.f32.mrb[0].mxu0
        %v1902 = vpop.f32.mrb[0].mxu0
        %v1903 = vadd.f32 0.0, %v1902
        %v1904 = vpop.f32.mrb[0].mxu0
        %1905 = vmatprep.mubr.bf16.mxu0 0
        %1906 = vmatmul.mubr.bf16.gmra.mrb[0].mxu0 %v1787
        %v1907 = vpop.f32.mrb[0].mxu0
        %v1908 = vadd.f32 0.0, %v1907
        %v1909 = vpop.f32.mrb[0].mxu0
        %v1910 = vpop.f32.mrb[0].mxu0
        %v1911 = vadd.f32 0.0, %v1910
        %v1912 = vpop.f32.mrb[0].mxu0
        %1913 = vmatprep.mubr.bf16.mxu0 0
        %1914 = vmatmul.mubr.bf16.gmra.mrb[0].mxu0 %v1788
        %v1915 = vpop.f32.mrb[0].mxu0
        %v1916 = vadd.f32 0.0, %v1915
        %v1917 = vpop.f32.mrb[0].mxu0
        %v1918 = vpop.f32.mrb[0].mxu0
        %v1919 = vadd.f32 0.0, %v1918
        %v1920 = vpop.f32.mrb[0].mxu0
        %1921 = vmatprep.mubr.bf16.mxu0 0
        %1922 = vmatmul.mubr.bf16.gmra.mrb[0].mxu0 %v1789
        %v1923 = vpop.f32.mrb[0].mxu0
        %v1924 = vadd.f32 0.0, %v1923
        %v1925 = vpop.f32.mrb[0].mxu0
        %v1926 = vpop.f32.mrb[0].mxu0
        %v1927 = vadd.f32 0.0, %v1926
        %v1928 = vpop.f32.mrb[0].mxu0
        %1929 = vmatprep.mubr.bf16.mxu0 0
        %1930 = vmatmul.mubr.bf16.gmra.mrb[0].mxu0 %v1790
        %v1931 = vpop.f32.mrb[0].mxu0
        %v1932 = vadd.f32 0.0, %v1931
        %v1933 = vpop.f32.mrb[0].mxu0
        %v1934 = vpop.f32.mrb[0].mxu0
        %v1935 = vadd.f32 0.0, %v1934
        %v1936 = vpop.f32.mrb[0].mxu0
        %1937 = vmatprep.mubr.bf16.mxu0 0
        %1938 = vmatmul.mubr.bf16.gmra.mrb[0].mxu0 %v1791
        %v1939 = vpop.f32.mrb[0].mxu0
        %v1940 = vadd.f32 0.0, %v1939
        %v1941 = vpop.f32.mrb[0].mxu0
        %v1942 = vpop.f32.mrb[0].mxu0
        %v1943 = vadd.f32 0.0, %v1942
        %v1944 = vpop.f32.mrb[0].mxu0
        %1945 = vmatprep.mubr.bf16.mxu0 0
        %1946 = vmatmul.mubr.bf16.gmra.mrb[0].mxu0 %v1792
        %v1947 = vpop.f32.mrb[0].mxu0
        %v1948 = vadd.f32 0.0, %v1947
        %v1949 = vpop.f32.mrb[0].mxu0
        %v1950 = vpop.f32.mrb[0].mxu0
        %v1951 = vadd.f32 0.0, %v1950
        %v1952 = vpop.f32.mrb[0].mxu0
        %1953 = vdwg.mxu0
        %v1954 = vmul.f32 %v1828, %v1745
        %v1955 = vmul.f32 %v1831, %v1746
        %v1956 = vmul.f32 %v1836, %v1747
        %v1957 = vmul.f32 %v1839, %v1748
        %v1958 = vmul.f32 %v1844, %v1749
        %v1959 = vmul.f32 %v1847, %v1750
        %v1960 = vmul.f32 %v1852, %v1751
        %v1961 = vmul.f32 %v1855, %v1752
        %v1962 = vmul.f32 %v1860, %v1753
        %v1963 = vmul.f32 %v1863, %v1754
        %v1964 = vmul.f32 %v1868, %v1755
        %v1965 = vmul.f32 %v1871, %v1756
        %v1966 = vmul.f32 %v1876, %v1757
        %v1967 = vmul.f32 %v1879, %v1758
        %v1968 = vmul.f32 %v1884, %v1759
        %v1969 = vmul.f32 %v1887, %v1760
        %v1970 = vmul.f32 %v1892, %v1761
        %v1971 = vmul.f32 %v1895, %v1762
        %v1972 = vmul.f32 %v1900, %v1763
        %v1973 = vmul.f32 %v1903, %v1764
        %v1974 = vmul.f32 %v1908, %v1765
        %v1975 = vmul.f32 %v1911, %v1766
        %v1976 = vmul.f32 %v1916, %v1767
        %v1977 = vmul.f32 %v1919, %v1768
        %v1978 = vmul.f32 %v1924, %v1769
        %v1979 = vmul.f32 %v1927, %v1770
        %v1980 = vmul.f32 %v1932, %v1771
        %v1981 = vmul.f32 %v1935, %v1772
        %v1982 = vmul.f32 %v1940, %v1773
        %v1983 = vmul.f32 %v1943, %v1774
        %v1984 = vmul.f32 %v1948, %v1775
        %v1985 = vmul.f32 %v1951, %v1776
        %v1986 = vpack.c.bf16 %v1955, %v1954
        %v1987 = vpack.c.bf16 %v1957, %v1956
        %v1988 = vpack.c.bf16 %v1959, %v1958
        %v1989 = vpack.c.bf16 %v1961, %v1960
        %v1990 = vpack.c.bf16 %v1963, %v1962
        %v1991 = vpack.c.bf16 %v1965, %v1964
        %v1992 = vpack.c.bf16 %v1967, %v1966
        %v1993 = vpack.c.bf16 %v1969, %v1968
        %v1994 = vpack.c.bf16 %v1971, %v1970
        %v1995 = vpack.c.bf16 %v1973, %v1972
        %v1996 = vpack.c.bf16 %v1975, %v1974
        %v1997 = vpack.c.bf16 %v1977, %v1976
        %v1998 = vpack.c.bf16 %v1979, %v1978
        %v1999 = vpack.c.bf16 %v1981, %v1980
        %v2000 = vpack.c.bf16 %v1983, %v1982
        %v2001 = vpack.c.bf16 %v1985, %v1984
        %v2002 = vld [vmem:[#allocation8] sm:$0xf]
        %v2003 = vld [vmem:[#allocation8 + $0x4] sm:$0xf]
        %v2004 = vld [vmem:[#allocation8 + $0x8] sm:$0xf]
        %v2005 = vld [vmem:[#allocation8 + $0xc] sm:$0xf]
        %v2006 = vld [vmem:[#allocation8 + $0x10] sm:$0xf]
        %v2007 = vld [vmem:[#allocation8 + $0x14] sm:$0xf]
        %v2008 = vld [vmem:[#allocation8 + $0x18] sm:$0xf]
        %v2009 = vld [vmem:[#allocation8 + $0x1c] sm:$0xf]
        %v2010 = vld [vmem:[#allocation8 + $0x20] sm:$0xf]
        %v2011 = vld [vmem:[#allocation8 + $0x24] sm:$0xf]
        %v2012 = vld [vmem:[#allocation8 + $0x28] sm:$0xf]
        %v2013 = vld [vmem:[#allocation8 + $0x2c] sm:$0xf]
        %v2014 = vld [vmem:[#allocation8 + $0x30] sm:$0xf]
        %v2015 = vld [vmem:[#allocation8 + $0x34] sm:$0xf]
        %v2016 = vld [vmem:[#allocation8 + $0x38] sm:$0xf]
        %v2017 = vld [vmem:[#allocation8 + $0x3c] sm:$0xf]
        %v2018 = vld [vmem:[%s8] sm:$0x1]
        %v2020 = vlaneseq
        %v2021 = vshrl.u32 %v2020, 7
        %v2022 = vsub.s32 0, %v2021
        %v2023 = vrot.slane %v2018, %v2022
        %v2041 = vunpack.c.l.b16 %v2002
        %v2042 = vunpack.c.l.b16 %v2003
        %v2043 = vunpack.c.l.b16 %v2004
        %v2044 = vunpack.c.l.b16 %v2005
        %v2045 = vunpack.c.l.b16 %v2006
        %v2046 = vunpack.c.l.b16 %v2007
        %v2047 = vunpack.c.l.b16 %v2008
        %v2048 = vunpack.c.l.b16 %v2009
        %v2049 = vunpack.c.l.b16 %v2010
        %v2050 = vunpack.c.l.b16 %v2011
        %v2051 = vunpack.c.l.b16 %v2012
        %v2052 = vunpack.c.l.b16 %v2013
        %v2053 = vunpack.c.l.b16 %v2014
        %v2054 = vunpack.c.l.b16 %v2015
        %v2055 = vunpack.c.l.b16 %v2016
        %v2056 = vunpack.c.l.b16 %v2017
        %v2057 = vpack.c.b16 %v2042, %v2041
        %v2058 = vpack.c.b16 %v2044, %v2043
        %v2059 = vpack.c.b16 %v2046, %v2045
        %v2060 = vpack.c.b16 %v2048, %v2047
        %v2061 = vpack.c.b16 %v2050, %v2049
        %v2062 = vpack.c.b16 %v2052, %v2051
        %v2063 = vpack.c.b16 %v2054, %v2053
        %v2064 = vpack.c.b16 %v2056, %v2055
        %2073 = vmatprep.subr.bf16.mxu0 0
        %2074 = vmatpush1.bf16.msra.mxu0 %v2057
        %2075 = vmatprep.subr.bf16.mxu0 0
        %2076 = vmatpush1.bf16.msra.mxu0 %v2058
        %2077 = vmatprep.subr.bf16.mxu0 0
        %2078 = vmatpush1.bf16.msra.mxu0 %v2059
        %2079 = vmatprep.subr.bf16.mxu0 0
        %2080 = vmatpush1.bf16.msra.mxu0 %v2060
        %2081 = vmatprep.subr.bf16.mxu0 0
        %2082 = vmatpush1.bf16.msra.mxu0 %v2061
        %2083 = vmatprep.subr.bf16.mxu0 0
        %2084 = vmatpush1.bf16.msra.mxu0 %v2062
        %2085 = vmatprep.subr.bf16.mxu0 0
        %2086 = vmatpush1.bf16.msra.mxu0 %v2063
        %2087 = vmatprep.subr.bf16.mxu0 0
        %2088 = vmatpush1.bf16.msra.mxu0 %v2064
        %2089 = vmatprep.subr.bf16.mxu0 0
        %2090 = vmatpush1.bf16.msra.mxu0 0
        %2091 = vmatprep.subr.bf16.mxu0 0
        %2092 = vmatpush1.bf16.msra.mxu0 0
        %2093 = vmatprep.subr.bf16.mxu0 0
        %2094 = vmatpush1.bf16.msra.mxu0 0
        %2095 = vmatprep.subr.bf16.mxu0 0
        %2096 = vmatpush1.bf16.msra.mxu0 0
        %2097 = vmatprep.subr.bf16.mxu0 0
        %2098 = vmatpush1.bf16.msra.mxu0 0
        %2099 = vmatprep.subr.bf16.mxu0 0
        %2100 = vmatpush1.bf16.msra.mxu0 0
        %2101 = vmatprep.subr.bf16.mxu0 0
        %2102 = vmatpush1.bf16.msra.mxu0 0
        %2103 = vmatprep.subr.bf16.mxu0 0
        %2104 = vmatpush1.bf16.msra.mxu0 0
        %2105 = vmatprep.mubr.bf16.mxu0 0
        %2106 = vmatmul.mubr.bf16.gmra.mrb[0].mxu0 %v1986
        %v2107 = vpop.f32.mrb[0].mxu0
        %v2108 = vadd.f32 %v2023, %v2107
        %v2109 = vpop.f32.mrb[0].mxu0
        %v2110 = vpop.f32.mrb[0].mxu0
        %v2111 = vadd.f32 %v2023, %v2110
        %v2112 = vpop.f32.mrb[0].mxu0
        %2113 = vmatprep.mubr.bf16.mxu0 0
        %2114 = vmatmul.mubr.bf16.gmra.mrb[0].mxu0 %v1987
        %v2115 = vpop.f32.mrb[0].mxu0
        %v2116 = vadd.f32 %v2023, %v2115
        %v2117 = vpop.f32.mrb[0].mxu0
        %v2118 = vpop.f32.mrb[0].mxu0
        %v2119 = vadd.f32 %v2023, %v2118
        %v2120 = vpop.f32.mrb[0].mxu0
        %2121 = vmatprep.mubr.bf16.mxu0 0
        %2122 = vmatmul.mubr.bf16.gmra.mrb[0].mxu0 %v1988
        %v2123 = vpop.f32.mrb[0].mxu0
        %v2124 = vadd.f32 %v2023, %v2123
        %v2125 = vpop.f32.mrb[0].mxu0
        %v2126 = vpop.f32.mrb[0].mxu0
        %v2127 = vadd.f32 %v2023, %v2126
        %v2128 = vpop.f32.mrb[0].mxu0
        %2129 = vmatprep.mubr.bf16.mxu0 0
        %2130 = vmatmul.mubr.bf16.gmra.mrb[0].mxu0 %v1989
        %v2131 = vpop.f32.mrb[0].mxu0
        %v2132 = vadd.f32 %v2023, %v2131
        %v2133 = vpop.f32.mrb[0].mxu0
        %v2134 = vpop.f32.mrb[0].mxu0
        %v2135 = vadd.f32 %v2023, %v2134
        %v2136 = vpop.f32.mrb[0].mxu0
        %2137 = vmatprep.mubr.bf16.mxu0 0
        %2138 = vmatmul.mubr.bf16.gmra.mrb[0].mxu0 %v1990
        %v2139 = vpop.f32.mrb[0].mxu0
        %v2140 = vadd.f32 %v2023, %v2139
        %v2141 = vpop.f32.mrb[0].mxu0
        %v2142 = vpop.f32.mrb[0].mxu0
        %v2143 = vadd.f32 %v2023, %v2142
        %v2144 = vpop.f32.mrb[0].mxu0
        %2145 = vmatprep.mubr.bf16.mxu0 0
        %2146 = vmatmul.mubr.bf16.gmra.mrb[0].mxu0 %v1991
        %v2147 = vpop.f32.mrb[0].mxu0
        %v2148 = vadd.f32 %v2023, %v2147
        %v2149 = vpop.f32.mrb[0].mxu0
        %v2150 = vpop.f32.mrb[0].mxu0
        %v2151 = vadd.f32 %v2023, %v2150
        %v2152 = vpop.f32.mrb[0].mxu0
        %2153 = vmatprep.mubr.bf16.mxu0 0
        %2154 = vmatmul.mubr.bf16.gmra.mrb[0].mxu0 %v1992
        %v2155 = vpop.f32.mrb[0].mxu0
        %v2156 = vadd.f32 %v2023, %v2155
        %v2157 = vpop.f32.mrb[0].mxu0
        %v2158 = vpop.f32.mrb[0].mxu0
        %v2159 = vadd.f32 %v2023, %v2158
        %v2160 = vpop.f32.mrb[0].mxu0
        %2161 = vmatprep.mubr.bf16.mxu0 0
        %2162 = vmatmul.mubr.bf16.gmra.mrb[0].mxu0 %v1993
        %v2163 = vpop.f32.mrb[0].mxu0
        %v2164 = vadd.f32 %v2023, %v2163
        %v2165 = vpop.f32.mrb[0].mxu0
        %v2166 = vpop.f32.mrb[0].mxu0
        %v2167 = vadd.f32 %v2023, %v2166
        %v2168 = vpop.f32.mrb[0].mxu0
        %2169 = vmatprep.mubr.bf16.mxu0 0
        %2170 = vmatmul.mubr.bf16.gmra.mrb[0].mxu0 %v1994
        %v2171 = vpop.f32.mrb[0].mxu0
        %v2172 = vadd.f32 %v2023, %v2171
        %v2173 = vpop.f32.mrb[0].mxu0
        %v2174 = vpop.f32.mrb[0].mxu0
        %v2175 = vadd.f32 %v2023, %v2174
        %v2176 = vpop.f32.mrb[0].mxu0
        %2177 = vmatprep.mubr.bf16.mxu0 0
        %2178 = vmatmul.mubr.bf16.gmra.mrb[0].mxu0 %v1995
        %v2179 = vpop.f32.mrb[0].mxu0
        %v2180 = vadd.f32 %v2023, %v2179
        %v2181 = vpop.f32.mrb[0].mxu0
        %v2182 = vpop.f32.mrb[0].mxu0
        %v2183 = vadd.f32 %v2023, %v2182
        %v2184 = vpop.f32.mrb[0].mxu0
        %2185 = vmatprep.mubr.bf16.mxu0 0
        %2186 = vmatmul.mubr.bf16.gmra.mrb[0].mxu0 %v1996
        %v2187 = vpop.f32.mrb[0].mxu0
        %v2188 = vadd.f32 %v2023, %v2187
        %v2189 = vpop.f32.mrb[0].mxu0
        %v2190 = vpop.f32.mrb[0].mxu0
        %v2191 = vadd.f32 %v2023, %v2190
        %v2192 = vpop.f32.mrb[0].mxu0
        %2193 = vmatprep.mubr.bf16.mxu0 0
        %2194 = vmatmul.mubr.bf16.gmra.mrb[0].mxu0 %v1997
        %v2195 = vpop.f32.mrb[0].mxu0
        %v2196 = vadd.f32 %v2023, %v2195
        %v2197 = vpop.f32.mrb[0].mxu0
        %v2198 = vpop.f32.mrb[0].mxu0
        %v2199 = vadd.f32 %v2023, %v2198
        %v2200 = vpop.f32.mrb[0].mxu0
        %2201 = vmatprep.mubr.bf16.mxu0 0
        %2202 = vmatmul.mubr.bf16.gmra.mrb[0].mxu0 %v1998
        %v2203 = vpop.f32.mrb[0].mxu0
        %v2204 = vadd.f32 %v2023, %v2203
        %v2205 = vpop.f32.mrb[0].mxu0
        %v2206 = vpop.f32.mrb[0].mxu0
        %v2207 = vadd.f32 %v2023, %v2206
        %v2208 = vpop.f32.mrb[0].mxu0
        %2209 = vmatprep.mubr.bf16.mxu0 0
        %2210 = vmatmul.mubr.bf16.gmra.mrb[0].mxu0 %v1999
        %v2211 = vpop.f32.mrb[0].mxu0
        %v2212 = vadd.f32 %v2023, %v2211
        %v2213 = vpop.f32.mrb[0].mxu0
        %v2214 = vpop.f32.mrb[0].mxu0
        %v2215 = vadd.f32 %v2023, %v2214
        %v2216 = vpop.f32.mrb[0].mxu0
        %2217 = vmatprep.mubr.bf16.mxu0 0
        %2218 = vmatmul.mubr.bf16.gmra.mrb[0].mxu0 %v2000
        %v2219 = vpop.f32.mrb[0].mxu0
        %v2220 = vadd.f32 %v2023, %v2219
        %v2221 = vpop.f32.mrb[0].mxu0
        %v2222 = vpop.f32.mrb[0].mxu0
        %v2223 = vadd.f32 %v2023, %v2222
        %v2224 = vpop.f32.mrb[0].mxu0
        %2225 = vmatprep.mubr.bf16.mxu0 0
        %2226 = vmatmul.mubr.bf16.gmra.mrb[0].mxu0 %v2001
        %v2227 = vpop.f32.mrb[0].mxu0
        %v2228 = vadd.f32 %v2023, %v2227
        %v2229 = vpop.f32.mrb[0].mxu0
        %v2230 = vpop.f32.mrb[0].mxu0
        %v2231 = vadd.f32 %v2023, %v2230
        %v2232 = vpop.f32.mrb[0].mxu0
        %2233 = vdwg.mxu0
        %v2234 = vpack.c.bf16 %v2111, %v2108
        %v2235 = vpack.c.bf16 %v2119, %v2116
        %v2236 = vpack.c.bf16 %v2127, %v2124
        %v2237 = vpack.c.bf16 %v2135, %v2132
        %v2238 = vpack.c.bf16 %v2143, %v2140
        %v2239 = vpack.c.bf16 %v2151, %v2148
        %v2240 = vpack.c.bf16 %v2159, %v2156
        %v2241 = vpack.c.bf16 %v2167, %v2164
        %v2242 = vpack.c.bf16 %v2175, %v2172
        %v2243 = vpack.c.bf16 %v2183, %v2180
        %v2244 = vpack.c.bf16 %v2191, %v2188
        %v2245 = vpack.c.bf16 %v2199, %v2196
        %v2246 = vpack.c.bf16 %v2207, %v2204
        %v2247 = vpack.c.bf16 %v2215, %v2212
        %v2248 = vpack.c.bf16 %v2223, %v2220
        %v2249 = vpack.c.bf16 %v2231, %v2228
        %v2250 = vld [vmem:[#allocation10] sm:$0xf]
        %v2251 = vld [vmem:[#allocation10 + $0x4] sm:$0xf]
        %v2252 = vld [vmem:[#allocation10 + $0x8] sm:$0xf]
        %v2253 = vld [vmem:[#allocation10 + $0xc] sm:$0xf]
        %v2254 = vld [vmem:[#allocation10 + $0x10] sm:$0xf]
        %v2255 = vld [vmem:[#allocation10 + $0x14] sm:$0xf]
        %v2256 = vld [vmem:[#allocation10 + $0x18] sm:$0xf]
        %v2257 = vld [vmem:[#allocation10 + $0x1c] sm:$0xf]
        %v2258 = vld [vmem:[#allocation10 + $0x20] sm:$0xf]
        %v2259 = vld [vmem:[#allocation10 + $0x24] sm:$0xf]
        %v2260 = vld [vmem:[#allocation10 + $0x28] sm:$0xf]
        %v2261 = vld [vmem:[#allocation10 + $0x2c] sm:$0xf]
        %v2262 = vld [vmem:[#allocation10 + $0x30] sm:$0xf]
        %v2263 = vld [vmem:[#allocation10 + $0x34] sm:$0xf]
        %v2264 = vld [vmem:[#allocation10 + $0x38] sm:$0xf]
        %v2265 = vld [vmem:[#allocation10 + $0x3c] sm:$0xf]
        %v2266 = vld [vmem:[#allocation10 + $0x40] sm:$0xf]
        %v2267 = vld [vmem:[#allocation10 + $0x44] sm:$0xf]
        %v2268 = vld [vmem:[#allocation10 + $0x48] sm:$0xf]
        %v2269 = vld [vmem:[#allocation10 + $0x4c] sm:$0xf]
        %v2270 = vld [vmem:[#allocation10 + $0x50] sm:$0xf]
        %v2271 = vld [vmem:[#allocation10 + $0x54] sm:$0xf]
        %v2272 = vld [vmem:[#allocation10 + $0x58] sm:$0xf]
        %v2273 = vld [vmem:[#allocation10 + $0x5c] sm:$0xf]
        %v2274 = vld [vmem:[#allocation10 + $0x60] sm:$0xf]
        %v2275 = vld [vmem:[#allocation10 + $0x64] sm:$0xf]
        %v2276 = vld [vmem:[#allocation10 + $0x68] sm:$0xf]
        %v2277 = vld [vmem:[#allocation10 + $0x6c] sm:$0xf]
        %v2278 = vld [vmem:[#allocation10 + $0x70] sm:$0xf]
        %v2279 = vld [vmem:[#allocation10 + $0x74] sm:$0xf]
        %v2280 = vld [vmem:[#allocation10 + $0x78] sm:$0xf]
        %v2281 = vld [vmem:[#allocation10 + $0x7c] sm:$0xf]
        %v2282 = vld [vmem:[%s10] sm:$0x1]
        %v2284 = vlaneseq
        %v2285 = vshrl.u32 %v2284, 7
        %v2286 = vsub.s32 0, %v2285
        %v2287 = vrot.slane %v2282, %v2286
        %v2321 = vunpack.c.l.b16 %v2250
        %v2322 = vunpack.c.l.b16 %v2251
        %v2323 = vunpack.c.l.b16 %v2252
        %v2324 = vunpack.c.l.b16 %v2253
        %v2325 = vunpack.c.l.b16 %v2254
        %v2326 = vunpack.c.l.b16 %v2255
        %v2327 = vunpack.c.l.b16 %v2256
        %v2328 = vunpack.c.l.b16 %v2257
        %v2329 = vunpack.c.l.b16 %v2258
        %v2330 = vunpack.c.l.b16 %v2259
        %v2331 = vunpack.c.l.b16 %v2260
        %v2332 = vunpack.c.l.b16 %v2261
        %v2333 = vunpack.c.l.b16 %v2262
        %v2334 = vunpack.c.l.b16 %v2263
        %v2335 = vunpack.c.l.b16 %v2264
        %v2336 = vunpack.c.l.b16 %v2265
        %v2337 = vunpack.c.l.b16 %v2266
        %v2338 = vunpack.c.l.b16 %v2267
        %v2339 = vunpack.c.l.b16 %v2268
        %v2340 = vunpack.c.l.b16 %v2269
        %v2341 = vunpack.c.l.b16 %v2270
        %v2342 = vunpack.c.l.b16 %v2271
        %v2343 = vunpack.c.l.b16 %v2272
        %v2344 = vunpack.c.l.b16 %v2273
        %v2345 = vunpack.c.l.b16 %v2274
        %v2346 = vunpack.c.l.b16 %v2275
        %v2347 = vunpack.c.l.b16 %v2276
        %v2348 = vunpack.c.l.b16 %v2277
        %v2349 = vunpack.c.l.b16 %v2278
        %v2350 = vunpack.c.l.b16 %v2279
        %v2351 = vunpack.c.l.b16 %v2280
        %v2352 = vunpack.c.l.b16 %v2281
        %v2353 = vpack.c.b16 %v2322, %v2321
        %v2354 = vpack.c.b16 %v2324, %v2323
        %v2355 = vpack.c.b16 %v2326, %v2325
        %v2356 = vpack.c.b16 %v2328, %v2327
        %v2357 = vpack.c.b16 %v2330, %v2329
        %v2358 = vpack.c.b16 %v2332, %v2331
        %v2359 = vpack.c.b16 %v2334, %v2333
        %v2360 = vpack.c.b16 %v2336, %v2335
        %v2361 = vpack.c.b16 %v2338, %v2337
        %v2362 = vpack.c.b16 %v2340, %v2339
        %v2363 = vpack.c.b16 %v2342, %v2341
        %v2364 = vpack.c.b16 %v2344, %v2343
        %v2365 = vpack.c.b16 %v2346, %v2345
        %v2366 = vpack.c.b16 %v2348, %v2347
        %v2367 = vpack.c.b16 %v2350, %v2349
        %v2368 = vpack.c.b16 %v2352, %v2351
        %2385 = vmatprep.subr.bf16.mxu0 0
        %2386 = vmatpush1.bf16.msra.mxu0 %v2353
        %2387 = vmatprep.subr.bf16.mxu0 0
        %2388 = vmatpush1.bf16.msra.mxu0 %v2354
        %2389 = vmatprep.subr.bf16.mxu0 0
        %2390 = vmatpush1.bf16.msra.mxu0 %v2355
        %2391 = vmatprep.subr.bf16.mxu0 0
        %2392 = vmatpush1.bf16.msra.mxu0 %v2356
        %2393 = vmatprep.subr.bf16.mxu0 0
        %2394 = vmatpush1.bf16.msra.mxu0 %v2357
        %2395 = vmatprep.subr.bf16.mxu0 0
        %2396 = vmatpush1.bf16.msra.mxu0 %v2358
        %2397 = vmatprep.subr.bf16.mxu0 0
        %2398 = vmatpush1.bf16.msra.mxu0 %v2359
        %2399 = vmatprep.subr.bf16.mxu0 0
        %2400 = vmatpush1.bf16.msra.mxu0 %v2360
        %2401 = vmatprep.subr.bf16.mxu0 0
        %2402 = vmatpush1.bf16.msra.mxu0 %v2361
        %2403 = vmatprep.subr.bf16.mxu0 0
        %2404 = vmatpush1.bf16.msra.mxu0 %v2362
        %2405 = vmatprep.subr.bf16.mxu0 0
        %2406 = vmatpush1.bf16.msra.mxu0 %v2363
        %2407 = vmatprep.subr.bf16.mxu0 0
        %2408 = vmatpush1.bf16.msra.mxu0 %v2364
        %2409 = vmatprep.subr.bf16.mxu0 0
        %2410 = vmatpush1.bf16.msra.mxu0 %v2365
        %2411 = vmatprep.subr.bf16.mxu0 0
        %2412 = vmatpush1.bf16.msra.mxu0 %v2366
        %2413 = vmatprep.subr.bf16.mxu0 0
        %2414 = vmatpush1.bf16.msra.mxu0 %v2367
        %2415 = vmatprep.subr.bf16.mxu0 0
        %2416 = vmatpush1.bf16.msra.mxu0 %v2368
        %2417 = vmatprep.mubr.bf16.mxu0 %v2234
        %2418 = vmatmul.mubr.bf16.gmra.mrb[0].mxu0 %v1273
        %v2419 = vpop.f32.mrb[0].mxu0
        %v2420 = vadd.f32 %v2287, %v2419
        %v2421 = vpop.f32.mrb[0].mxu0
        %v2422 = vpop.f32.mrb[0].mxu0
        %v2423 = vadd.f32 %v2287, %v2422
        %v2424 = vpop.f32.mrb[0].mxu0
        %2425 = vmatprep.mubr.bf16.mxu0 %v2235
        %2426 = vmatmul.mubr.bf16.gmra.mrb[0].mxu0 %v1274
        %v2427 = vpop.f32.mrb[0].mxu0
        %v2428 = vadd.f32 %v2287, %v2427
        %v2429 = vpop.f32.mrb[0].mxu0
        %v2430 = vpop.f32.mrb[0].mxu0
        %v2431 = vadd.f32 %v2287, %v2430
        %v2432 = vpop.f32.mrb[0].mxu0
        %2433 = vmatprep.mubr.bf16.mxu0 %v2236
        %2434 = vmatmul.mubr.bf16.gmra.mrb[0].mxu0 %v1275
        %v2435 = vpop.f32.mrb[0].mxu0
        %v2436 = vadd.f32 %v2287, %v2435
        %v2437 = vpop.f32.mrb[0].mxu0
        %v2438 = vpop.f32.mrb[0].mxu0
        %v2439 = vadd.f32 %v2287, %v2438
        %v2440 = vpop.f32.mrb[0].mxu0
        %2441 = vmatprep.mubr.bf16.mxu0 %v2237
        %2442 = vmatmul.mubr.bf16.gmra.mrb[0].mxu0 %v1276
        %v2443 = vpop.f32.mrb[0].mxu0
        %v2444 = vadd.f32 %v2287, %v2443
        %v2445 = vpop.f32.mrb[0].mxu0
        %v2446 = vpop.f32.mrb[0].mxu0
        %v2447 = vadd.f32 %v2287, %v2446
        %v2448 = vpop.f32.mrb[0].mxu0
        %2449 = vmatprep.mubr.bf16.mxu0 %v2238
        %2450 = vmatmul.mubr.bf16.gmra.mrb[0].mxu0 %v1277
        %v2451 = vpop.f32.mrb[0].mxu0
        %v2452 = vadd.f32 %v2287, %v2451
        %v2453 = vpop.f32.mrb[0].mxu0
        %v2454 = vpop.f32.mrb[0].mxu0
        %v2455 = vadd.f32 %v2287, %v2454
        %v2456 = vpop.f32.mrb[0].mxu0
        %2457 = vmatprep.mubr.bf16.mxu0 %v2239
        %2458 = vmatmul.mubr.bf16.gmra.mrb[0].mxu0 %v1278
        %v2459 = vpop.f32.mrb[0].mxu0
        %v2460 = vadd.f32 %v2287, %v2459
        %v2461 = vpop.f32.mrb[0].mxu0
        %v2462 = vpop.f32.mrb[0].mxu0
        %v2463 = vadd.f32 %v2287, %v2462
        %v2464 = vpop.f32.mrb[0].mxu0
        %2465 = vmatprep.mubr.bf16.mxu0 %v2240
        %2466 = vmatmul.mubr.bf16.gmra.mrb[0].mxu0 %v1279
        %v2467 = vpop.f32.mrb[0].mxu0
        %v2468 = vadd.f32 %v2287, %v2467
        %v2469 = vpop.f32.mrb[0].mxu0
        %v2470 = vpop.f32.mrb[0].mxu0
        %v2471 = vadd.f32 %v2287, %v2470
        %v2472 = vpop.f32.mrb[0].mxu0
        %2473 = vmatprep.mubr.bf16.mxu0 %v2241
        %2474 = vmatmul.mubr.bf16.gmra.mrb[0].mxu0 %v1280
        %v2475 = vpop.f32.mrb[0].mxu0
        %v2476 = vadd.f32 %v2287, %v2475
        %v2477 = vpop.f32.mrb[0].mxu0
        %v2478 = vpop.f32.mrb[0].mxu0
        %v2479 = vadd.f32 %v2287, %v2478
        %v2480 = vpop.f32.mrb[0].mxu0
        %2481 = vmatprep.mubr.bf16.mxu0 %v2242
        %2482 = vmatmul.mubr.bf16.gmra.mrb[0].mxu0 %v1281
        %v2483 = vpop.f32.mrb[0].mxu0
        %v2484 = vadd.f32 %v2287, %v2483
        %v2485 = vpop.f32.mrb[0].mxu0
        %v2486 = vpop.f32.mrb[0].mxu0
        %v2487 = vadd.f32 %v2287, %v2486
        %v2488 = vpop.f32.mrb[0].mxu0
        %2489 = vmatprep.mubr.bf16.mxu0 %v2243
        %2490 = vmatmul.mubr.bf16.gmra.mrb[0].mxu0 %v1282
        %v2491 = vpop.f32.mrb[0].mxu0
        %v2492 = vadd.f32 %v2287, %v2491
        %v2493 = vpop.f32.mrb[0].mxu0
        %v2494 = vpop.f32.mrb[0].mxu0
        %v2495 = vadd.f32 %v2287, %v2494
        %v2496 = vpop.f32.mrb[0].mxu0
        %2497 = vmatprep.mubr.bf16.mxu0 %v2244
        %2498 = vmatmul.mubr.bf16.gmra.mrb[0].mxu0 %v1283
        %v2499 = vpop.f32.mrb[0].mxu0
        %v2500 = vadd.f32 %v2287, %v2499
        %v2501 = vpop.f32.mrb[0].mxu0
        %v2502 = vpop.f32.mrb[0].mxu0
        %v2503 = vadd.f32 %v2287, %v2502
        %v2504 = vpop.f32.mrb[0].mxu0
        %2505 = vmatprep.mubr.bf16.mxu0 %v2245
        %2506 = vmatmul.mubr.bf16.gmra.mrb[0].mxu0 %v1284
        %v2507 = vpop.f32.mrb[0].mxu0
        %v2508 = vadd.f32 %v2287, %v2507
        %v2509 = vpop.f32.mrb[0].mxu0
        %v2510 = vpop.f32.mrb[0].mxu0
        %v2511 = vadd.f32 %v2287, %v2510
        %v2512 = vpop.f32.mrb[0].mxu0
        %2513 = vmatprep.mubr.bf16.mxu0 %v2246
        %2514 = vmatmul.mubr.bf16.gmra.mrb[0].mxu0 %v1285
        %v2515 = vpop.f32.mrb[0].mxu0
        %v2516 = vadd.f32 %v2287, %v2515
        %v2517 = vpop.f32.mrb[0].mxu0
        %v2518 = vpop.f32.mrb[0].mxu0
        %v2519 = vadd.f32 %v2287, %v2518
        %v2520 = vpop.f32.mrb[0].mxu0
        %2521 = vmatprep.mubr.bf16.mxu0 %v2247
        %2522 = vmatmul.mubr.bf16.gmra.mrb[0].mxu0 %v1286
        %v2523 = vpop.f32.mrb[0].mxu0
        %v2524 = vadd.f32 %v2287, %v2523
        %v2525 = vpop.f32.mrb[0].mxu0
        %v2526 = vpop.f32.mrb[0].mxu0
        %v2527 = vadd.f32 %v2287, %v2526
        %v2528 = vpop.f32.mrb[0].mxu0
        %2529 = vmatprep.mubr.bf16.mxu0 %v2248
        %2530 = vmatmul.mubr.bf16.gmra.mrb[0].mxu0 %v1287
        %v2531 = vpop.f32.mrb[0].mxu0
        %v2532 = vadd.f32 %v2287, %v2531
        %v2533 = vpop.f32.mrb[0].mxu0
        %v2534 = vpop.f32.mrb[0].mxu0
        %v2535 = vadd.f32 %v2287, %v2534
        %v2536 = vpop.f32.mrb[0].mxu0
        %2537 = vmatprep.mubr.bf16.mxu0 %v2249
        %2538 = vmatmul.mubr.bf16.gmra.mrb[0].mxu0 %v1288
        %v2539 = vpop.f32.mrb[0].mxu0
        %v2540 = vadd.f32 %v2287, %v2539
        %v2541 = vpop.f32.mrb[0].mxu0
        %v2542 = vpop.f32.mrb[0].mxu0
        %v2543 = vadd.f32 %v2287, %v2542
        %v2544 = vpop.f32.mrb[0].mxu0
        %2545 = vdwg.mxu0
        %v2546 = vadd.f32 %v2420, %v993
        %v2547 = vadd.f32 %v2423, %v994
        %v2548 = vadd.f32 %v2428, %v995
        %v2549 = vadd.f32 %v2431, %v996
        %v2550 = vadd.f32 %v2436, %v997
        %v2551 = vadd.f32 %v2439, %v998
        %v2552 = vadd.f32 %v2444, %v999
        %v2553 = vadd.f32 %v2447, %v1000
        %v2554 = vadd.f32 %v2452, %v1001
        %v2555 = vadd.f32 %v2455, %v1002
        %v2556 = vadd.f32 %v2460, %v1003
        %v2557 = vadd.f32 %v2463, %v1004
        %v2558 = vadd.f32 %v2468, %v1005
        %v2559 = vadd.f32 %v2471, %v1006
        %v2560 = vadd.f32 %v2476, %v1007
        %v2561 = vadd.f32 %v2479, %v1008
        %v2562 = vadd.f32 %v2484, %v1009
        %v2563 = vadd.f32 %v2487, %v1010
        %v2564 = vadd.f32 %v2492, %v1011
        %v2565 = vadd.f32 %v2495, %v1012
        %v2566 = vadd.f32 %v2500, %v1013
        %v2567 = vadd.f32 %v2503, %v1014
        %v2568 = vadd.f32 %v2508, %v1015
        %v2569 = vadd.f32 %v2511, %v1016
        %v2570 = vadd.f32 %v2516, %v1017
        %v2571 = vadd.f32 %v2519, %v1018
        %v2572 = vadd.f32 %v2524, %v1019
        %v2573 = vadd.f32 %v2527, %v1020
        %v2574 = vadd.f32 %v2532, %v1021
        %v2575 = vadd.f32 %v2535, %v1022
        %v2576 = vadd.f32 %v2540, %v1023
        %v2577 = vadd.f32 %v2543, %v1024
        %2578 = vst [vmem:[%s462] sm:$0xff] %v2546
        %2579 = vst [vmem:[%s462 + $0x8] sm:$0xff] %v2547
        %2580 = vst [vmem:[%s462 + $0x10] sm:$0xff] %v2548
        %2581 = vst [vmem:[%s462 + $0x18] sm:$0xff] %v2549
        %2582 = vst [vmem:[%s462 + $0x20] sm:$0xff] %v2550
        %2583 = vst [vmem:[%s462 + $0x28] sm:$0xff] %v2551
        %2584 = vst [vmem:[%s462 + $0x30] sm:$0xff] %v2552
        %2585 = vst [vmem:[%s462 + $0x38] sm:$0xff] %v2553
        %2586 = vst [vmem:[%s462 + $0x40] sm:$0xff] %v2554
        %2587 = vst [vmem:[%s462 + $0x48] sm:$0xff] %v2555
        %2588 = vst [vmem:[%s462 + $0x50] sm:$0xff] %v2556
        %2589 = vst [vmem:[%s462 + $0x58] sm:$0xff] %v2557
        %2590 = vst [vmem:[%s462 + $0x60] sm:$0xff] %v2558
        %2591 = vst [vmem:[%s462 + $0x68] sm:$0xff] %v2559
        %2592 = vst [vmem:[%s462 + $0x70] sm:$0xff] %v2560
        %2593 = vst [vmem:[%s462 + $0x78] sm:$0xff] %v2561
        %2594 = vst [vmem:[%s462 + $0x80] sm:$0xff] %v2562
        %2595 = vst [vmem:[%s462 + $0x88] sm:$0xff] %v2563
        %2596 = vst [vmem:[%s462 + $0x90] sm:$0xff] %v2564
        %2597 = vst [vmem:[%s462 + $0x98] sm:$0xff] %v2565
        %2598 = vst [vmem:[%s462 + $0xa0] sm:$0xff] %v2566
        %2599 = vst [vmem:[%s462 + $0xa8] sm:$0xff] %v2567
        %2600 = vst [vmem:[%s462 + $0xb0] sm:$0xff] %v2568
        %2601 = vst [vmem:[%s462 + $0xb8] sm:$0xff] %v2569
        %2602 = vst [vmem:[%s462 + $0xc0] sm:$0xff] %v2570
        %2603 = vst [vmem:[%s462 + $0xc8] sm:$0xff] %v2571
        %2604 = vst [vmem:[%s462 + $0xd0] sm:$0xff] %v2572
        %2605 = vst [vmem:[%s462 + $0xd8] sm:$0xff] %v2573
        %2606 = vst [vmem:[%s462 + $0xe0] sm:$0xff] %v2574
        %2607 = vst [vmem:[%s462 + $0xe8] sm:$0xff] %v2575
        %2608 = vst [vmem:[%s462 + $0xf0] sm:$0xff] %v2576
        %2609 = vst [vmem:[%s462 + $0xf8] sm:$0xff] %v2577
        %s2610 = sand.u32 %s274, 1
        %s2611 = scalar_lea.sflag [#allocation4], %s2610
        %s2612 = sand.u32 %s274, 1
        %s2613 = smul.addr %s2612, 256
        %s2614 = scalar_lea.vmem [#allocation11], %s2613
        // Predicated region
        $region85: #{tpu_custom_call.1} parent=63 // pred_check
          %p2615 = pneg %p284
        $region86: #{tpu_custom_call.1} parent=63 // pred_check_branch
          %2617 = sbr.rel (%p2615) target = $region88
        $region87: #{tpu_custom_call.1} parent=63 // pred_region
          %s2618 = smul.u32 32, %s30
          %s2620 = ssub.s32 4096, 4096
          %2621 = vsyncadd %s2611, %s2620
          %s2622 = smul.addr %s2618, 128
          %s2623 = scalar_lea.hbm %s11, %s2622
          %s2624 = sshll.u32 %s2614, 4
          %s2625 = int_to_ptr.vmem [resolvable:$true] %s2624
          %2630 = dma.vmem_to_hbm [thread:$0]  %s2625, 4096, %s2623, %s2611, 128, 128, 8
        $region88: #{tpu_custom_call.1} parent=63 // pred_fallthru
          _
      $region64: #{tpu_custom_call.1} parent=5 // pred_fallthru
        _
      %p2631 = scmp.le.s32.totalorder 2, %s25
      // Predicated region
      $region89: #{tpu_custom_call.1} parent=5 // pred_check
        %p2632 = pneg %p2631
      $region90: #{tpu_custom_call.1} parent=5 // pred_check_branch
        %2634 = sbr.rel (%p2632) target = $region92
      $region91: #{tpu_custom_call.1} parent=5 // pred_region
        %s2635 = ssub.s32 %s25, 2
        // Predicated region
        $region93: #{tpu_custom_call.1} parent=91 // pred_check
          %p2636 = pneg %p290
        $region94: #{tpu_custom_call.1} parent=91 // pred_check_branch
          %2638 = sbr.rel (%p2636) target = $region96
        $region95: #{tpu_custom_call.1} parent=91 // pred_region
          %s2639 = sand.u32 %s275, 1
          %s2640 = scalar_lea.sflag [#allocation4], %s2639
          %s2641 = sand.u32 %s275, 1
          %s2642 = smul.addr %s2641, 256
          %s2643 = scalar_lea.vmem [#allocation11], %s2642
          %2644 = dma.done %s2640, 4096
        $region96: #{tpu_custom_call.1} parent=91 // pred_fallthru
          _
      $region92: #{tpu_custom_call.1} parent=5 // pred_fallthru
        _
    $region6: #{tpu_custom_call.1} parent=1 // loop_footer
      %s29 = sadd.s32 1, %s25
    $region7: #{tpu_custom_call.1} parent=1 // loop_footer_branch
      %24 = sbr.rel target = $region3
    $region8: #{tpu_custom_call.1} parent=1 // loop_exit
      _
    %2645 = vsyncpa [#allocation3], 1
    %s2646 = scalar_lea.sflag [#allocation3], 1
    %2647 = vsyncpa %s2646, 1
    %2648 = vsyncpa [#allocation6], 1
    %2649 = vsyncpa [#allocation9], 1
    %2650 = vsyncpa [#allocation4], 1
    %s2651 = scalar_lea.sflag [#allocation4], 1
    %2652 = vsyncpa %s2651, 1

</llo_original>
